<compile_context>
chip_gen: v7x
topology: tpu7x:2x2x1
jax: 0.10.0
libtpu: 0.0.40
codegen_flags: <defaults>
</compile_context>

<pallas_src>
import functools

import jax
import jax.numpy as jnp
from jax import lax
from jax.experimental import pallas as pl
from jax.experimental.pallas import tpu as pltpu


def build_pe_table(d_model: int, max_seq_len: int = 200, base_wave_length: int = 5):
    """Deterministic sinusoidal table, matching the PyTorch __init__ exactly."""
    assert d_model % 2 == 0, "identifier embedding must have an even number of dimensions"
    pos = jnp.arange(max_seq_len, dtype=jnp.float32)[:, None]          # (L, 1)
    i_even = jnp.arange(0, d_model, 2, dtype=jnp.float32)[None, :]     # (1, D/2)
    div = jnp.power(jnp.float32(base_wave_length), 2.0 * i_even / d_model)
    angles = pos / div                                                  # (L, D/2)
    pe = jnp.zeros((max_seq_len, d_model), dtype=jnp.float32)
    pe = pe.at[:, 0::2].set(jnp.sin(angles))
    pe = pe.at[:, 1::2].set(jnp.cos(angles))
    return pe


def _gather_kernel(idx_ref, pe_ref, out_ref, *, valid_len, l_pad):
    # idx_ref: VMEM (bn_p, G) int32   -- G raw row indices per packed out row
    # pe_ref:  VMEM (G*l_pad, G*D) f32 -- block-diagonal replicated pe table
    # out_ref: VMEM (bn_p, G*D) f32    -- G gathered rows packed along lanes
    bn_p, g_pack = idx_ref.shape
    k_dim = pe_ref.shape[0]                               # G * l_pad

    idx = idx_ref[...]                                    # (bn_p, G)
    # Sanitize: OOB (negative or >= valid_len) indices map to sentinel k_dim,
    # which can never match any one-hot column -> that row's output is zeros.
    valid = (idx >= 0) & (idx < valid_len)
    safe = jnp.where(valid, idx, k_dim)

    col = lax.broadcasted_iota(jnp.int32, (bn_p, k_dim), 1)
    # onehot[r, g*l_pad + l] = (idx[r, g] == l); built as G lane-broadcast
    # compares OR'd together (pure VPU work, one cast at the end).
    hit = None
    for g in range(g_pack):
        tgt = safe[:, g:g + 1] + g * l_pad                # (bn_p, 1)
        m = col == tgt                                    # broadcasts over lanes
        hit = m if hit is None else (hit | m)
    onehot = hit.astype(jnp.float32)                      # exact 0/1

    # One MXU matmul gathers G rows per packed output row.  HIGHEST precision
    # keeps the f32 pe operand off the single-pass bf16 path (true-gather
    # accuracy); one-hot rows make the accumulation numerically trivial.
    out_ref[...] = jnp.dot(onehot, pe_ref[...],
                           preferred_element_type=jnp.float32,
                           precision=lax.Precision.HIGHEST)


def identifier_encoder(x_idx, pe, block_n: int = 2048,
                       min_pallas_rows: int = 4096, force_pallas: bool = False):
    """Pallas equivalent of `pe[x]`; returns x.shape + (d_model,) float32.

    OOB indices produce all-zero rows in the Pallas path (torch would raise).
    """
    orig_shape = x_idx.shape
    L, D = pe.shape
    flat = x_idx.reshape(-1).astype(jnp.int32)
    n = flat.shape[0]

    if n == 0:
        return jnp.zeros((*orig_shape, D), pe.dtype)

    # Fast paths: tiny gathers (launch/grid overhead dominates) and very large
    # tables (one-hot construction is O(n * L) VPU work) use XLA's gather.
    if L > 1024 or (not force_pallas and n < min_pallas_rows):
        return jnp.take(pe, flat, axis=0).reshape(*orig_shape, D)

    # Pad table rows to a multiple of 256 so one-hot compare + MXU K are
    # unmasked (zero rows contribute nothing).
    l_pad = pl.cdiv(L, 256) * 256
    # Lane-dense packing factor: gather G rows per packed output row so the
    # output block is >=128 lanes wide.  Cap G so K = G*l_pad stays modest.
    if D < 128 and 128 % D == 0:
        g_pack = max(1, min(128 // D, 2048 // l_pad))
    else:
        g_pack = 1

    pe_pad = jnp.zeros((l_pad, D), jnp.float32).at[:L].set(pe.astype(jnp.float32))
    # Block-diagonal replicated table: pe_big[g*l_pad + l, g*D + d] = pe_pad[l, d].
    pe_big = jnp.kron(jnp.eye(g_pack, dtype=jnp.float32), pe_pad)

    # Block of bn original rows == bn/g_pack packed rows (multiple of 8 sublanes).
    row_quant = 8 * g_pack
    bn = max(row_quant, min(block_n, pl.next_power_of_2(n)))
    bn = pl.cdiv(bn, row_quant) * row_quant
    n_pad = pl.cdiv(n, bn) * bn
    # Padded tail indices are 0 (gather row 0); those rows are sliced off below.
    flat = jnp.pad(flat, (0, n_pad - n))
    # Row-major-identical relayouts (free): indices -> (n_pad/G, G).
    idx2d = flat.reshape(n_pad // g_pack, g_pack)

    bn_p = bn // g_pack
    k_dim = g_pack * l_pad
    nd = g_pack * D

    kernel = functools.partial(_gather_kernel, valid_len=L, l_pad=l_pad)
    out_packed = pl.pallas_call(
        kernel,
        out_shape=jax.ShapeDtypeStruct((n_pad // g_pack, nd), jnp.float32),
        grid=(n_pad // bn,),
        in_specs=[
            pl.BlockSpec((bn_p, g_pack), lambda i: (i, 0)),   # packed indices
            pl.BlockSpec((k_dim, nd), lambda i: (0, 0)),      # whole pe_big, resident
        ],
        out_specs=pl.BlockSpec((bn_p, nd), lambda i: (i, 0)),
        compiler_params=pltpu.CompilerParams(
            # Each output block is written by exactly one grid step.
            dimension_semantics=("parallel",),
            # Safe on all generations (<= physical VMEM everywhere); raises
            # v5e's 16 MiB default, matches v6e/v7x defaults.
            vmem_limit_bytes=32 * 1024 * 1024,
        ),
    )(idx2d, pe_big)

    # (n_pad/G, G*D) -> (n_pad, D) is the same row-major HBM layout (free).
    out_flat = out_packed.reshape(n_pad, D)[:n]
    return out_flat.reshape(*orig_shape, D)


if __name__ == "__main__":
    key = jax.random.PRNGKey(0)
    k1, k2, k3 = jax.random.split(key, 3)

    # --- small demo matching the module defaults (batch=2, seq=8) -----------
    d_model = 32
    max_seq_len = 64
    pe_small = build_pe_table(d_model, max_seq_len, base_wave_length=5)
    x_small = jax.random.randint(k1, (2, 8), minval=0, maxval=max_seq_len,
                                 dtype=jnp.int32)
    out_small = identifier_encoder(x_small, pe_small, force_pallas=True)
    out_small = jax.block_until_ready(out_small)
    ref_small = jnp.take(pe_small, x_small.reshape(-1), axis=0).reshape(2, 8, d_model)
    assert out_small.shape == (2, 8, d_model)
    assert out_small.dtype == jnp.float32
    assert bool(jnp.allclose(out_small, ref_small, atol=1e-6))

    # --- multi-block path (small block_n forces several grid steps) ---------
    pe_full = build_pe_table(d_model, max_seq_len=200, base_wave_length=5)
    x_mid = jax.random.randint(k2, (4, 300), minval=0, maxval=200, dtype=jnp.int32)
    out_mid = identifier_encoder(x_mid, pe_full, block_n=256, force_pallas=True)
    out_mid = jax.block_until_ready(out_mid)
    ref_mid = jnp.take(pe_full, x_mid.reshape(-1), axis=0).reshape(4, 300, d_model)
    assert bool(jnp.allclose(out_mid, ref_mid, atol=1e-6))

    # --- default dispatch path (n >= min_pallas_rows, default block_n) ------
    x_big = jax.random.randint(k3, (8, 600), minval=0, maxval=200, dtype=jnp.int32)
    out_big = identifier_encoder(x_big, pe_full)
    out_big = jax.block_until_ready(out_big)
    ref_big = jnp.take(pe_full, x_big.reshape(-1), axis=0).reshape(8, 600, d_model)
    assert bool(jnp.allclose(out_big, ref_big, atol=1e-6))

    print("KERNEL_OK")
</pallas_src>

<mosaic_0001>
module attributes {stable_mosaic.version = 11 : i64} {
  func.func @_gather_kernel(%arg0: i32, %arg1: memref<8x4xi32, #tpu.memory_space<vmem>>, %arg2: memref<1024x128xf32, #tpu.memory_space<vmem>>, %arg3: memref<8x128xf32, #tpu.memory_space<vmem>>) attributes {dimension_semantics = [#tpu.dimension_semantics<parallel>], iteration_bounds = array<i64: 1>, scalar_prefetch = 0 : i64, scratch_operands = 0 : i64, tpu.core_type = #tpu.core_type<tc>, window_params = [{transform_indices = @transform_0, window_bounds = array<i64: 8, 4>}, {pipeline_mode = #tpu.pipeline_mode<synchronous>, transform_indices = @transform_1, window_bounds = array<i64: 1024, 128>}, {transform_indices = @transform_2, window_bounds = array<i64: 8, 128>}]} {
    %c0 = arith.constant 0 : index
    %c0_0 = arith.constant 0 : index
    %0 = vector.load %arg1[%c0, %c0_0] : memref<8x4xi32, #tpu.memory_space<vmem>>, vector<8x4xi32>
    %c0_i32 = arith.constant 0 : i32
    %1 = vector.broadcast %c0_i32 : i32 to vector<8x4xi32>
    %2 = arith.cmpi sge, %0, %1 : vector<8x4xi32>
    %c64_i32 = arith.constant 64 : i32
    %3 = vector.broadcast %c64_i32 : i32 to vector<8x4xi32>
    %4 = arith.cmpi slt, %0, %3 : vector<8x4xi32>
    %5 = arith.andi %2, %4 : vector<8x4xi1>
    %c1024_i32 = arith.constant 1024 : i32
    %6 = vector.broadcast %c1024_i32 : i32 to vector<8x4xi32>
    %7 = arith.select %5, %0, %6 : vector<8x4xi1>, vector<8x4xi32>
    %8 = tpu.iota {dimensions = array<i32: 1>} : vector<8x1024xi32>
    %9 = vector.extract_strided_slice %7 {offsets = [0, 0], sizes = [8, 1], strides = [1, 1]} : vector<8x4xi32> to vector<8x1xi32>
    %c0_i32_1 = arith.constant 0 : i32
    %10 = vector.broadcast %c0_i32_1 : i32 to vector<8x1xi32>
    %11 = arith.addi %9, %10 : vector<8x1xi32>
    %12 = vector.broadcast %11 : vector<8x1xi32> to vector<8x1024xi32>
    %13 = arith.cmpi eq, %8, %12 : vector<8x1024xi32>
    %14 = vector.extract_strided_slice %7 {offsets = [0, 1], sizes = [8, 1], strides = [1, 1]} : vector<8x4xi32> to vector<8x1xi32>
    %c256_i32 = arith.constant 256 : i32
    %15 = vector.broadcast %c256_i32 : i32 to vector<8x1xi32>
    %16 = arith.addi %14, %15 : vector<8x1xi32>
    %17 = vector.broadcast %16 : vector<8x1xi32> to vector<8x1024xi32>
    %18 = arith.cmpi eq, %8, %17 : vector<8x1024xi32>
    %19 = arith.ori %13, %18 : vector<8x1024xi1>
    %20 = vector.extract_strided_slice %7 {offsets = [0, 2], sizes = [8, 1], strides = [1, 1]} : vector<8x4xi32> to vector<8x1xi32>
    %c512_i32 = arith.constant 512 : i32
    %21 = vector.broadcast %c512_i32 : i32 to vector<8x1xi32>
    %22 = arith.addi %20, %21 : vector<8x1xi32>
    %23 = vector.broadcast %22 : vector<8x1xi32> to vector<8x1024xi32>
    %24 = arith.cmpi eq, %8, %23 : vector<8x1024xi32>
    %25 = arith.ori %19, %24 : vector<8x1024xi1>
    %26 = vector.extract_strided_slice %7 {offsets = [0, 3], sizes = [8, 1], strides = [1, 1]} : vector<8x4xi32> to vector<8x1xi32>
    %c768_i32 = arith.constant 768 : i32
    %27 = vector.broadcast %c768_i32 : i32 to vector<8x1xi32>
    %28 = arith.addi %26, %27 : vector<8x1xi32>
    %29 = vector.broadcast %28 : vector<8x1xi32> to vector<8x1024xi32>
    %30 = arith.cmpi eq, %8, %29 : vector<8x1024xi32>
    %31 = arith.ori %25, %30 : vector<8x1024xi1>
    %32 = arith.extui %31 : vector<8x1024xi1> to vector<8x1024xi32>
    %33 = arith.sitofp %32 : vector<8x1024xi32> to vector<8x1024xf32>
    %c0_2 = arith.constant 0 : index
    %c0_3 = arith.constant 0 : index
    %34 = vector.load %arg2[%c0_2, %c0_3] : memref<1024x128xf32, #tpu.memory_space<vmem>>, vector<1024x128xf32>
    %cst = arith.constant dense<0.000000e+00> : vector<8x128xf32>
    %35 = tpu.matmul %33, %34, %cst {dimension_numbers = #tpu.dot_dimension_numbers<[1], [0], [0], [1], [0, 0, 1, 1], [], []>, precision = #tpu.contract_precision<fp32>} : vector<8x1024xf32>, vector<1024x128xf32>, vector<8x128xf32> -> vector<8x128xf32>
    %c0_4 = arith.constant 0 : index
    %c0_5 = arith.constant 0 : index
    %36 = vector.load %arg3[%c0_4, %c0_5] : memref<8x128xf32, #tpu.memory_space<vmem>>, vector<8x128xf32>
    tpu.vector_store %arg3[%c0_4, %c0_5], %35 {strides = array<i32>} : memref<8x128xf32, #tpu.memory_space<vmem>>, vector<8x128xf32>,
    return
  }
  func.func @transform_0(%arg0: i32) -> (i32, i32) {
    %c0_i32 = arith.constant 0 : i32
    %c0_i32_0 = arith.constant 0 : i32
    return %arg0, %c0_i32 : i32, i32
  }
  func.func @transform_1(%arg0: i32) -> (i32, i32) {
    %c0_i32 = arith.constant 0 : i32
    %c0_i32_0 = arith.constant 0 : i32
    %c0_i32_1 = arith.constant 0 : i32
    return %c0_i32, %c0_i32_0 : i32, i32
  }
  func.func @transform_2(%arg0: i32) -> (i32, i32) {
    %c0_i32 = arith.constant 0 : i32
    %c0_i32_0 = arith.constant 0 : i32
    return %arg0, %c0_i32 : i32, i32
  }
}

</mosaic_0001>

<llo_original>
// kernel: tpu_custom_call.1
$region0: #{tpu_custom_call.1}
  #allocation0 [shape = 'u32[]', space=smem, size = 0x4, offset = 0x4, fixed_abs, tag = 'smem constant byte address 0x4 - core index']
  #allocation1 [shape = 'u32[144,128]{1,0:T(1,128)}', space=vmem, size = 0x12000, scoped, tag = 'internal scratch']
  %s0 = inlined_call_operand.vmem [shape: s32[8,4], index: 0, kind: input, shape index: {}]
  %s1 = inlined_call_operand.hbm [shape: f32[1024,128], index: 1, kind: input, shape index: {}]
  %s2 = inlined_call_operand.hbm [shape: f32[8,128], index: 2, kind: output, shape index: {}]
  %s3 = sld [smem:[#allocation0]]
  $region22: #{tpu_custom_call.1} parent=0
    _
  %s5 = ssub.s32 1, %s3
  %s6 = scalar_select 0, %s5, %s3
  $region1: #{tpu_custom_call.1} parent=0
    #allocation2 [shape = 'u8[524288]{0}', space=vmem, size = 0x80000, scoped, tag = 'input window, operand 1, single buffered']
    #allocation3 [shape = 's32[1]{0}', space=sflag, size = 0x4, scoped, tag = 'scoped memory for tpu_custom_call.1']
    #allocation4 [shape = 's32[1]{0}', space=sflag, size = 0x4, scoped, tag = 'scoped memory for tpu_custom_call.1']
    #allocation5 [shape = 'u8[4096]{0}', space=vmem, size = 0x1000, scoped, tag = 'output window, operand 0, single buffered']
    %7 = vsyncpa [#allocation3], 0
    %8 = vsyncpa [#allocation4], 0
    // Predicated region
    $region2: #{tpu_custom_call.1} parent=1 // pred_check
      _
    $region3: #{tpu_custom_call.1} parent=1 // pred_check_branch
      %10 = sbr.rel (0) target = $region5
    $region4: #{tpu_custom_call.1} parent=1 // pred_region
      _
    $region5: #{tpu_custom_call.1} parent=1 // pred_fallthru
      _
    // Predicated region
    $region6: #{tpu_custom_call.1} parent=1 // pred_check
      _
    $region7: #{tpu_custom_call.1} parent=1 // pred_check_branch
      %12 = sbr.rel (0) target = $region9
    $region8: #{tpu_custom_call.1} parent=1 // pred_region
      %s14 = ssub.s32 16384, 16384
      %15 = vsyncadd [#allocation3], %s14
      %s16 = sshll.u32 [#allocation2], 4
      %s17 = int_to_ptr.vmem [resolvable:$true] %s16
      %22 = dma.hbm_to_vmem [thread:$0]  %s1, 16384, %s17, [#allocation3], 128, 128, 8
    $region9: #{tpu_custom_call.1} parent=1 // pred_fallthru
      _
    // Predicated region
    $region10: #{tpu_custom_call.1} parent=1 // pred_check
      _
    $region11: #{tpu_custom_call.1} parent=1 // pred_check_branch
      %24 = sbr.rel (0) target = $region13
    $region12: #{tpu_custom_call.1} parent=1 // pred_region
      %25 = dma.done [#allocation3], 16384
    $region13: #{tpu_custom_call.1} parent=1 // pred_fallthru
      _
    %v26 = vld [vmem:[%s0] sm:$0xff]
    %vm27 = vcmp.ge.s32.totalorder %v26, 0
    %vm28 = vcmp.lt.s32.totalorder %v26, 64
    %vm29 = vmand %vm27, %vm28
    %v30 = vsel %vm29, %v26, 1024
    %v31 = vlaneseq
    %v32 = vand.u32 %v31, 127
    %v33 = vadd.s32 %v32, 128
    %v34 = vadd.s32 %v32, 256
    %v35 = vadd.s32 %v32, 384
    %v36 = vadd.s32 %v32, 512
    %v37 = vadd.s32 %v32, 640
    %v38 = vadd.s32 %v32, 768
    %v39 = vadd.s32 %v32, 896
    %40 = vset.pattern.permute.xlu0 0
    %41 = vperm.xlu0 %40, %v30
    %v42 = vpop.permute.xlu0 %41
    %vm43 = vcmp.eq.s32.totalorder %v32, %v42
    %vm44 = vcmp.eq.s32.totalorder %v33, %v42
    %vm45 = vcmp.eq.s32.totalorder %v34, %v42
    %vm46 = vcmp.eq.s32.totalorder %v35, %v42
    %vm47 = vcmp.eq.s32.totalorder %v36, %v42
    %vm48 = vcmp.eq.s32.totalorder %v37, %v42
    %vm49 = vcmp.eq.s32.totalorder %v38, %v42
    %vm50 = vcmp.eq.s32.totalorder %v39, %v42
    %v51 = vadd.s32 %v30, 256
    %52 = vset.pattern.permute.xlu0 1
    %53 = vperm.xlu0 %52, %v51
    %v54 = vpop.permute.xlu0 %53
    %vm55 = vcmp.eq.s32.totalorder %v32, %v54
    %vm56 = vcmp.eq.s32.totalorder %v33, %v54
    %vm57 = vcmp.eq.s32.totalorder %v34, %v54
    %vm58 = vcmp.eq.s32.totalorder %v35, %v54
    %vm59 = vcmp.eq.s32.totalorder %v36, %v54
    %vm60 = vcmp.eq.s32.totalorder %v37, %v54
    %vm61 = vcmp.eq.s32.totalorder %v38, %v54
    %vm62 = vcmp.eq.s32.totalorder %v39, %v54
    %vm63 = vmor %vm43, %vm55
    %vm64 = vmor %vm44, %vm56
    %vm65 = vmor %vm45, %vm57
    %vm66 = vmor %vm46, %vm58
    %vm67 = vmor %vm47, %vm59
    %vm68 = vmor %vm48, %vm60
    %vm69 = vmor %vm49, %vm61
    %vm70 = vmor %vm50, %vm62
    %v71 = vadd.s32 %v30, 512
    %72 = vset.pattern.permute.xlu0 2
    %73 = vperm.xlu0 %72, %v71
    %v74 = vpop.permute.xlu0 %73
    %vm75 = vcmp.eq.s32.totalorder %v32, %v74
    %vm76 = vcmp.eq.s32.totalorder %v33, %v74
    %vm77 = vcmp.eq.s32.totalorder %v34, %v74
    %vm78 = vcmp.eq.s32.totalorder %v35, %v74
    %vm79 = vcmp.eq.s32.totalorder %v36, %v74
    %vm80 = vcmp.eq.s32.totalorder %v37, %v74
    %vm81 = vcmp.eq.s32.totalorder %v38, %v74
    %vm82 = vcmp.eq.s32.totalorder %v39, %v74
    %vm83 = vmor %vm63, %vm75
    %vm84 = vmor %vm64, %vm76
    %vm85 = vmor %vm65, %vm77
    %vm86 = vmor %vm66, %vm78
    %vm87 = vmor %vm67, %vm79
    %vm88 = vmor %vm68, %vm80
    %vm89 = vmor %vm69, %vm81
    %vm90 = vmor %vm70, %vm82
    %v91 = vadd.s32 %v30, 768
    %92 = vset.pattern.permute.xlu0 3
    %93 = vperm.xlu0 %92, %v91
    %v94 = vpop.permute.xlu0 %93
    %vm95 = vcmp.eq.s32.totalorder %v32, %v94
    %vm96 = vcmp.eq.s32.totalorder %v33, %v94
    %vm97 = vcmp.eq.s32.totalorder %v34, %v94
    %vm98 = vcmp.eq.s32.totalorder %v35, %v94
    %vm99 = vcmp.eq.s32.totalorder %v36, %v94
    %vm100 = vcmp.eq.s32.totalorder %v37, %v94
    %vm101 = vcmp.eq.s32.totalorder %v38, %v94
    %vm102 = vcmp.eq.s32.totalorder %v39, %v94
    %vm103 = vmor %vm83, %vm95
    %vm104 = vmor %vm84, %vm96
    %vm105 = vmor %vm85, %vm97
    %vm106 = vmor %vm86, %vm98
    %vm107 = vmor %vm87, %vm99
    %vm108 = vmor %vm88, %vm100
    %vm109 = vmor %vm89, %vm101
    %vm110 = vmor %vm90, %vm102
    %v111 = vsel %vm103, 1, 0
    %v112 = vsel %vm104, 1, 0
    %v113 = vsel %vm105, 1, 0
    %v114 = vsel %vm106, 1, 0
    %v115 = vsel %vm107, 1, 0
    %v116 = vsel %vm108, 1, 0
    %v117 = vsel %vm109, 1, 0
    %v118 = vsel %vm110, 1, 0
    %v119 = vcvt.s32.f32 %v111
    %v120 = vcvt.s32.f32 %v112
    %v121 = vcvt.s32.f32 %v113
    %v122 = vcvt.s32.f32 %v114
    %v123 = vcvt.s32.f32 %v115
    %v124 = vcvt.s32.f32 %v116
    %v125 = vcvt.s32.f32 %v117
    %v126 = vcvt.s32.f32 %v118
    %v127 = vld [vmem:[#allocation2] sm:$0xff]
    %v128 = vld [vmem:[#allocation2 + $0x8] sm:$0xff]
    %v129 = vld [vmem:[#allocation2 + $0x10] sm:$0xff]
    %v130 = vld [vmem:[#allocation2 + $0x18] sm:$0xff]
    %v131 = vld [vmem:[#allocation2 + $0x20] sm:$0xff]
    %v132 = vld [vmem:[#allocation2 + $0x28] sm:$0xff]
    %v133 = vld [vmem:[#allocation2 + $0x30] sm:$0xff]
    %v134 = vld [vmem:[#allocation2 + $0x38] sm:$0xff]
    %v135 = vld [vmem:[#allocation2 + $0x40] sm:$0xff]
    %v136 = vld [vmem:[#allocation2 + $0x48] sm:$0xff]
    %v137 = vld [vmem:[#allocation2 + $0x50] sm:$0xff]
    %v138 = vld [vmem:[#allocation2 + $0x58] sm:$0xff]
    %v139 = vld [vmem:[#allocation2 + $0x60] sm:$0xff]
    %v140 = vld [vmem:[#allocation2 + $0x68] sm:$0xff]
    %v141 = vld [vmem:[#allocation2 + $0x70] sm:$0xff]
    %v142 = vld [vmem:[#allocation2 + $0x78] sm:$0xff]
    %v143 = vld [vmem:[#allocation2 + $0x80] sm:$0xff]
    %v144 = vld [vmem:[#allocation2 + $0x88] sm:$0xff]
    %v145 = vld [vmem:[#allocation2 + $0x90] sm:$0xff]
    %v146 = vld [vmem:[#allocation2 + $0x98] sm:$0xff]
    %v147 = vld [vmem:[#allocation2 + $0xa0] sm:$0xff]
    %v148 = vld [vmem:[#allocation2 + $0xa8] sm:$0xff]
    %v149 = vld [vmem:[#allocation2 + $0xb0] sm:$0xff]
    %v150 = vld [vmem:[#allocation2 + $0xb8] sm:$0xff]
    %v151 = vld [vmem:[#allocation2 + $0xc0] sm:$0xff]
    %v152 = vld [vmem:[#allocation2 + $0xc8] sm:$0xff]
    %v153 = vld [vmem:[#allocation2 + $0xd0] sm:$0xff]
    %v154 = vld [vmem:[#allocation2 + $0xd8] sm:$0xff]
    %v155 = vld [vmem:[#allocation2 + $0xe0] sm:$0xff]
    %v156 = vld [vmem:[#allocation2 + $0xe8] sm:$0xff]
    %v157 = vld [vmem:[#allocation2 + $0xf0] sm:$0xff]
    %v158 = vld [vmem:[#allocation2 + $0xf8] sm:$0xff]
    %v159 = vld [vmem:[#allocation2 + $0x100] sm:$0xff]
    %v160 = vld [vmem:[#allocation2 + $0x108] sm:$0xff]
    %v161 = vld [vmem:[#allocation2 + $0x110] sm:$0xff]
    %v162 = vld [vmem:[#allocation2 + $0x118] sm:$0xff]
    %v163 = vld [vmem:[#allocation2 + $0x120] sm:$0xff]
    %v164 = vld [vmem:[#allocation2 + $0x128] sm:$0xff]
    %v165 = vld [vmem:[#allocation2 + $0x130] sm:$0xff]
    %v166 = vld [vmem:[#allocation2 + $0x138] sm:$0xff]
    %v167 = vld [vmem:[#allocation2 + $0x140] sm:$0xff]
    %v168 = vld [vmem:[#allocation2 + $0x148] sm:$0xff]
    %v169 = vld [vmem:[#allocation2 + $0x150] sm:$0xff]
    %v170 = vld [vmem:[#allocation2 + $0x158] sm:$0xff]
    %v171 = vld [vmem:[#allocation2 + $0x160] sm:$0xff]
    %v172 = vld [vmem:[#allocation2 + $0x168] sm:$0xff]
    %v173 = vld [vmem:[#allocation2 + $0x170] sm:$0xff]
    %v174 = vld [vmem:[#allocation2 + $0x178] sm:$0xff]
    %v175 = vld [vmem:[#allocation2 + $0x180] sm:$0xff]
    %v176 = vld [vmem:[#allocation2 + $0x188] sm:$0xff]
    %v177 = vld [vmem:[#allocation2 + $0x190] sm:$0xff]
    %v178 = vld [vmem:[#allocation2 + $0x198] sm:$0xff]
    %v179 = vld [vmem:[#allocation2 + $0x1a0] sm:$0xff]
    %v180 = vld [vmem:[#allocation2 + $0x1a8] sm:$0xff]
    %v181 = vld [vmem:[#allocation2 + $0x1b0] sm:$0xff]
    %v182 = vld [vmem:[#allocation2 + $0x1b8] sm:$0xff]
    %v183 = vld [vmem:[#allocation2 + $0x1c0] sm:$0xff]
    %v184 = vld [vmem:[#allocation2 + $0x1c8] sm:$0xff]
    %v185 = vld [vmem:[#allocation2 + $0x1d0] sm:$0xff]
    %v186 = vld [vmem:[#allocation2 + $0x1d8] sm:$0xff]
    %v187 = vld [vmem:[#allocation2 + $0x1e0] sm:$0xff]
    %v188 = vld [vmem:[#allocation2 + $0x1e8] sm:$0xff]
    %v189 = vld [vmem:[#allocation2 + $0x1f0] sm:$0xff]
    %v190 = vld [vmem:[#allocation2 + $0x1f8] sm:$0xff]
    %v191 = vld [vmem:[#allocation2 + $0x200] sm:$0xff]
    %v192 = vld [vmem:[#allocation2 + $0x208] sm:$0xff]
    %v193 = vld [vmem:[#allocation2 + $0x210] sm:$0xff]
    %v194 = vld [vmem:[#allocation2 + $0x218] sm:$0xff]
    %v195 = vld [vmem:[#allocation2 + $0x220] sm:$0xff]
    %v196 = vld [vmem:[#allocation2 + $0x228] sm:$0xff]
    %v197 = vld [vmem:[#allocation2 + $0x230] sm:$0xff]
    %v198 = vld [vmem:[#allocation2 + $0x238] sm:$0xff]
    %v199 = vld [vmem:[#allocation2 + $0x240] sm:$0xff]
    %v200 = vld [vmem:[#allocation2 + $0x248] sm:$0xff]
    %v201 = vld [vmem:[#allocation2 + $0x250] sm:$0xff]
    %v202 = vld [vmem:[#allocation2 + $0x258] sm:$0xff]
    %v203 = vld [vmem:[#allocation2 + $0x260] sm:$0xff]
    %v204 = vld [vmem:[#allocation2 + $0x268] sm:$0xff]
    %v205 = vld [vmem:[#allocation2 + $0x270] sm:$0xff]
    %v206 = vld [vmem:[#allocation2 + $0x278] sm:$0xff]
    %v207 = vld [vmem:[#allocation2 + $0x280] sm:$0xff]
    %v208 = vld [vmem:[#allocation2 + $0x288] sm:$0xff]
    %v209 = vld [vmem:[#allocation2 + $0x290] sm:$0xff]
    %v210 = vld [vmem:[#allocation2 + $0x298] sm:$0xff]
    %v211 = vld [vmem:[#allocation2 + $0x2a0] sm:$0xff]
    %v212 = vld [vmem:[#allocation2 + $0x2a8] sm:$0xff]
    %v213 = vld [vmem:[#allocation2 + $0x2b0] sm:$0xff]
    %v214 = vld [vmem:[#allocation2 + $0x2b8] sm:$0xff]
    %v215 = vld [vmem:[#allocation2 + $0x2c0] sm:$0xff]
    %v216 = vld [vmem:[#allocation2 + $0x2c8] sm:$0xff]
    %v217 = vld [vmem:[#allocation2 + $0x2d0] sm:$0xff]
    %v218 = vld [vmem:[#allocation2 + $0x2d8] sm:$0xff]
    %v219 = vld [vmem:[#allocation2 + $0x2e0] sm:$0xff]
    %v220 = vld [vmem:[#allocation2 + $0x2e8] sm:$0xff]
    %v221 = vld [vmem:[#allocation2 + $0x2f0] sm:$0xff]
    %v222 = vld [vmem:[#allocation2 + $0x2f8] sm:$0xff]
    %v223 = vld [vmem:[#allocation2 + $0x300] sm:$0xff]
    %v224 = vld [vmem:[#allocation2 + $0x308] sm:$0xff]
    %v225 = vld [vmem:[#allocation2 + $0x310] sm:$0xff]
    %v226 = vld [vmem:[#allocation2 + $0x318] sm:$0xff]
    %v227 = vld [vmem:[#allocation2 + $0x320] sm:$0xff]
    %v228 = vld [vmem:[#allocation2 + $0x328] sm:$0xff]
    %v229 = vld [vmem:[#allocation2 + $0x330] sm:$0xff]
    %v230 = vld [vmem:[#allocation2 + $0x338] sm:$0xff]
    %v231 = vld [vmem:[#allocation2 + $0x340] sm:$0xff]
    %v232 = vld [vmem:[#allocation2 + $0x348] sm:$0xff]
    %v233 = vld [vmem:[#allocation2 + $0x350] sm:$0xff]
    %v234 = vld [vmem:[#allocation2 + $0x358] sm:$0xff]
    %v235 = vld [vmem:[#allocation2 + $0x360] sm:$0xff]
    %v236 = vld [vmem:[#allocation2 + $0x368] sm:$0xff]
    %v237 = vld [vmem:[#allocation2 + $0x370] sm:$0xff]
    %v238 = vld [vmem:[#allocation2 + $0x378] sm:$0xff]
    %v239 = vld [vmem:[#allocation2 + $0x380] sm:$0xff]
    %v240 = vld [vmem:[#allocation2 + $0x388] sm:$0xff]
    %v241 = vld [vmem:[#allocation2 + $0x390] sm:$0xff]
    %v242 = vld [vmem:[#allocation2 + $0x398] sm:$0xff]
    %v243 = vld [vmem:[#allocation2 + $0x3a0] sm:$0xff]
    %v244 = vld [vmem:[#allocation2 + $0x3a8] sm:$0xff]
    %v245 = vld [vmem:[#allocation2 + $0x3b0] sm:$0xff]
    %v246 = vld [vmem:[#allocation2 + $0x3b8] sm:$0xff]
    %v247 = vld [vmem:[#allocation2 + $0x3c0] sm:$0xff]
    %v248 = vld [vmem:[#allocation2 + $0x3c8] sm:$0xff]
    %v249 = vld [vmem:[#allocation2 + $0x3d0] sm:$0xff]
    %v250 = vld [vmem:[#allocation2 + $0x3d8] sm:$0xff]
    %v251 = vld [vmem:[#allocation2 + $0x3e0] sm:$0xff]
    %v252 = vld [vmem:[#allocation2 + $0x3e8] sm:$0xff]
    %v253 = vld [vmem:[#allocation2 + $0x3f0] sm:$0xff]
    %v254 = vld [vmem:[#allocation2 + $0x3f8] sm:$0xff]
    %255 = vmatprep.subr.mxu0 0.0
    %v256 = vand.u32 %v127, 4294901760
    %257 = vmatpush1.msra.mxu0 %v256
    %258 = vmatprep.subr.mxu0 0.0
    %v259 = vand.u32 %v128, 4294901760
    %260 = vmatpush1.msra.mxu0 %v259
    %261 = vmatprep.subr.mxu0 0.0
    %v262 = vand.u32 %v129, 4294901760
    %263 = vmatpush1.msra.mxu0 %v262
    %264 = vmatprep.subr.mxu0 0.0
    %v265 = vand.u32 %v130, 4294901760
    %266 = vmatpush1.msra.mxu0 %v265
    %267 = vmatprep.subr.mxu0 0.0
    %v268 = vand.u32 %v131, 4294901760
    %269 = vmatpush1.msra.mxu0 %v268
    %270 = vmatprep.subr.mxu0 0.0
    %v271 = vand.u32 %v132, 4294901760
    %272 = vmatpush1.msra.mxu0 %v271
    %273 = vmatprep.subr.mxu0 0.0
    %v274 = vand.u32 %v133, 4294901760
    %275 = vmatpush1.msra.mxu0 %v274
    %276 = vmatprep.subr.mxu0 0.0
    %v277 = vand.u32 %v134, 4294901760
    %278 = vmatpush1.msra.mxu0 %v277
    %279 = vmatprep.subr.mxu0 0.0
    %v280 = vand.u32 %v135, 4294901760
    %281 = vmatpush1.msra.mxu0 %v280
    %282 = vmatprep.subr.mxu0 0.0
    %v283 = vand.u32 %v136, 4294901760
    %284 = vmatpush1.msra.mxu0 %v283
    %285 = vmatprep.subr.mxu0 0.0
    %v286 = vand.u32 %v137, 4294901760
    %287 = vmatpush1.msra.mxu0 %v286
    %288 = vmatprep.subr.mxu0 0.0
    %v289 = vand.u32 %v138, 4294901760
    %290 = vmatpush1.msra.mxu0 %v289
    %291 = vmatprep.subr.mxu0 0.0
    %v292 = vand.u32 %v139, 4294901760
    %293 = vmatpush1.msra.mxu0 %v292
    %294 = vmatprep.subr.mxu0 0.0
    %v295 = vand.u32 %v140, 4294901760
    %296 = vmatpush1.msra.mxu0 %v295
    %297 = vmatprep.subr.mxu0 0.0
    %v298 = vand.u32 %v141, 4294901760
    %299 = vmatpush1.msra.mxu0 %v298
    %300 = vmatprep.subr.mxu0 0.0
    %v301 = vand.u32 %v142, 4294901760
    %302 = vmatpush1.msra.mxu0 %v301
    %303 = vmatprep.subr.mxu0 0.0
    %v304 = vand.u32 %v143, 4294901760
    %305 = vmatpush1.msra.mxu0 %v304
    %306 = vmatprep.subr.mxu0 0.0
    %v307 = vand.u32 %v144, 4294901760
    %308 = vmatpush1.msra.mxu0 %v307
    %309 = vmatprep.subr.mxu0 0.0
    %v310 = vand.u32 %v145, 4294901760
    %311 = vmatpush1.msra.mxu0 %v310
    %312 = vmatprep.subr.mxu0 0.0
    %v313 = vand.u32 %v146, 4294901760
    %314 = vmatpush1.msra.mxu0 %v313
    %315 = vmatprep.subr.mxu0 0.0
    %v316 = vand.u32 %v147, 4294901760
    %317 = vmatpush1.msra.mxu0 %v316
    %318 = vmatprep.subr.mxu0 0.0
    %v319 = vand.u32 %v148, 4294901760
    %320 = vmatpush1.msra.mxu0 %v319
    %321 = vmatprep.subr.mxu0 0.0
    %v322 = vand.u32 %v149, 4294901760
    %323 = vmatpush1.msra.mxu0 %v322
    %324 = vmatprep.subr.mxu0 0.0
    %v325 = vand.u32 %v150, 4294901760
    %326 = vmatpush1.msra.mxu0 %v325
    %327 = vmatprep.subr.mxu0 0.0
    %v328 = vand.u32 %v151, 4294901760
    %329 = vmatpush1.msra.mxu0 %v328
    %330 = vmatprep.subr.mxu0 0.0
    %v331 = vand.u32 %v152, 4294901760
    %332 = vmatpush1.msra.mxu0 %v331
    %333 = vmatprep.subr.mxu0 0.0
    %v334 = vand.u32 %v153, 4294901760
    %335 = vmatpush1.msra.mxu0 %v334
    %336 = vmatprep.subr.mxu0 0.0
    %v337 = vand.u32 %v154, 4294901760
    %338 = vmatpush1.msra.mxu0 %v337
    %339 = vmatprep.subr.mxu0 0.0
    %v340 = vand.u32 %v155, 4294901760
    %341 = vmatpush1.msra.mxu0 %v340
    %342 = vmatprep.subr.mxu0 0.0
    %v343 = vand.u32 %v156, 4294901760
    %344 = vmatpush1.msra.mxu0 %v343
    %345 = vmatprep.subr.mxu0 0.0
    %v346 = vand.u32 %v157, 4294901760
    %347 = vmatpush1.msra.mxu0 %v346
    %348 = vmatprep.subr.mxu0 0.0
    %v349 = vand.u32 %v158, 4294901760
    %350 = vmatpush1.msra.mxu0 %v349
    %v351 = vand.u32 %v120, 4294901760
    %v352 = vsub.f32 %v120, %v351
    %v353 = vand.u32 %v352, 4294901760
    %v354 = vsub.f32 %v352, %v353
    %v355 = vand.u32 %v354, 4294901760
    %356 = vmatprep.mubr.f32.mxu0 %v355
    %v357 = vand.u32 %v119, 4294901760
    %v358 = vsub.f32 %v119, %v357
    %v359 = vand.u32 %v358, 4294901760
    %v360 = vsub.f32 %v358, %v359
    %v361 = vand.u32 %v360, 4294901760
    %362 = vmatmul.mubr.f32.gmra.mrb[0].mxu0 %v361
    %v363 = vpop.f32.mrb[0].mxu0
    %v364 = vadd.f32 0.0, %v363
    %v365 = vpop.f32.mrb[0].mxu0
    %366 = vdwg.mxu0
    %367 = vmatprep.subr.mxu0 0.0
    %v368 = vand.u32 %v127, 4294901760
    %v369 = vsub.f32 %v127, %v368
    %v370 = vand.u32 %v369, 4294901760
    %v371 = vsub.f32 %v369, %v370
    %v372 = vand.u32 %v371, 4294901760
    %373 = vmatpush1.msra.mxu0 %v372
    %374 = vmatprep.subr.mxu0 0.0
    %v375 = vand.u32 %v128, 4294901760
    %v376 = vsub.f32 %v128, %v375
    %v377 = vand.u32 %v376, 4294901760
    %v378 = vsub.f32 %v376, %v377
    %v379 = vand.u32 %v378, 4294901760
    %380 = vmatpush1.msra.mxu0 %v379
    %381 = vmatprep.subr.mxu0 0.0
    %v382 = vand.u32 %v129, 4294901760
    %v383 = vsub.f32 %v129, %v382
    %v384 = vand.u32 %v383, 4294901760
    %v385 = vsub.f32 %v383, %v384
    %v386 = vand.u32 %v385, 4294901760
    %387 = vmatpush1.msra.mxu0 %v386
    %388 = vmatprep.subr.mxu0 0.0
    %v389 = vand.u32 %v130, 4294901760
    %v390 = vsub.f32 %v130, %v389
    %v391 = vand.u32 %v390, 4294901760
    %v392 = vsub.f32 %v390, %v391
    %v393 = vand.u32 %v392, 4294901760
    %394 = vmatpush1.msra.mxu0 %v393
    %395 = vmatprep.subr.mxu0 0.0
    %v396 = vand.u32 %v131, 4294901760
    %v397 = vsub.f32 %v131, %v396
    %v398 = vand.u32 %v397, 4294901760
    %v399 = vsub.f32 %v397, %v398
    %v400 = vand.u32 %v399, 4294901760
    %401 = vmatpush1.msra.mxu0 %v400
    %402 = vmatprep.subr.mxu0 0.0
    %v403 = vand.u32 %v132, 4294901760
    %v404 = vsub.f32 %v132, %v403
    %v405 = vand.u32 %v404, 4294901760
    %v406 = vsub.f32 %v404, %v405
    %v407 = vand.u32 %v406, 4294901760
    %408 = vmatpush1.msra.mxu0 %v407
    %409 = vmatprep.subr.mxu0 0.0
    %v410 = vand.u32 %v133, 4294901760
    %v411 = vsub.f32 %v133, %v410
    %v412 = vand.u32 %v411, 4294901760
    %v413 = vsub.f32 %v411, %v412
    %v414 = vand.u32 %v413, 4294901760
    %415 = vmatpush1.msra.mxu0 %v414
    %416 = vmatprep.subr.mxu0 0.0
    %v417 = vand.u32 %v134, 4294901760
    %v418 = vsub.f32 %v134, %v417
    %v419 = vand.u32 %v418, 4294901760
    %v420 = vsub.f32 %v418, %v419
    %v421 = vand.u32 %v420, 4294901760
    %422 = vmatpush1.msra.mxu0 %v421
    %423 = vmatprep.subr.mxu0 0.0
    %v424 = vand.u32 %v135, 4294901760
    %v425 = vsub.f32 %v135, %v424
    %v426 = vand.u32 %v425, 4294901760
    %v427 = vsub.f32 %v425, %v426
    %v428 = vand.u32 %v427, 4294901760
    %429 = vmatpush1.msra.mxu0 %v428
    %430 = vmatprep.subr.mxu0 0.0
    %v431 = vand.u32 %v136, 4294901760
    %v432 = vsub.f32 %v136, %v431
    %v433 = vand.u32 %v432, 4294901760
    %v434 = vsub.f32 %v432, %v433
    %v435 = vand.u32 %v434, 4294901760
    %436 = vmatpush1.msra.mxu0 %v435
    %437 = vmatprep.subr.mxu0 0.0
    %v438 = vand.u32 %v137, 4294901760
    %v439 = vsub.f32 %v137, %v438
    %v440 = vand.u32 %v439, 4294901760
    %v441 = vsub.f32 %v439, %v440
    %v442 = vand.u32 %v441, 4294901760
    %443 = vmatpush1.msra.mxu0 %v442
    %444 = vmatprep.subr.mxu0 0.0
    %v445 = vand.u32 %v138, 4294901760
    %v446 = vsub.f32 %v138, %v445
    %v447 = vand.u32 %v446, 4294901760
    %v448 = vsub.f32 %v446, %v447
    %v449 = vand.u32 %v448, 4294901760
    %450 = vmatpush1.msra.mxu0 %v449
    %451 = vmatprep.subr.mxu0 0.0
    %v452 = vand.u32 %v139, 4294901760
    %v453 = vsub.f32 %v139, %v452
    %v454 = vand.u32 %v453, 4294901760
    %v455 = vsub.f32 %v453, %v454
    %v456 = vand.u32 %v455, 4294901760
    %457 = vmatpush1.msra.mxu0 %v456
    %458 = vmatprep.subr.mxu0 0.0
    %v459 = vand.u32 %v140, 4294901760
    %v460 = vsub.f32 %v140, %v459
    %v461 = vand.u32 %v460, 4294901760
    %v462 = vsub.f32 %v460, %v461
    %v463 = vand.u32 %v462, 4294901760
    %464 = vmatpush1.msra.mxu0 %v463
    %465 = vmatprep.subr.mxu0 0.0
    %v466 = vand.u32 %v141, 4294901760
    %v467 = vsub.f32 %v141, %v466
    %v468 = vand.u32 %v467, 4294901760
    %v469 = vsub.f32 %v467, %v468
    %v470 = vand.u32 %v469, 4294901760
    %471 = vmatpush1.msra.mxu0 %v470
    %472 = vmatprep.subr.mxu0 0.0
    %v473 = vand.u32 %v142, 4294901760
    %v474 = vsub.f32 %v142, %v473
    %v475 = vand.u32 %v474, 4294901760
    %v476 = vsub.f32 %v474, %v475
    %v477 = vand.u32 %v476, 4294901760
    %478 = vmatpush1.msra.mxu0 %v477
    %479 = vmatprep.subr.mxu0 0.0
    %v480 = vand.u32 %v143, 4294901760
    %v481 = vsub.f32 %v143, %v480
    %v482 = vand.u32 %v481, 4294901760
    %v483 = vsub.f32 %v481, %v482
    %v484 = vand.u32 %v483, 4294901760
    %485 = vmatpush1.msra.mxu0 %v484
    %486 = vmatprep.subr.mxu0 0.0
    %v487 = vand.u32 %v144, 4294901760
    %v488 = vsub.f32 %v144, %v487
    %v489 = vand.u32 %v488, 4294901760
    %v490 = vsub.f32 %v488, %v489
    %v491 = vand.u32 %v490, 4294901760
    %492 = vmatpush1.msra.mxu0 %v491
    %493 = vmatprep.subr.mxu0 0.0
    %v494 = vand.u32 %v145, 4294901760
    %v495 = vsub.f32 %v145, %v494
    %v496 = vand.u32 %v495, 4294901760
    %v497 = vsub.f32 %v495, %v496
    %v498 = vand.u32 %v497, 4294901760
    %499 = vmatpush1.msra.mxu0 %v498
    %500 = vmatprep.subr.mxu0 0.0
    %v501 = vand.u32 %v146, 4294901760
    %v502 = vsub.f32 %v146, %v501
    %v503 = vand.u32 %v502, 4294901760
    %v504 = vsub.f32 %v502, %v503
    %v505 = vand.u32 %v504, 4294901760
    %506 = vmatpush1.msra.mxu0 %v505
    %507 = vmatprep.subr.mxu0 0.0
    %v508 = vand.u32 %v147, 4294901760
    %v509 = vsub.f32 %v147, %v508
    %v510 = vand.u32 %v509, 4294901760
    %v511 = vsub.f32 %v509, %v510
    %v512 = vand.u32 %v511, 4294901760
    %513 = vmatpush1.msra.mxu0 %v512
    %514 = vmatprep.subr.mxu0 0.0
    %v515 = vand.u32 %v148, 4294901760
    %v516 = vsub.f32 %v148, %v515
    %v517 = vand.u32 %v516, 4294901760
    %v518 = vsub.f32 %v516, %v517
    %v519 = vand.u32 %v518, 4294901760
    %520 = vmatpush1.msra.mxu0 %v519
    %521 = vmatprep.subr.mxu0 0.0
    %v522 = vand.u32 %v149, 4294901760
    %v523 = vsub.f32 %v149, %v522
    %v524 = vand.u32 %v523, 4294901760
    %v525 = vsub.f32 %v523, %v524
    %v526 = vand.u32 %v525, 4294901760
    %527 = vmatpush1.msra.mxu0 %v526
    %528 = vmatprep.subr.mxu0 0.0
    %v529 = vand.u32 %v150, 4294901760
    %v530 = vsub.f32 %v150, %v529
    %v531 = vand.u32 %v530, 4294901760
    %v532 = vsub.f32 %v530, %v531
    %v533 = vand.u32 %v532, 4294901760
    %534 = vmatpush1.msra.mxu0 %v533
    %535 = vmatprep.subr.mxu0 0.0
    %v536 = vand.u32 %v151, 4294901760
    %v537 = vsub.f32 %v151, %v536
    %v538 = vand.u32 %v537, 4294901760
    %v539 = vsub.f32 %v537, %v538
    %v540 = vand.u32 %v539, 4294901760
    %541 = vmatpush1.msra.mxu0 %v540
    %542 = vmatprep.subr.mxu0 0.0
    %v543 = vand.u32 %v152, 4294901760
    %v544 = vsub.f32 %v152, %v543
    %v545 = vand.u32 %v544, 4294901760
    %v546 = vsub.f32 %v544, %v545
    %v547 = vand.u32 %v546, 4294901760
    %548 = vmatpush1.msra.mxu0 %v547
    %549 = vmatprep.subr.mxu0 0.0
    %v550 = vand.u32 %v153, 4294901760
    %v551 = vsub.f32 %v153, %v550
    %v552 = vand.u32 %v551, 4294901760
    %v553 = vsub.f32 %v551, %v552
    %v554 = vand.u32 %v553, 4294901760
    %555 = vmatpush1.msra.mxu0 %v554
    %556 = vmatprep.subr.mxu0 0.0
    %v557 = vand.u32 %v154, 4294901760
    %v558 = vsub.f32 %v154, %v557
    %v559 = vand.u32 %v558, 4294901760
    %v560 = vsub.f32 %v558, %v559
    %v561 = vand.u32 %v560, 4294901760
    %562 = vmatpush1.msra.mxu0 %v561
    %563 = vmatprep.subr.mxu0 0.0
    %v564 = vand.u32 %v155, 4294901760
    %v565 = vsub.f32 %v155, %v564
    %v566 = vand.u32 %v565, 4294901760
    %v567 = vsub.f32 %v565, %v566
    %v568 = vand.u32 %v567, 4294901760
    %569 = vmatpush1.msra.mxu0 %v568
    %570 = vmatprep.subr.mxu0 0.0
    %v571 = vand.u32 %v156, 4294901760
    %v572 = vsub.f32 %v156, %v571
    %v573 = vand.u32 %v572, 4294901760
    %v574 = vsub.f32 %v572, %v573
    %v575 = vand.u32 %v574, 4294901760
    %576 = vmatpush1.msra.mxu0 %v575
    %577 = vmatprep.subr.mxu0 0.0
    %v578 = vand.u32 %v157, 4294901760
    %v579 = vsub.f32 %v157, %v578
    %v580 = vand.u32 %v579, 4294901760
    %v581 = vsub.f32 %v579, %v580
    %v582 = vand.u32 %v581, 4294901760
    %583 = vmatpush1.msra.mxu0 %v582
    %584 = vmatprep.subr.mxu0 0.0
    %v585 = vand.u32 %v158, 4294901760
    %v586 = vsub.f32 %v158, %v585
    %v587 = vand.u32 %v586, 4294901760
    %v588 = vsub.f32 %v586, %v587
    %v589 = vand.u32 %v588, 4294901760
    %590 = vmatpush1.msra.mxu0 %v589
    %v591 = vand.u32 %v120, 4294901760
    %592 = vmatprep.mubr.f32.mxu0 %v591
    %v593 = vand.u32 %v119, 4294901760
    %594 = vmatmul.mubr.f32.gmra.mrb[0].mxu0 %v593
    %v595 = vpop.f32.mrb[0].mxu0
    %v596 = vadd.f32 %v364, %v595
    %v597 = vpop.f32.mrb[0].mxu0
    %598 = vdwg.mxu0
    %599 = vmatprep.subr.mxu0 0.0
    %v600 = vand.u32 %v127, 4294901760
    %v601 = vsub.f32 %v127, %v600
    %602 = vmatpush1.msra.mxu0 %v601
    %603 = vmatprep.subr.mxu0 0.0
    %v604 = vand.u32 %v128, 4294901760
    %v605 = vsub.f32 %v128, %v604
    %606 = vmatpush1.msra.mxu0 %v605
    %607 = vmatprep.subr.mxu0 0.0
    %v608 = vand.u32 %v129, 4294901760
    %v609 = vsub.f32 %v129, %v608
    %610 = vmatpush1.msra.mxu0 %v609
    %611 = vmatprep.subr.mxu0 0.0
    %v612 = vand.u32 %v130, 4294901760
    %v613 = vsub.f32 %v130, %v612
    %614 = vmatpush1.msra.mxu0 %v613
    %615 = vmatprep.subr.mxu0 0.0
    %v616 = vand.u32 %v131, 4294901760
    %v617 = vsub.f32 %v131, %v616
    %618 = vmatpush1.msra.mxu0 %v617
    %619 = vmatprep.subr.mxu0 0.0
    %v620 = vand.u32 %v132, 4294901760
    %v621 = vsub.f32 %v132, %v620
    %622 = vmatpush1.msra.mxu0 %v621
    %623 = vmatprep.subr.mxu0 0.0
    %v624 = vand.u32 %v133, 4294901760
    %v625 = vsub.f32 %v133, %v624
    %626 = vmatpush1.msra.mxu0 %v625
    %627 = vmatprep.subr.mxu0 0.0
    %v628 = vand.u32 %v134, 4294901760
    %v629 = vsub.f32 %v134, %v628
    %630 = vmatpush1.msra.mxu0 %v629
    %631 = vmatprep.subr.mxu0 0.0
    %v632 = vand.u32 %v135, 4294901760
    %v633 = vsub.f32 %v135, %v632
    %634 = vmatpush1.msra.mxu0 %v633
    %635 = vmatprep.subr.mxu0 0.0
    %v636 = vand.u32 %v136, 4294901760
    %v637 = vsub.f32 %v136, %v636
    %638 = vmatpush1.msra.mxu0 %v637
    %639 = vmatprep.subr.mxu0 0.0
    %v640 = vand.u32 %v137, 4294901760
    %v641 = vsub.f32 %v137, %v640
    %642 = vmatpush1.msra.mxu0 %v641
    %643 = vmatprep.subr.mxu0 0.0
    %v644 = vand.u32 %v138, 4294901760
    %v645 = vsub.f32 %v138, %v644
    %646 = vmatpush1.msra.mxu0 %v645
    %647 = vmatprep.subr.mxu0 0.0
    %v648 = vand.u32 %v139, 4294901760
    %v649 = vsub.f32 %v139, %v648
    %650 = vmatpush1.msra.mxu0 %v649
    %651 = vmatprep.subr.mxu0 0.0
    %v652 = vand.u32 %v140, 4294901760
    %v653 = vsub.f32 %v140, %v652
    %654 = vmatpush1.msra.mxu0 %v653
    %655 = vmatprep.subr.mxu0 0.0
    %v656 = vand.u32 %v141, 4294901760
    %v657 = vsub.f32 %v141, %v656
    %658 = vmatpush1.msra.mxu0 %v657
    %659 = vmatprep.subr.mxu0 0.0
    %v660 = vand.u32 %v142, 4294901760
    %v661 = vsub.f32 %v142, %v660
    %662 = vmatpush1.msra.mxu0 %v661
    %663 = vmatprep.subr.mxu0 0.0
    %v664 = vand.u32 %v143, 4294901760
    %v665 = vsub.f32 %v143, %v664
    %666 = vmatpush1.msra.mxu0 %v665
    %667 = vmatprep.subr.mxu0 0.0
    %v668 = vand.u32 %v144, 4294901760
    %v669 = vsub.f32 %v144, %v668
    %670 = vmatpush1.msra.mxu0 %v669
    %671 = vmatprep.subr.mxu0 0.0
    %v672 = vand.u32 %v145, 4294901760
    %v673 = vsub.f32 %v145, %v672
    %674 = vmatpush1.msra.mxu0 %v673
    %675 = vmatprep.subr.mxu0 0.0
    %v676 = vand.u32 %v146, 4294901760
    %v677 = vsub.f32 %v146, %v676
    %678 = vmatpush1.msra.mxu0 %v677
    %679 = vmatprep.subr.mxu0 0.0
    %v680 = vand.u32 %v147, 4294901760
    %v681 = vsub.f32 %v147, %v680
    %682 = vmatpush1.msra.mxu0 %v681
    %683 = vmatprep.subr.mxu0 0.0
    %v684 = vand.u32 %v148, 4294901760
    %v685 = vsub.f32 %v148, %v684
    %686 = vmatpush1.msra.mxu0 %v685
    %687 = vmatprep.subr.mxu0 0.0
    %v688 = vand.u32 %v149, 4294901760
    %v689 = vsub.f32 %v149, %v688
    %690 = vmatpush1.msra.mxu0 %v689
    %691 = vmatprep.subr.mxu0 0.0
    %v692 = vand.u32 %v150, 4294901760
    %v693 = vsub.f32 %v150, %v692
    %694 = vmatpush1.msra.mxu0 %v693
    %695 = vmatprep.subr.mxu0 0.0
    %v696 = vand.u32 %v151, 4294901760
    %v697 = vsub.f32 %v151, %v696
    %698 = vmatpush1.msra.mxu0 %v697
    %699 = vmatprep.subr.mxu0 0.0
    %v700 = vand.u32 %v152, 4294901760
    %v701 = vsub.f32 %v152, %v700
    %702 = vmatpush1.msra.mxu0 %v701
    %703 = vmatprep.subr.mxu0 0.0
    %v704 = vand.u32 %v153, 4294901760
    %v705 = vsub.f32 %v153, %v704
    %706 = vmatpush1.msra.mxu0 %v705
    %707 = vmatprep.subr.mxu0 0.0
    %v708 = vand.u32 %v154, 4294901760
    %v709 = vsub.f32 %v154, %v708
    %710 = vmatpush1.msra.mxu0 %v709
    %711 = vmatprep.subr.mxu0 0.0
    %v712 = vand.u32 %v155, 4294901760
    %v713 = vsub.f32 %v155, %v712
    %714 = vmatpush1.msra.mxu0 %v713
    %715 = vmatprep.subr.mxu0 0.0
    %v716 = vand.u32 %v156, 4294901760
    %v717 = vsub.f32 %v156, %v716
    %718 = vmatpush1.msra.mxu0 %v717
    %719 = vmatprep.subr.mxu0 0.0
    %v720 = vand.u32 %v157, 4294901760
    %v721 = vsub.f32 %v157, %v720
    %722 = vmatpush1.msra.mxu0 %v721
    %723 = vmatprep.subr.mxu0 0.0
    %v724 = vand.u32 %v158, 4294901760
    %v725 = vsub.f32 %v158, %v724
    %726 = vmatpush1.msra.mxu0 %v725
    %v727 = vand.u32 %v120, 4294901760
    %v728 = vsub.f32 %v120, %v727
    %729 = vmatprep.mubr.f32.mxu0 %v728
    %v730 = vand.u32 %v119, 4294901760
    %v731 = vsub.f32 %v119, %v730
    %732 = vmatmul.mubr.f32.gmra.mrb[0].mxu0 %v731
    %v733 = vpop.f32.mrb[0].mxu0
    %v734 = vadd.f32 %v596, %v733
    %v735 = vpop.f32.mrb[0].mxu0
    %736 = vdwg.mxu0
    %737 = vmatprep.subr.mxu0 0.0
    %v738 = vand.u32 %v127, 4294901760
    %739 = vmatpush1.msra.mxu0 %v738
    %740 = vmatprep.subr.mxu0 0.0
    %v741 = vand.u32 %v128, 4294901760
    %742 = vmatpush1.msra.mxu0 %v741
    %743 = vmatprep.subr.mxu0 0.0
    %v744 = vand.u32 %v129, 4294901760
    %745 = vmatpush1.msra.mxu0 %v744
    %746 = vmatprep.subr.mxu0 0.0
    %v747 = vand.u32 %v130, 4294901760
    %748 = vmatpush1.msra.mxu0 %v747
    %749 = vmatprep.subr.mxu0 0.0
    %v750 = vand.u32 %v131, 4294901760
    %751 = vmatpush1.msra.mxu0 %v750
    %752 = vmatprep.subr.mxu0 0.0
    %v753 = vand.u32 %v132, 4294901760
    %754 = vmatpush1.msra.mxu0 %v753
    %755 = vmatprep.subr.mxu0 0.0
    %v756 = vand.u32 %v133, 4294901760
    %757 = vmatpush1.msra.mxu0 %v756
    %758 = vmatprep.subr.mxu0 0.0
    %v759 = vand.u32 %v134, 4294901760
    %760 = vmatpush1.msra.mxu0 %v759
    %761 = vmatprep.subr.mxu0 0.0
    %v762 = vand.u32 %v135, 4294901760
    %763 = vmatpush1.msra.mxu0 %v762
    %764 = vmatprep.subr.mxu0 0.0
    %v765 = vand.u32 %v136, 4294901760
    %766 = vmatpush1.msra.mxu0 %v765
    %767 = vmatprep.subr.mxu0 0.0
    %v768 = vand.u32 %v137, 4294901760
    %769 = vmatpush1.msra.mxu0 %v768
    %770 = vmatprep.subr.mxu0 0.0
    %v771 = vand.u32 %v138, 4294901760
    %772 = vmatpush1.msra.mxu0 %v771
    %773 = vmatprep.subr.mxu0 0.0
    %v774 = vand.u32 %v139, 4294901760
    %775 = vmatpush1.msra.mxu0 %v774
    %776 = vmatprep.subr.mxu0 0.0
    %v777 = vand.u32 %v140, 4294901760
    %778 = vmatpush1.msra.mxu0 %v777
    %779 = vmatprep.subr.mxu0 0.0
    %v780 = vand.u32 %v141, 4294901760
    %781 = vmatpush1.msra.mxu0 %v780
    %782 = vmatprep.subr.mxu0 0.0
    %v783 = vand.u32 %v142, 4294901760
    %784 = vmatpush1.msra.mxu0 %v783
    %785 = vmatprep.subr.mxu0 0.0
    %v786 = vand.u32 %v143, 4294901760
    %787 = vmatpush1.msra.mxu0 %v786
    %788 = vmatprep.subr.mxu0 0.0
    %v789 = vand.u32 %v144, 4294901760
    %790 = vmatpush1.msra.mxu0 %v789
    %791 = vmatprep.subr.mxu0 0.0
    %v792 = vand.u32 %v145, 4294901760
    %793 = vmatpush1.msra.mxu0 %v792
    %794 = vmatprep.subr.mxu0 0.0
    %v795 = vand.u32 %v146, 4294901760
    %796 = vmatpush1.msra.mxu0 %v795
    %797 = vmatprep.subr.mxu0 0.0
    %v798 = vand.u32 %v147, 4294901760
    %799 = vmatpush1.msra.mxu0 %v798
    %800 = vmatprep.subr.mxu0 0.0
    %v801 = vand.u32 %v148, 4294901760
    %802 = vmatpush1.msra.mxu0 %v801
    %803 = vmatprep.subr.mxu0 0.0
    %v804 = vand.u32 %v149, 4294901760
    %805 = vmatpush1.msra.mxu0 %v804
    %806 = vmatprep.subr.mxu0 0.0
    %v807 = vand.u32 %v150, 4294901760
    %808 = vmatpush1.msra.mxu0 %v807
    %809 = vmatprep.subr.mxu0 0.0
    %v810 = vand.u32 %v151, 4294901760
    %811 = vmatpush1.msra.mxu0 %v810
    %812 = vmatprep.subr.mxu0 0.0
    %v813 = vand.u32 %v152, 4294901760
    %814 = vmatpush1.msra.mxu0 %v813
    %815 = vmatprep.subr.mxu0 0.0
    %v816 = vand.u32 %v153, 4294901760
    %817 = vmatpush1.msra.mxu0 %v816
    %818 = vmatprep.subr.mxu0 0.0
    %v819 = vand.u32 %v154, 4294901760
    %820 = vmatpush1.msra.mxu0 %v819
    %821 = vmatprep.subr.mxu0 0.0
    %v822 = vand.u32 %v155, 4294901760
    %823 = vmatpush1.msra.mxu0 %v822
    %824 = vmatprep.subr.mxu0 0.0
    %v825 = vand.u32 %v156, 4294901760
    %826 = vmatpush1.msra.mxu0 %v825
    %827 = vmatprep.subr.mxu0 0.0
    %v828 = vand.u32 %v157, 4294901760
    %829 = vmatpush1.msra.mxu0 %v828
    %830 = vmatprep.subr.mxu0 0.0
    %v831 = vand.u32 %v158, 4294901760
    %832 = vmatpush1.msra.mxu0 %v831
    %v833 = vand.u32 %v120, 4294901760
    %v834 = vsub.f32 %v120, %v833
    %v835 = vand.u32 %v834, 4294901760
    %836 = vmatprep.mubr.f32.mxu0 %v835
    %v837 = vand.u32 %v119, 4294901760
    %v838 = vsub.f32 %v119, %v837
    %v839 = vand.u32 %v838, 4294901760
    %840 = vmatmul.mubr.f32.gmra.mrb[0].mxu0 %v839
    %v841 = vpop.f32.mrb[0].mxu0
    %v842 = vadd.f32 %v734, %v841
    %v843 = vpop.f32.mrb[0].mxu0
    %844 = vdwg.mxu0
    %845 = vmatprep.subr.mxu0 0.0
    %v846 = vand.u32 %v127, 4294901760
    %v847 = vsub.f32 %v127, %v846
    %v848 = vand.u32 %v847, 4294901760
    %849 = vmatpush1.msra.mxu0 %v848
    %850 = vmatprep.subr.mxu0 0.0
    %v851 = vand.u32 %v128, 4294901760
    %v852 = vsub.f32 %v128, %v851
    %v853 = vand.u32 %v852, 4294901760
    %854 = vmatpush1.msra.mxu0 %v853
    %855 = vmatprep.subr.mxu0 0.0
    %v856 = vand.u32 %v129, 4294901760
    %v857 = vsub.f32 %v129, %v856
    %v858 = vand.u32 %v857, 4294901760
    %859 = vmatpush1.msra.mxu0 %v858
    %860 = vmatprep.subr.mxu0 0.0
    %v861 = vand.u32 %v130, 4294901760
    %v862 = vsub.f32 %v130, %v861
    %v863 = vand.u32 %v862, 4294901760
    %864 = vmatpush1.msra.mxu0 %v863
    %865 = vmatprep.subr.mxu0 0.0
    %v866 = vand.u32 %v131, 4294901760
    %v867 = vsub.f32 %v131, %v866
    %v868 = vand.u32 %v867, 4294901760
    %869 = vmatpush1.msra.mxu0 %v868
    %870 = vmatprep.subr.mxu0 0.0
    %v871 = vand.u32 %v132, 4294901760
    %v872 = vsub.f32 %v132, %v871
    %v873 = vand.u32 %v872, 4294901760
    %874 = vmatpush1.msra.mxu0 %v873
    %875 = vmatprep.subr.mxu0 0.0
    %v876 = vand.u32 %v133, 4294901760
    %v877 = vsub.f32 %v133, %v876
    %v878 = vand.u32 %v877, 4294901760
    %879 = vmatpush1.msra.mxu0 %v878
    %880 = vmatprep.subr.mxu0 0.0
    %v881 = vand.u32 %v134, 4294901760
    %v882 = vsub.f32 %v134, %v881
    %v883 = vand.u32 %v882, 4294901760
    %884 = vmatpush1.msra.mxu0 %v883
    %885 = vmatprep.subr.mxu0 0.0
    %v886 = vand.u32 %v135, 4294901760
    %v887 = vsub.f32 %v135, %v886
    %v888 = vand.u32 %v887, 4294901760
    %889 = vmatpush1.msra.mxu0 %v888
    %890 = vmatprep.subr.mxu0 0.0
    %v891 = vand.u32 %v136, 4294901760
    %v892 = vsub.f32 %v136, %v891
    %v893 = vand.u32 %v892, 4294901760
    %894 = vmatpush1.msra.mxu0 %v893
    %895 = vmatprep.subr.mxu0 0.0
    %v896 = vand.u32 %v137, 4294901760
    %v897 = vsub.f32 %v137, %v896
    %v898 = vand.u32 %v897, 4294901760
    %899 = vmatpush1.msra.mxu0 %v898
    %900 = vmatprep.subr.mxu0 0.0
    %v901 = vand.u32 %v138, 4294901760
    %v902 = vsub.f32 %v138, %v901
    %v903 = vand.u32 %v902, 4294901760
    %904 = vmatpush1.msra.mxu0 %v903
    %905 = vmatprep.subr.mxu0 0.0
    %v906 = vand.u32 %v139, 4294901760
    %v907 = vsub.f32 %v139, %v906
    %v908 = vand.u32 %v907, 4294901760
    %909 = vmatpush1.msra.mxu0 %v908
    %910 = vmatprep.subr.mxu0 0.0
    %v911 = vand.u32 %v140, 4294901760
    %v912 = vsub.f32 %v140, %v911
    %v913 = vand.u32 %v912, 4294901760
    %914 = vmatpush1.msra.mxu0 %v913
    %915 = vmatprep.subr.mxu0 0.0
    %v916 = vand.u32 %v141, 4294901760
    %v917 = vsub.f32 %v141, %v916
    %v918 = vand.u32 %v917, 4294901760
    %919 = vmatpush1.msra.mxu0 %v918
    %920 = vmatprep.subr.mxu0 0.0
    %v921 = vand.u32 %v142, 4294901760
    %v922 = vsub.f32 %v142, %v921
    %v923 = vand.u32 %v922, 4294901760
    %924 = vmatpush1.msra.mxu0 %v923
    %925 = vmatprep.subr.mxu0 0.0
    %v926 = vand.u32 %v143, 4294901760
    %v927 = vsub.f32 %v143, %v926
    %v928 = vand.u32 %v927, 4294901760
    %929 = vmatpush1.msra.mxu0 %v928
    %930 = vmatprep.subr.mxu0 0.0
    %v931 = vand.u32 %v144, 4294901760
    %v932 = vsub.f32 %v144, %v931
    %v933 = vand.u32 %v932, 4294901760
    %934 = vmatpush1.msra.mxu0 %v933
    %935 = vmatprep.subr.mxu0 0.0
    %v936 = vand.u32 %v145, 4294901760
    %v937 = vsub.f32 %v145, %v936
    %v938 = vand.u32 %v937, 4294901760
    %939 = vmatpush1.msra.mxu0 %v938
    %940 = vmatprep.subr.mxu0 0.0
    %v941 = vand.u32 %v146, 4294901760
    %v942 = vsub.f32 %v146, %v941
    %v943 = vand.u32 %v942, 4294901760
    %944 = vmatpush1.msra.mxu0 %v943
    %945 = vmatprep.subr.mxu0 0.0
    %v946 = vand.u32 %v147, 4294901760
    %v947 = vsub.f32 %v147, %v946
    %v948 = vand.u32 %v947, 4294901760
    %949 = vmatpush1.msra.mxu0 %v948
    %950 = vmatprep.subr.mxu0 0.0
    %v951 = vand.u32 %v148, 4294901760
    %v952 = vsub.f32 %v148, %v951
    %v953 = vand.u32 %v952, 4294901760
    %954 = vmatpush1.msra.mxu0 %v953
    %955 = vmatprep.subr.mxu0 0.0
    %v956 = vand.u32 %v149, 4294901760
    %v957 = vsub.f32 %v149, %v956
    %v958 = vand.u32 %v957, 4294901760
    %959 = vmatpush1.msra.mxu0 %v958
    %960 = vmatprep.subr.mxu0 0.0
    %v961 = vand.u32 %v150, 4294901760
    %v962 = vsub.f32 %v150, %v961
    %v963 = vand.u32 %v962, 4294901760
    %964 = vmatpush1.msra.mxu0 %v963
    %965 = vmatprep.subr.mxu0 0.0
    %v966 = vand.u32 %v151, 4294901760
    %v967 = vsub.f32 %v151, %v966
    %v968 = vand.u32 %v967, 4294901760
    %969 = vmatpush1.msra.mxu0 %v968
    %970 = vmatprep.subr.mxu0 0.0
    %v971 = vand.u32 %v152, 4294901760
    %v972 = vsub.f32 %v152, %v971
    %v973 = vand.u32 %v972, 4294901760
    %974 = vmatpush1.msra.mxu0 %v973
    %975 = vmatprep.subr.mxu0 0.0
    %v976 = vand.u32 %v153, 4294901760
    %v977 = vsub.f32 %v153, %v976
    %v978 = vand.u32 %v977, 4294901760
    %979 = vmatpush1.msra.mxu0 %v978
    %980 = vmatprep.subr.mxu0 0.0
    %v981 = vand.u32 %v154, 4294901760
    %v982 = vsub.f32 %v154, %v981
    %v983 = vand.u32 %v982, 4294901760
    %984 = vmatpush1.msra.mxu0 %v983
    %985 = vmatprep.subr.mxu0 0.0
    %v986 = vand.u32 %v155, 4294901760
    %v987 = vsub.f32 %v155, %v986
    %v988 = vand.u32 %v987, 4294901760
    %989 = vmatpush1.msra.mxu0 %v988
    %990 = vmatprep.subr.mxu0 0.0
    %v991 = vand.u32 %v156, 4294901760
    %v992 = vsub.f32 %v156, %v991
    %v993 = vand.u32 %v992, 4294901760
    %994 = vmatpush1.msra.mxu0 %v993
    %995 = vmatprep.subr.mxu0 0.0
    %v996 = vand.u32 %v157, 4294901760
    %v997 = vsub.f32 %v157, %v996
    %v998 = vand.u32 %v997, 4294901760
    %999 = vmatpush1.msra.mxu0 %v998
    %1000 = vmatprep.subr.mxu0 0.0
    %v1001 = vand.u32 %v158, 4294901760
    %v1002 = vsub.f32 %v158, %v1001
    %v1003 = vand.u32 %v1002, 4294901760
    %1004 = vmatpush1.msra.mxu0 %v1003
    %v1005 = vand.u32 %v120, 4294901760
    %1006 = vmatprep.mubr.f32.mxu0 %v1005
    %v1007 = vand.u32 %v119, 4294901760
    %1008 = vmatmul.mubr.f32.gmra.mrb[0].mxu0 %v1007
    %v1009 = vpop.f32.mrb[0].mxu0
    %v1010 = vadd.f32 %v842, %v1009
    %v1011 = vpop.f32.mrb[0].mxu0
    %1012 = vdwg.mxu0
    %1013 = vmatprep.subr.mxu0 0.0
    %v1014 = vand.u32 %v127, 4294901760
    %1015 = vmatpush1.msra.mxu0 %v1014
    %1016 = vmatprep.subr.mxu0 0.0
    %v1017 = vand.u32 %v128, 4294901760
    %1018 = vmatpush1.msra.mxu0 %v1017
    %1019 = vmatprep.subr.mxu0 0.0
    %v1020 = vand.u32 %v129, 4294901760
    %1021 = vmatpush1.msra.mxu0 %v1020
    %1022 = vmatprep.subr.mxu0 0.0
    %v1023 = vand.u32 %v130, 4294901760
    %1024 = vmatpush1.msra.mxu0 %v1023
    %1025 = vmatprep.subr.mxu0 0.0
    %v1026 = vand.u32 %v131, 4294901760
    %1027 = vmatpush1.msra.mxu0 %v1026
    %1028 = vmatprep.subr.mxu0 0.0
    %v1029 = vand.u32 %v132, 4294901760
    %1030 = vmatpush1.msra.mxu0 %v1029
    %1031 = vmatprep.subr.mxu0 0.0
    %v1032 = vand.u32 %v133, 4294901760
    %1033 = vmatpush1.msra.mxu0 %v1032
    %1034 = vmatprep.subr.mxu0 0.0
    %v1035 = vand.u32 %v134, 4294901760
    %1036 = vmatpush1.msra.mxu0 %v1035
    %1037 = vmatprep.subr.mxu0 0.0
    %v1038 = vand.u32 %v135, 4294901760
    %1039 = vmatpush1.msra.mxu0 %v1038
    %1040 = vmatprep.subr.mxu0 0.0
    %v1041 = vand.u32 %v136, 4294901760
    %1042 = vmatpush1.msra.mxu0 %v1041
    %1043 = vmatprep.subr.mxu0 0.0
    %v1044 = vand.u32 %v137, 4294901760
    %1045 = vmatpush1.msra.mxu0 %v1044
    %1046 = vmatprep.subr.mxu0 0.0
    %v1047 = vand.u32 %v138, 4294901760
    %1048 = vmatpush1.msra.mxu0 %v1047
    %1049 = vmatprep.subr.mxu0 0.0
    %v1050 = vand.u32 %v139, 4294901760
    %1051 = vmatpush1.msra.mxu0 %v1050
    %1052 = vmatprep.subr.mxu0 0.0
    %v1053 = vand.u32 %v140, 4294901760
    %1054 = vmatpush1.msra.mxu0 %v1053
    %1055 = vmatprep.subr.mxu0 0.0
    %v1056 = vand.u32 %v141, 4294901760
    %1057 = vmatpush1.msra.mxu0 %v1056
    %1058 = vmatprep.subr.mxu0 0.0
    %v1059 = vand.u32 %v142, 4294901760
    %1060 = vmatpush1.msra.mxu0 %v1059
    %1061 = vmatprep.subr.mxu0 0.0
    %v1062 = vand.u32 %v143, 4294901760
    %1063 = vmatpush1.msra.mxu0 %v1062
    %1064 = vmatprep.subr.mxu0 0.0
    %v1065 = vand.u32 %v144, 4294901760
    %1066 = vmatpush1.msra.mxu0 %v1065
    %1067 = vmatprep.subr.mxu0 0.0
    %v1068 = vand.u32 %v145, 4294901760
    %1069 = vmatpush1.msra.mxu0 %v1068
    %1070 = vmatprep.subr.mxu0 0.0
    %v1071 = vand.u32 %v146, 4294901760
    %1072 = vmatpush1.msra.mxu0 %v1071
    %1073 = vmatprep.subr.mxu0 0.0
    %v1074 = vand.u32 %v147, 4294901760
    %1075 = vmatpush1.msra.mxu0 %v1074
    %1076 = vmatprep.subr.mxu0 0.0
    %v1077 = vand.u32 %v148, 4294901760
    %1078 = vmatpush1.msra.mxu0 %v1077
    %1079 = vmatprep.subr.mxu0 0.0
    %v1080 = vand.u32 %v149, 4294901760
    %1081 = vmatpush1.msra.mxu0 %v1080
    %1082 = vmatprep.subr.mxu0 0.0
    %v1083 = vand.u32 %v150, 4294901760
    %1084 = vmatpush1.msra.mxu0 %v1083
    %1085 = vmatprep.subr.mxu0 0.0
    %v1086 = vand.u32 %v151, 4294901760
    %1087 = vmatpush1.msra.mxu0 %v1086
    %1088 = vmatprep.subr.mxu0 0.0
    %v1089 = vand.u32 %v152, 4294901760
    %1090 = vmatpush1.msra.mxu0 %v1089
    %1091 = vmatprep.subr.mxu0 0.0
    %v1092 = vand.u32 %v153, 4294901760
    %1093 = vmatpush1.msra.mxu0 %v1092
    %1094 = vmatprep.subr.mxu0 0.0
    %v1095 = vand.u32 %v154, 4294901760
    %1096 = vmatpush1.msra.mxu0 %v1095
    %1097 = vmatprep.subr.mxu0 0.0
    %v1098 = vand.u32 %v155, 4294901760
    %1099 = vmatpush1.msra.mxu0 %v1098
    %1100 = vmatprep.subr.mxu0 0.0
    %v1101 = vand.u32 %v156, 4294901760
    %1102 = vmatpush1.msra.mxu0 %v1101
    %1103 = vmatprep.subr.mxu0 0.0
    %v1104 = vand.u32 %v157, 4294901760
    %1105 = vmatpush1.msra.mxu0 %v1104
    %1106 = vmatprep.subr.mxu0 0.0
    %v1107 = vand.u32 %v158, 4294901760
    %1108 = vmatpush1.msra.mxu0 %v1107
    %v1109 = vand.u32 %v120, 4294901760
    %1110 = vmatprep.mubr.f32.mxu0 %v1109
    %v1111 = vand.u32 %v119, 4294901760
    %1112 = vmatmul.mubr.f32.gmra.mrb[0].mxu0 %v1111
    %v1113 = vpop.f32.mrb[0].mxu0
    %v1114 = vadd.f32 %v1010, %v1113
    %v1115 = vpop.f32.mrb[0].mxu0
    %1116 = vdwg.mxu0
    %1117 = vmatprep.subr.mxu0 0.0
    %v1118 = vand.u32 %v159, 4294901760
    %1119 = vmatpush1.msra.mxu0 %v1118
    %1120 = vmatprep.subr.mxu0 0.0
    %v1121 = vand.u32 %v160, 4294901760
    %1122 = vmatpush1.msra.mxu0 %v1121
    %1123 = vmatprep.subr.mxu0 0.0
    %v1124 = vand.u32 %v161, 4294901760
    %1125 = vmatpush1.msra.mxu0 %v1124
    %1126 = vmatprep.subr.mxu0 0.0
    %v1127 = vand.u32 %v162, 4294901760
    %1128 = vmatpush1.msra.mxu0 %v1127
    %1129 = vmatprep.subr.mxu0 0.0
    %v1130 = vand.u32 %v163, 4294901760
    %1131 = vmatpush1.msra.mxu0 %v1130
    %1132 = vmatprep.subr.mxu0 0.0
    %v1133 = vand.u32 %v164, 4294901760
    %1134 = vmatpush1.msra.mxu0 %v1133
    %1135 = vmatprep.subr.mxu0 0.0
    %v1136 = vand.u32 %v165, 4294901760
    %1137 = vmatpush1.msra.mxu0 %v1136
    %1138 = vmatprep.subr.mxu0 0.0
    %v1139 = vand.u32 %v166, 4294901760
    %1140 = vmatpush1.msra.mxu0 %v1139
    %1141 = vmatprep.subr.mxu0 0.0
    %v1142 = vand.u32 %v167, 4294901760
    %1143 = vmatpush1.msra.mxu0 %v1142
    %1144 = vmatprep.subr.mxu0 0.0
    %v1145 = vand.u32 %v168, 4294901760
    %1146 = vmatpush1.msra.mxu0 %v1145
    %1147 = vmatprep.subr.mxu0 0.0
    %v1148 = vand.u32 %v169, 4294901760
    %1149 = vmatpush1.msra.mxu0 %v1148
    %1150 = vmatprep.subr.mxu0 0.0
    %v1151 = vand.u32 %v170, 4294901760
    %1152 = vmatpush1.msra.mxu0 %v1151
    %1153 = vmatprep.subr.mxu0 0.0
    %v1154 = vand.u32 %v171, 4294901760
    %1155 = vmatpush1.msra.mxu0 %v1154
    %1156 = vmatprep.subr.mxu0 0.0
    %v1157 = vand.u32 %v172, 4294901760
    %1158 = vmatpush1.msra.mxu0 %v1157
    %1159 = vmatprep.subr.mxu0 0.0
    %v1160 = vand.u32 %v173, 4294901760
    %1161 = vmatpush1.msra.mxu0 %v1160
    %1162 = vmatprep.subr.mxu0 0.0
    %v1163 = vand.u32 %v174, 4294901760
    %1164 = vmatpush1.msra.mxu0 %v1163
    %1165 = vmatprep.subr.mxu0 0.0
    %v1166 = vand.u32 %v175, 4294901760
    %1167 = vmatpush1.msra.mxu0 %v1166
    %1168 = vmatprep.subr.mxu0 0.0
    %v1169 = vand.u32 %v176, 4294901760
    %1170 = vmatpush1.msra.mxu0 %v1169
    %1171 = vmatprep.subr.mxu0 0.0
    %v1172 = vand.u32 %v177, 4294901760
    %1173 = vmatpush1.msra.mxu0 %v1172
    %1174 = vmatprep.subr.mxu0 0.0
    %v1175 = vand.u32 %v178, 4294901760
    %1176 = vmatpush1.msra.mxu0 %v1175
    %1177 = vmatprep.subr.mxu0 0.0
    %v1178 = vand.u32 %v179, 4294901760
    %1179 = vmatpush1.msra.mxu0 %v1178
    %1180 = vmatprep.subr.mxu0 0.0
    %v1181 = vand.u32 %v180, 4294901760
    %1182 = vmatpush1.msra.mxu0 %v1181
    %1183 = vmatprep.subr.mxu0 0.0
    %v1184 = vand.u32 %v181, 4294901760
    %1185 = vmatpush1.msra.mxu0 %v1184
    %1186 = vmatprep.subr.mxu0 0.0
    %v1187 = vand.u32 %v182, 4294901760
    %1188 = vmatpush1.msra.mxu0 %v1187
    %1189 = vmatprep.subr.mxu0 0.0
    %v1190 = vand.u32 %v183, 4294901760
    %1191 = vmatpush1.msra.mxu0 %v1190
    %1192 = vmatprep.subr.mxu0 0.0
    %v1193 = vand.u32 %v184, 4294901760
    %1194 = vmatpush1.msra.mxu0 %v1193
    %1195 = vmatprep.subr.mxu0 0.0
    %v1196 = vand.u32 %v185, 4294901760
    %1197 = vmatpush1.msra.mxu0 %v1196
    %1198 = vmatprep.subr.mxu0 0.0
    %v1199 = vand.u32 %v186, 4294901760
    %1200 = vmatpush1.msra.mxu0 %v1199
    %1201 = vmatprep.subr.mxu0 0.0
    %v1202 = vand.u32 %v187, 4294901760
    %1203 = vmatpush1.msra.mxu0 %v1202
    %1204 = vmatprep.subr.mxu0 0.0
    %v1205 = vand.u32 %v188, 4294901760
    %1206 = vmatpush1.msra.mxu0 %v1205
    %1207 = vmatprep.subr.mxu0 0.0
    %v1208 = vand.u32 %v189, 4294901760
    %1209 = vmatpush1.msra.mxu0 %v1208
    %1210 = vmatprep.subr.mxu0 0.0
    %v1211 = vand.u32 %v190, 4294901760
    %1212 = vmatpush1.msra.mxu0 %v1211
    %v1213 = vand.u32 %v122, 4294901760
    %v1214 = vsub.f32 %v122, %v1213
    %v1215 = vand.u32 %v1214, 4294901760
    %v1216 = vsub.f32 %v1214, %v1215
    %v1217 = vand.u32 %v1216, 4294901760
    %1218 = vmatprep.mubr.f32.mxu0 %v1217
    %v1219 = vand.u32 %v121, 4294901760
    %v1220 = vsub.f32 %v121, %v1219
    %v1221 = vand.u32 %v1220, 4294901760
    %v1222 = vsub.f32 %v1220, %v1221
    %v1223 = vand.u32 %v1222, 4294901760
    %1224 = vmatmul.mubr.f32.gmra.mrb[0].mxu0 %v1223
    %v1225 = vpop.f32.mrb[0].mxu0
    %v1226 = vadd.f32 %v1114, %v1225
    %v1227 = vpop.f32.mrb[0].mxu0
    %1228 = vdwg.mxu0
    %1229 = vmatprep.subr.mxu0 0.0
    %v1230 = vand.u32 %v159, 4294901760
    %v1231 = vsub.f32 %v159, %v1230
    %v1232 = vand.u32 %v1231, 4294901760
    %v1233 = vsub.f32 %v1231, %v1232
    %v1234 = vand.u32 %v1233, 4294901760
    %1235 = vmatpush1.msra.mxu0 %v1234
    %1236 = vmatprep.subr.mxu0 0.0
    %v1237 = vand.u32 %v160, 4294901760
    %v1238 = vsub.f32 %v160, %v1237
    %v1239 = vand.u32 %v1238, 4294901760
    %v1240 = vsub.f32 %v1238, %v1239
    %v1241 = vand.u32 %v1240, 4294901760
    %1242 = vmatpush1.msra.mxu0 %v1241
    %1243 = vmatprep.subr.mxu0 0.0
    %v1244 = vand.u32 %v161, 4294901760
    %v1245 = vsub.f32 %v161, %v1244
    %v1246 = vand.u32 %v1245, 4294901760
    %v1247 = vsub.f32 %v1245, %v1246
    %v1248 = vand.u32 %v1247, 4294901760
    %1249 = vmatpush1.msra.mxu0 %v1248
    %1250 = vmatprep.subr.mxu0 0.0
    %v1251 = vand.u32 %v162, 4294901760
    %v1252 = vsub.f32 %v162, %v1251
    %v1253 = vand.u32 %v1252, 4294901760
    %v1254 = vsub.f32 %v1252, %v1253
    %v1255 = vand.u32 %v1254, 4294901760
    %1256 = vmatpush1.msra.mxu0 %v1255
    %1257 = vmatprep.subr.mxu0 0.0
    %v1258 = vand.u32 %v163, 4294901760
    %v1259 = vsub.f32 %v163, %v1258
    %v1260 = vand.u32 %v1259, 4294901760
    %v1261 = vsub.f32 %v1259, %v1260
    %v1262 = vand.u32 %v1261, 4294901760
    %1263 = vmatpush1.msra.mxu0 %v1262
    %1264 = vmatprep.subr.mxu0 0.0
    %v1265 = vand.u32 %v164, 4294901760
    %v1266 = vsub.f32 %v164, %v1265
    %v1267 = vand.u32 %v1266, 4294901760
    %v1268 = vsub.f32 %v1266, %v1267
    %v1269 = vand.u32 %v1268, 4294901760
    %1270 = vmatpush1.msra.mxu0 %v1269
    %1271 = vmatprep.subr.mxu0 0.0
    %v1272 = vand.u32 %v165, 4294901760
    %v1273 = vsub.f32 %v165, %v1272
    %v1274 = vand.u32 %v1273, 4294901760
    %v1275 = vsub.f32 %v1273, %v1274
    %v1276 = vand.u32 %v1275, 4294901760
    %1277 = vmatpush1.msra.mxu0 %v1276
    %1278 = vmatprep.subr.mxu0 0.0
    %v1279 = vand.u32 %v166, 4294901760
    %v1280 = vsub.f32 %v166, %v1279
    %v1281 = vand.u32 %v1280, 4294901760
    %v1282 = vsub.f32 %v1280, %v1281
    %v1283 = vand.u32 %v1282, 4294901760
    %1284 = vmatpush1.msra.mxu0 %v1283
    %1285 = vmatprep.subr.mxu0 0.0
    %v1286 = vand.u32 %v167, 4294901760
    %v1287 = vsub.f32 %v167, %v1286
    %v1288 = vand.u32 %v1287, 4294901760
    %v1289 = vsub.f32 %v1287, %v1288
    %v1290 = vand.u32 %v1289, 4294901760
    %1291 = vmatpush1.msra.mxu0 %v1290
    %1292 = vmatprep.subr.mxu0 0.0
    %v1293 = vand.u32 %v168, 4294901760
    %v1294 = vsub.f32 %v168, %v1293
    %v1295 = vand.u32 %v1294, 4294901760
    %v1296 = vsub.f32 %v1294, %v1295
    %v1297 = vand.u32 %v1296, 4294901760
    %1298 = vmatpush1.msra.mxu0 %v1297
    %1299 = vmatprep.subr.mxu0 0.0
    %v1300 = vand.u32 %v169, 4294901760
    %v1301 = vsub.f32 %v169, %v1300
    %v1302 = vand.u32 %v1301, 4294901760
    %v1303 = vsub.f32 %v1301, %v1302
    %v1304 = vand.u32 %v1303, 4294901760
    %1305 = vmatpush1.msra.mxu0 %v1304
    %1306 = vmatprep.subr.mxu0 0.0
    %v1307 = vand.u32 %v170, 4294901760
    %v1308 = vsub.f32 %v170, %v1307
    %v1309 = vand.u32 %v1308, 4294901760
    %v1310 = vsub.f32 %v1308, %v1309
    %v1311 = vand.u32 %v1310, 4294901760
    %1312 = vmatpush1.msra.mxu0 %v1311
    %1313 = vmatprep.subr.mxu0 0.0
    %v1314 = vand.u32 %v171, 4294901760
    %v1315 = vsub.f32 %v171, %v1314
    %v1316 = vand.u32 %v1315, 4294901760
    %v1317 = vsub.f32 %v1315, %v1316
    %v1318 = vand.u32 %v1317, 4294901760
    %1319 = vmatpush1.msra.mxu0 %v1318
    %1320 = vmatprep.subr.mxu0 0.0
    %v1321 = vand.u32 %v172, 4294901760
    %v1322 = vsub.f32 %v172, %v1321
    %v1323 = vand.u32 %v1322, 4294901760
    %v1324 = vsub.f32 %v1322, %v1323
    %v1325 = vand.u32 %v1324, 4294901760
    %1326 = vmatpush1.msra.mxu0 %v1325
    %1327 = vmatprep.subr.mxu0 0.0
    %v1328 = vand.u32 %v173, 4294901760
    %v1329 = vsub.f32 %v173, %v1328
    %v1330 = vand.u32 %v1329, 4294901760
    %v1331 = vsub.f32 %v1329, %v1330
    %v1332 = vand.u32 %v1331, 4294901760
    %1333 = vmatpush1.msra.mxu0 %v1332
    %1334 = vmatprep.subr.mxu0 0.0
    %v1335 = vand.u32 %v174, 4294901760
    %v1336 = vsub.f32 %v174, %v1335
    %v1337 = vand.u32 %v1336, 4294901760
    %v1338 = vsub.f32 %v1336, %v1337
    %v1339 = vand.u32 %v1338, 4294901760
    %1340 = vmatpush1.msra.mxu0 %v1339
    %1341 = vmatprep.subr.mxu0 0.0
    %v1342 = vand.u32 %v175, 4294901760
    %v1343 = vsub.f32 %v175, %v1342
    %v1344 = vand.u32 %v1343, 4294901760
    %v1345 = vsub.f32 %v1343, %v1344
    %v1346 = vand.u32 %v1345, 4294901760
    %1347 = vmatpush1.msra.mxu0 %v1346
    %1348 = vmatprep.subr.mxu0 0.0
    %v1349 = vand.u32 %v176, 4294901760
    %v1350 = vsub.f32 %v176, %v1349
    %v1351 = vand.u32 %v1350, 4294901760
    %v1352 = vsub.f32 %v1350, %v1351
    %v1353 = vand.u32 %v1352, 4294901760
    %1354 = vmatpush1.msra.mxu0 %v1353
    %1355 = vmatprep.subr.mxu0 0.0
    %v1356 = vand.u32 %v177, 4294901760
    %v1357 = vsub.f32 %v177, %v1356
    %v1358 = vand.u32 %v1357, 4294901760
    %v1359 = vsub.f32 %v1357, %v1358
    %v1360 = vand.u32 %v1359, 4294901760
    %1361 = vmatpush1.msra.mxu0 %v1360
    %1362 = vmatprep.subr.mxu0 0.0
    %v1363 = vand.u32 %v178, 4294901760
    %v1364 = vsub.f32 %v178, %v1363
    %v1365 = vand.u32 %v1364, 4294901760
    %v1366 = vsub.f32 %v1364, %v1365
    %v1367 = vand.u32 %v1366, 4294901760
    %1368 = vmatpush1.msra.mxu0 %v1367
    %1369 = vmatprep.subr.mxu0 0.0
    %v1370 = vand.u32 %v179, 4294901760
    %v1371 = vsub.f32 %v179, %v1370
    %v1372 = vand.u32 %v1371, 4294901760
    %v1373 = vsub.f32 %v1371, %v1372
    %v1374 = vand.u32 %v1373, 4294901760
    %1375 = vmatpush1.msra.mxu0 %v1374
    %1376 = vmatprep.subr.mxu0 0.0
    %v1377 = vand.u32 %v180, 4294901760
    %v1378 = vsub.f32 %v180, %v1377
    %v1379 = vand.u32 %v1378, 4294901760
    %v1380 = vsub.f32 %v1378, %v1379
    %v1381 = vand.u32 %v1380, 4294901760
    %1382 = vmatpush1.msra.mxu0 %v1381
    %1383 = vmatprep.subr.mxu0 0.0
    %v1384 = vand.u32 %v181, 4294901760
    %v1385 = vsub.f32 %v181, %v1384
    %v1386 = vand.u32 %v1385, 4294901760
    %v1387 = vsub.f32 %v1385, %v1386
    %v1388 = vand.u32 %v1387, 4294901760
    %1389 = vmatpush1.msra.mxu0 %v1388
    %1390 = vmatprep.subr.mxu0 0.0
    %v1391 = vand.u32 %v182, 4294901760
    %v1392 = vsub.f32 %v182, %v1391
    %v1393 = vand.u32 %v1392, 4294901760
    %v1394 = vsub.f32 %v1392, %v1393
    %v1395 = vand.u32 %v1394, 4294901760
    %1396 = vmatpush1.msra.mxu0 %v1395
    %1397 = vmatprep.subr.mxu0 0.0
    %v1398 = vand.u32 %v183, 4294901760
    %v1399 = vsub.f32 %v183, %v1398
    %v1400 = vand.u32 %v1399, 4294901760
    %v1401 = vsub.f32 %v1399, %v1400
    %v1402 = vand.u32 %v1401, 4294901760
    %1403 = vmatpush1.msra.mxu0 %v1402
    %1404 = vmatprep.subr.mxu0 0.0
    %v1405 = vand.u32 %v184, 4294901760
    %v1406 = vsub.f32 %v184, %v1405
    %v1407 = vand.u32 %v1406, 4294901760
    %v1408 = vsub.f32 %v1406, %v1407
    %v1409 = vand.u32 %v1408, 4294901760
    %1410 = vmatpush1.msra.mxu0 %v1409
    %1411 = vmatprep.subr.mxu0 0.0
    %v1412 = vand.u32 %v185, 4294901760
    %v1413 = vsub.f32 %v185, %v1412
    %v1414 = vand.u32 %v1413, 4294901760
    %v1415 = vsub.f32 %v1413, %v1414
    %v1416 = vand.u32 %v1415, 4294901760
    %1417 = vmatpush1.msra.mxu0 %v1416
    %1418 = vmatprep.subr.mxu0 0.0
    %v1419 = vand.u32 %v186, 4294901760
    %v1420 = vsub.f32 %v186, %v1419
    %v1421 = vand.u32 %v1420, 4294901760
    %v1422 = vsub.f32 %v1420, %v1421
    %v1423 = vand.u32 %v1422, 4294901760
    %1424 = vmatpush1.msra.mxu0 %v1423
    %1425 = vmatprep.subr.mxu0 0.0
    %v1426 = vand.u32 %v187, 4294901760
    %v1427 = vsub.f32 %v187, %v1426
    %v1428 = vand.u32 %v1427, 4294901760
    %v1429 = vsub.f32 %v1427, %v1428
    %v1430 = vand.u32 %v1429, 4294901760
    %1431 = vmatpush1.msra.mxu0 %v1430
    %1432 = vmatprep.subr.mxu0 0.0
    %v1433 = vand.u32 %v188, 4294901760
    %v1434 = vsub.f32 %v188, %v1433
    %v1435 = vand.u32 %v1434, 4294901760
    %v1436 = vsub.f32 %v1434, %v1435
    %v1437 = vand.u32 %v1436, 4294901760
    %1438 = vmatpush1.msra.mxu0 %v1437
    %1439 = vmatprep.subr.mxu0 0.0
    %v1440 = vand.u32 %v189, 4294901760
    %v1441 = vsub.f32 %v189, %v1440
    %v1442 = vand.u32 %v1441, 4294901760
    %v1443 = vsub.f32 %v1441, %v1442
    %v1444 = vand.u32 %v1443, 4294901760
    %1445 = vmatpush1.msra.mxu0 %v1444
    %1446 = vmatprep.subr.mxu0 0.0
    %v1447 = vand.u32 %v190, 4294901760
    %v1448 = vsub.f32 %v190, %v1447
    %v1449 = vand.u32 %v1448, 4294901760
    %v1450 = vsub.f32 %v1448, %v1449
    %v1451 = vand.u32 %v1450, 4294901760
    %1452 = vmatpush1.msra.mxu0 %v1451
    %v1453 = vand.u32 %v122, 4294901760
    %1454 = vmatprep.mubr.f32.mxu0 %v1453
    %v1455 = vand.u32 %v121, 4294901760
    %1456 = vmatmul.mubr.f32.gmra.mrb[0].mxu0 %v1455
    %v1457 = vpop.f32.mrb[0].mxu0
    %v1458 = vadd.f32 %v1226, %v1457
    %v1459 = vpop.f32.mrb[0].mxu0
    %1460 = vdwg.mxu0
    %1461 = vmatprep.subr.mxu0 0.0
    %v1462 = vand.u32 %v159, 4294901760
    %v1463 = vsub.f32 %v159, %v1462
    %1464 = vmatpush1.msra.mxu0 %v1463
    %1465 = vmatprep.subr.mxu0 0.0
    %v1466 = vand.u32 %v160, 4294901760
    %v1467 = vsub.f32 %v160, %v1466
    %1468 = vmatpush1.msra.mxu0 %v1467
    %1469 = vmatprep.subr.mxu0 0.0
    %v1470 = vand.u32 %v161, 4294901760
    %v1471 = vsub.f32 %v161, %v1470
    %1472 = vmatpush1.msra.mxu0 %v1471
    %1473 = vmatprep.subr.mxu0 0.0
    %v1474 = vand.u32 %v162, 4294901760
    %v1475 = vsub.f32 %v162, %v1474
    %1476 = vmatpush1.msra.mxu0 %v1475
    %1477 = vmatprep.subr.mxu0 0.0
    %v1478 = vand.u32 %v163, 4294901760
    %v1479 = vsub.f32 %v163, %v1478
    %1480 = vmatpush1.msra.mxu0 %v1479
    %1481 = vmatprep.subr.mxu0 0.0
    %v1482 = vand.u32 %v164, 4294901760
    %v1483 = vsub.f32 %v164, %v1482
    %1484 = vmatpush1.msra.mxu0 %v1483
    %1485 = vmatprep.subr.mxu0 0.0
    %v1486 = vand.u32 %v165, 4294901760
    %v1487 = vsub.f32 %v165, %v1486
    %1488 = vmatpush1.msra.mxu0 %v1487
    %1489 = vmatprep.subr.mxu0 0.0
    %v1490 = vand.u32 %v166, 4294901760
    %v1491 = vsub.f32 %v166, %v1490
    %1492 = vmatpush1.msra.mxu0 %v1491
    %1493 = vmatprep.subr.mxu0 0.0
    %v1494 = vand.u32 %v167, 4294901760
    %v1495 = vsub.f32 %v167, %v1494
    %1496 = vmatpush1.msra.mxu0 %v1495
    %1497 = vmatprep.subr.mxu0 0.0
    %v1498 = vand.u32 %v168, 4294901760
    %v1499 = vsub.f32 %v168, %v1498
    %1500 = vmatpush1.msra.mxu0 %v1499
    %1501 = vmatprep.subr.mxu0 0.0
    %v1502 = vand.u32 %v169, 4294901760
    %v1503 = vsub.f32 %v169, %v1502
    %1504 = vmatpush1.msra.mxu0 %v1503
    %1505 = vmatprep.subr.mxu0 0.0
    %v1506 = vand.u32 %v170, 4294901760
    %v1507 = vsub.f32 %v170, %v1506
    %1508 = vmatpush1.msra.mxu0 %v1507
    %1509 = vmatprep.subr.mxu0 0.0
    %v1510 = vand.u32 %v171, 4294901760
    %v1511 = vsub.f32 %v171, %v1510
    %1512 = vmatpush1.msra.mxu0 %v1511
    %1513 = vmatprep.subr.mxu0 0.0
    %v1514 = vand.u32 %v172, 4294901760
    %v1515 = vsub.f32 %v172, %v1514
    %1516 = vmatpush1.msra.mxu0 %v1515
    %1517 = vmatprep.subr.mxu0 0.0
    %v1518 = vand.u32 %v173, 4294901760
    %v1519 = vsub.f32 %v173, %v1518
    %1520 = vmatpush1.msra.mxu0 %v1519
    %1521 = vmatprep.subr.mxu0 0.0
    %v1522 = vand.u32 %v174, 4294901760
    %v1523 = vsub.f32 %v174, %v1522
    %1524 = vmatpush1.msra.mxu0 %v1523
    %1525 = vmatprep.subr.mxu0 0.0
    %v1526 = vand.u32 %v175, 4294901760
    %v1527 = vsub.f32 %v175, %v1526
    %1528 = vmatpush1.msra.mxu0 %v1527
    %1529 = vmatprep.subr.mxu0 0.0
    %v1530 = vand.u32 %v176, 4294901760
    %v1531 = vsub.f32 %v176, %v1530
    %1532 = vmatpush1.msra.mxu0 %v1531
    %1533 = vmatprep.subr.mxu0 0.0
    %v1534 = vand.u32 %v177, 4294901760
    %v1535 = vsub.f32 %v177, %v1534
    %1536 = vmatpush1.msra.mxu0 %v1535
    %1537 = vmatprep.subr.mxu0 0.0
    %v1538 = vand.u32 %v178, 4294901760
    %v1539 = vsub.f32 %v178, %v1538
    %1540 = vmatpush1.msra.mxu0 %v1539
    %1541 = vmatprep.subr.mxu0 0.0
    %v1542 = vand.u32 %v179, 4294901760
    %v1543 = vsub.f32 %v179, %v1542
    %1544 = vmatpush1.msra.mxu0 %v1543
    %1545 = vmatprep.subr.mxu0 0.0
    %v1546 = vand.u32 %v180, 4294901760
    %v1547 = vsub.f32 %v180, %v1546
    %1548 = vmatpush1.msra.mxu0 %v1547
    %1549 = vmatprep.subr.mxu0 0.0
    %v1550 = vand.u32 %v181, 4294901760
    %v1551 = vsub.f32 %v181, %v1550
    %1552 = vmatpush1.msra.mxu0 %v1551
    %1553 = vmatprep.subr.mxu0 0.0
    %v1554 = vand.u32 %v182, 4294901760
    %v1555 = vsub.f32 %v182, %v1554
    %1556 = vmatpush1.msra.mxu0 %v1555
    %1557 = vmatprep.subr.mxu0 0.0
    %v1558 = vand.u32 %v183, 4294901760
    %v1559 = vsub.f32 %v183, %v1558
    %1560 = vmatpush1.msra.mxu0 %v1559
    %1561 = vmatprep.subr.mxu0 0.0
    %v1562 = vand.u32 %v184, 4294901760
    %v1563 = vsub.f32 %v184, %v1562
    %1564 = vmatpush1.msra.mxu0 %v1563
    %1565 = vmatprep.subr.mxu0 0.0
    %v1566 = vand.u32 %v185, 4294901760
    %v1567 = vsub.f32 %v185, %v1566
    %1568 = vmatpush1.msra.mxu0 %v1567
    %1569 = vmatprep.subr.mxu0 0.0
    %v1570 = vand.u32 %v186, 4294901760
    %v1571 = vsub.f32 %v186, %v1570
    %1572 = vmatpush1.msra.mxu0 %v1571
    %1573 = vmatprep.subr.mxu0 0.0
    %v1574 = vand.u32 %v187, 4294901760
    %v1575 = vsub.f32 %v187, %v1574
    %1576 = vmatpush1.msra.mxu0 %v1575
    %1577 = vmatprep.subr.mxu0 0.0
    %v1578 = vand.u32 %v188, 4294901760
    %v1579 = vsub.f32 %v188, %v1578
    %1580 = vmatpush1.msra.mxu0 %v1579
    %1581 = vmatprep.subr.mxu0 0.0
    %v1582 = vand.u32 %v189, 4294901760
    %v1583 = vsub.f32 %v189, %v1582
    %1584 = vmatpush1.msra.mxu0 %v1583
    %1585 = vmatprep.subr.mxu0 0.0
    %v1586 = vand.u32 %v190, 4294901760
    %v1587 = vsub.f32 %v190, %v1586
    %1588 = vmatpush1.msra.mxu0 %v1587
    %v1589 = vand.u32 %v122, 4294901760
    %v1590 = vsub.f32 %v122, %v1589
    %1591 = vmatprep.mubr.f32.mxu0 %v1590
    %v1592 = vand.u32 %v121, 4294901760
    %v1593 = vsub.f32 %v121, %v1592
    %1594 = vmatmul.mubr.f32.gmra.mrb[0].mxu0 %v1593
    %v1595 = vpop.f32.mrb[0].mxu0
    %v1596 = vadd.f32 %v1458, %v1595
    %v1597 = vpop.f32.mrb[0].mxu0
    %1598 = vdwg.mxu0
    %1599 = vmatprep.subr.mxu0 0.0
    %v1600 = vand.u32 %v159, 4294901760
    %1601 = vmatpush1.msra.mxu0 %v1600
    %1602 = vmatprep.subr.mxu0 0.0
    %v1603 = vand.u32 %v160, 4294901760
    %1604 = vmatpush1.msra.mxu0 %v1603
    %1605 = vmatprep.subr.mxu0 0.0
    %v1606 = vand.u32 %v161, 4294901760
    %1607 = vmatpush1.msra.mxu0 %v1606
    %1608 = vmatprep.subr.mxu0 0.0
    %v1609 = vand.u32 %v162, 4294901760
    %1610 = vmatpush1.msra.mxu0 %v1609
    %1611 = vmatprep.subr.mxu0 0.0
    %v1612 = vand.u32 %v163, 4294901760
    %1613 = vmatpush1.msra.mxu0 %v1612
    %1614 = vmatprep.subr.mxu0 0.0
    %v1615 = vand.u32 %v164, 4294901760
    %1616 = vmatpush1.msra.mxu0 %v1615
    %1617 = vmatprep.subr.mxu0 0.0
    %v1618 = vand.u32 %v165, 4294901760
    %1619 = vmatpush1.msra.mxu0 %v1618
    %1620 = vmatprep.subr.mxu0 0.0
    %v1621 = vand.u32 %v166, 4294901760
    %1622 = vmatpush1.msra.mxu0 %v1621
    %1623 = vmatprep.subr.mxu0 0.0
    %v1624 = vand.u32 %v167, 4294901760
    %1625 = vmatpush1.msra.mxu0 %v1624
    %1626 = vmatprep.subr.mxu0 0.0
    %v1627 = vand.u32 %v168, 4294901760
    %1628 = vmatpush1.msra.mxu0 %v1627
    %1629 = vmatprep.subr.mxu0 0.0
    %v1630 = vand.u32 %v169, 4294901760
    %1631 = vmatpush1.msra.mxu0 %v1630
    %1632 = vmatprep.subr.mxu0 0.0
    %v1633 = vand.u32 %v170, 4294901760
    %1634 = vmatpush1.msra.mxu0 %v1633
    %1635 = vmatprep.subr.mxu0 0.0
    %v1636 = vand.u32 %v171, 4294901760
    %1637 = vmatpush1.msra.mxu0 %v1636
    %1638 = vmatprep.subr.mxu0 0.0
    %v1639 = vand.u32 %v172, 4294901760
    %1640 = vmatpush1.msra.mxu0 %v1639
    %1641 = vmatprep.subr.mxu0 0.0
    %v1642 = vand.u32 %v173, 4294901760
    %1643 = vmatpush1.msra.mxu0 %v1642
    %1644 = vmatprep.subr.mxu0 0.0
    %v1645 = vand.u32 %v174, 4294901760
    %1646 = vmatpush1.msra.mxu0 %v1645
    %1647 = vmatprep.subr.mxu0 0.0
    %v1648 = vand.u32 %v175, 4294901760
    %1649 = vmatpush1.msra.mxu0 %v1648
    %1650 = vmatprep.subr.mxu0 0.0
    %v1651 = vand.u32 %v176, 4294901760
    %1652 = vmatpush1.msra.mxu0 %v1651
    %1653 = vmatprep.subr.mxu0 0.0
    %v1654 = vand.u32 %v177, 4294901760
    %1655 = vmatpush1.msra.mxu0 %v1654
    %1656 = vmatprep.subr.mxu0 0.0
    %v1657 = vand.u32 %v178, 4294901760
    %1658 = vmatpush1.msra.mxu0 %v1657
    %1659 = vmatprep.subr.mxu0 0.0
    %v1660 = vand.u32 %v179, 4294901760
    %1661 = vmatpush1.msra.mxu0 %v1660
    %1662 = vmatprep.subr.mxu0 0.0
    %v1663 = vand.u32 %v180, 4294901760
    %1664 = vmatpush1.msra.mxu0 %v1663
    %1665 = vmatprep.subr.mxu0 0.0
    %v1666 = vand.u32 %v181, 4294901760
    %1667 = vmatpush1.msra.mxu0 %v1666
    %1668 = vmatprep.subr.mxu0 0.0
    %v1669 = vand.u32 %v182, 4294901760
    %1670 = vmatpush1.msra.mxu0 %v1669
    %1671 = vmatprep.subr.mxu0 0.0
    %v1672 = vand.u32 %v183, 4294901760
    %1673 = vmatpush1.msra.mxu0 %v1672
    %1674 = vmatprep.subr.mxu0 0.0
    %v1675 = vand.u32 %v184, 4294901760
    %1676 = vmatpush1.msra.mxu0 %v1675
    %1677 = vmatprep.subr.mxu0 0.0
    %v1678 = vand.u32 %v185, 4294901760
    %1679 = vmatpush1.msra.mxu0 %v1678
    %1680 = vmatprep.subr.mxu0 0.0
    %v1681 = vand.u32 %v186, 4294901760
    %1682 = vmatpush1.msra.mxu0 %v1681
    %1683 = vmatprep.subr.mxu0 0.0
    %v1684 = vand.u32 %v187, 4294901760
    %1685 = vmatpush1.msra.mxu0 %v1684
    %1686 = vmatprep.subr.mxu0 0.0
    %v1687 = vand.u32 %v188, 4294901760
    %1688 = vmatpush1.msra.mxu0 %v1687
    %1689 = vmatprep.subr.mxu0 0.0
    %v1690 = vand.u32 %v189, 4294901760
    %1691 = vmatpush1.msra.mxu0 %v1690
    %1692 = vmatprep.subr.mxu0 0.0
    %v1693 = vand.u32 %v190, 4294901760
    %1694 = vmatpush1.msra.mxu0 %v1693
    %v1695 = vand.u32 %v122, 4294901760
    %v1696 = vsub.f32 %v122, %v1695
    %v1697 = vand.u32 %v1696, 4294901760
    %1698 = vmatprep.mubr.f32.mxu0 %v1697
    %v1699 = vand.u32 %v121, 4294901760
    %v1700 = vsub.f32 %v121, %v1699
    %v1701 = vand.u32 %v1700, 4294901760
    %1702 = vmatmul.mubr.f32.gmra.mrb[0].mxu0 %v1701
    %v1703 = vpop.f32.mrb[0].mxu0
    %v1704 = vadd.f32 %v1596, %v1703
    %v1705 = vpop.f32.mrb[0].mxu0
    %1706 = vdwg.mxu0
    %1707 = vmatprep.subr.mxu0 0.0
    %v1708 = vand.u32 %v159, 4294901760
    %v1709 = vsub.f32 %v159, %v1708
    %v1710 = vand.u32 %v1709, 4294901760
    %1711 = vmatpush1.msra.mxu0 %v1710
    %1712 = vmatprep.subr.mxu0 0.0
    %v1713 = vand.u32 %v160, 4294901760
    %v1714 = vsub.f32 %v160, %v1713
    %v1715 = vand.u32 %v1714, 4294901760
    %1716 = vmatpush1.msra.mxu0 %v1715
    %1717 = vmatprep.subr.mxu0 0.0
    %v1718 = vand.u32 %v161, 4294901760
    %v1719 = vsub.f32 %v161, %v1718
    %v1720 = vand.u32 %v1719, 4294901760
    %1721 = vmatpush1.msra.mxu0 %v1720
    %1722 = vmatprep.subr.mxu0 0.0
    %v1723 = vand.u32 %v162, 4294901760
    %v1724 = vsub.f32 %v162, %v1723
    %v1725 = vand.u32 %v1724, 4294901760
    %1726 = vmatpush1.msra.mxu0 %v1725
    %1727 = vmatprep.subr.mxu0 0.0
    %v1728 = vand.u32 %v163, 4294901760
    %v1729 = vsub.f32 %v163, %v1728
    %v1730 = vand.u32 %v1729, 4294901760
    %1731 = vmatpush1.msra.mxu0 %v1730
    %1732 = vmatprep.subr.mxu0 0.0
    %v1733 = vand.u32 %v164, 4294901760
    %v1734 = vsub.f32 %v164, %v1733
    %v1735 = vand.u32 %v1734, 4294901760
    %1736 = vmatpush1.msra.mxu0 %v1735
    %1737 = vmatprep.subr.mxu0 0.0
    %v1738 = vand.u32 %v165, 4294901760
    %v1739 = vsub.f32 %v165, %v1738
    %v1740 = vand.u32 %v1739, 4294901760
    %1741 = vmatpush1.msra.mxu0 %v1740
    %1742 = vmatprep.subr.mxu0 0.0
    %v1743 = vand.u32 %v166, 4294901760
    %v1744 = vsub.f32 %v166, %v1743
    %v1745 = vand.u32 %v1744, 4294901760
    %1746 = vmatpush1.msra.mxu0 %v1745
    %1747 = vmatprep.subr.mxu0 0.0
    %v1748 = vand.u32 %v167, 4294901760
    %v1749 = vsub.f32 %v167, %v1748
    %v1750 = vand.u32 %v1749, 4294901760
    %1751 = vmatpush1.msra.mxu0 %v1750
    %1752 = vmatprep.subr.mxu0 0.0
    %v1753 = vand.u32 %v168, 4294901760
    %v1754 = vsub.f32 %v168, %v1753
    %v1755 = vand.u32 %v1754, 4294901760
    %1756 = vmatpush1.msra.mxu0 %v1755
    %1757 = vmatprep.subr.mxu0 0.0
    %v1758 = vand.u32 %v169, 4294901760
    %v1759 = vsub.f32 %v169, %v1758
    %v1760 = vand.u32 %v1759, 4294901760
    %1761 = vmatpush1.msra.mxu0 %v1760
    %1762 = vmatprep.subr.mxu0 0.0
    %v1763 = vand.u32 %v170, 4294901760
    %v1764 = vsub.f32 %v170, %v1763
    %v1765 = vand.u32 %v1764, 4294901760
    %1766 = vmatpush1.msra.mxu0 %v1765
    %1767 = vmatprep.subr.mxu0 0.0
    %v1768 = vand.u32 %v171, 4294901760
    %v1769 = vsub.f32 %v171, %v1768
    %v1770 = vand.u32 %v1769, 4294901760
    %1771 = vmatpush1.msra.mxu0 %v1770
    %1772 = vmatprep.subr.mxu0 0.0
    %v1773 = vand.u32 %v172, 4294901760
    %v1774 = vsub.f32 %v172, %v1773
    %v1775 = vand.u32 %v1774, 4294901760
    %1776 = vmatpush1.msra.mxu0 %v1775
    %1777 = vmatprep.subr.mxu0 0.0
    %v1778 = vand.u32 %v173, 4294901760
    %v1779 = vsub.f32 %v173, %v1778
    %v1780 = vand.u32 %v1779, 4294901760
    %1781 = vmatpush1.msra.mxu0 %v1780
    %1782 = vmatprep.subr.mxu0 0.0
    %v1783 = vand.u32 %v174, 4294901760
    %v1784 = vsub.f32 %v174, %v1783
    %v1785 = vand.u32 %v1784, 4294901760
    %1786 = vmatpush1.msra.mxu0 %v1785
    %1787 = vmatprep.subr.mxu0 0.0
    %v1788 = vand.u32 %v175, 4294901760
    %v1789 = vsub.f32 %v175, %v1788
    %v1790 = vand.u32 %v1789, 4294901760
    %1791 = vmatpush1.msra.mxu0 %v1790
    %1792 = vmatprep.subr.mxu0 0.0
    %v1793 = vand.u32 %v176, 4294901760
    %v1794 = vsub.f32 %v176, %v1793
    %v1795 = vand.u32 %v1794, 4294901760
    %1796 = vmatpush1.msra.mxu0 %v1795
    %1797 = vmatprep.subr.mxu0 0.0
    %v1798 = vand.u32 %v177, 4294901760
    %v1799 = vsub.f32 %v177, %v1798
    %v1800 = vand.u32 %v1799, 4294901760
    %1801 = vmatpush1.msra.mxu0 %v1800
    %1802 = vmatprep.subr.mxu0 0.0
    %v1803 = vand.u32 %v178, 4294901760
    %v1804 = vsub.f32 %v178, %v1803
    %v1805 = vand.u32 %v1804, 4294901760
    %1806 = vmatpush1.msra.mxu0 %v1805
    %1807 = vmatprep.subr.mxu0 0.0
    %v1808 = vand.u32 %v179, 4294901760
    %v1809 = vsub.f32 %v179, %v1808
    %v1810 = vand.u32 %v1809, 4294901760
    %1811 = vmatpush1.msra.mxu0 %v1810
    %1812 = vmatprep.subr.mxu0 0.0
    %v1813 = vand.u32 %v180, 4294901760
    %v1814 = vsub.f32 %v180, %v1813
    %v1815 = vand.u32 %v1814, 4294901760
    %1816 = vmatpush1.msra.mxu0 %v1815
    %1817 = vmatprep.subr.mxu0 0.0
    %v1818 = vand.u32 %v181, 4294901760
    %v1819 = vsub.f32 %v181, %v1818
    %v1820 = vand.u32 %v1819, 4294901760
    %1821 = vmatpush1.msra.mxu0 %v1820
    %1822 = vmatprep.subr.mxu0 0.0
    %v1823 = vand.u32 %v182, 4294901760
    %v1824 = vsub.f32 %v182, %v1823
    %v1825 = vand.u32 %v1824, 4294901760
    %1826 = vmatpush1.msra.mxu0 %v1825
    %1827 = vmatprep.subr.mxu0 0.0
    %v1828 = vand.u32 %v183, 4294901760
    %v1829 = vsub.f32 %v183, %v1828
    %v1830 = vand.u32 %v1829, 4294901760
    %1831 = vmatpush1.msra.mxu0 %v1830
    %1832 = vmatprep.subr.mxu0 0.0
    %v1833 = vand.u32 %v184, 4294901760
    %v1834 = vsub.f32 %v184, %v1833
    %v1835 = vand.u32 %v1834, 4294901760
    %1836 = vmatpush1.msra.mxu0 %v1835
    %1837 = vmatprep.subr.mxu0 0.0
    %v1838 = vand.u32 %v185, 4294901760
    %v1839 = vsub.f32 %v185, %v1838
    %v1840 = vand.u32 %v1839, 4294901760
    %1841 = vmatpush1.msra.mxu0 %v1840
    %1842 = vmatprep.subr.mxu0 0.0
    %v1843 = vand.u32 %v186, 4294901760
    %v1844 = vsub.f32 %v186, %v1843
    %v1845 = vand.u32 %v1844, 4294901760
    %1846 = vmatpush1.msra.mxu0 %v1845
    %1847 = vmatprep.subr.mxu0 0.0
    %v1848 = vand.u32 %v187, 4294901760
    %v1849 = vsub.f32 %v187, %v1848
    %v1850 = vand.u32 %v1849, 4294901760
    %1851 = vmatpush1.msra.mxu0 %v1850
    %1852 = vmatprep.subr.mxu0 0.0
    %v1853 = vand.u32 %v188, 4294901760
    %v1854 = vsub.f32 %v188, %v1853
    %v1855 = vand.u32 %v1854, 4294901760
    %1856 = vmatpush1.msra.mxu0 %v1855
    %1857 = vmatprep.subr.mxu0 0.0
    %v1858 = vand.u32 %v189, 4294901760
    %v1859 = vsub.f32 %v189, %v1858
    %v1860 = vand.u32 %v1859, 4294901760
    %1861 = vmatpush1.msra.mxu0 %v1860
    %1862 = vmatprep.subr.mxu0 0.0
    %v1863 = vand.u32 %v190, 4294901760
    %v1864 = vsub.f32 %v190, %v1863
    %v1865 = vand.u32 %v1864, 4294901760
    %1866 = vmatpush1.msra.mxu0 %v1865
    %v1867 = vand.u32 %v122, 4294901760
    %1868 = vmatprep.mubr.f32.mxu0 %v1867
    %v1869 = vand.u32 %v121, 4294901760
    %1870 = vmatmul.mubr.f32.gmra.mrb[0].mxu0 %v1869
    %v1871 = vpop.f32.mrb[0].mxu0
    %v1872 = vadd.f32 %v1704, %v1871
    %v1873 = vpop.f32.mrb[0].mxu0
    %1874 = vdwg.mxu0
    %1875 = vmatprep.subr.mxu0 0.0
    %v1876 = vand.u32 %v159, 4294901760
    %1877 = vmatpush1.msra.mxu0 %v1876
    %1878 = vmatprep.subr.mxu0 0.0
    %v1879 = vand.u32 %v160, 4294901760
    %1880 = vmatpush1.msra.mxu0 %v1879
    %1881 = vmatprep.subr.mxu0 0.0
    %v1882 = vand.u32 %v161, 4294901760
    %1883 = vmatpush1.msra.mxu0 %v1882
    %1884 = vmatprep.subr.mxu0 0.0
    %v1885 = vand.u32 %v162, 4294901760
    %1886 = vmatpush1.msra.mxu0 %v1885
    %1887 = vmatprep.subr.mxu0 0.0
    %v1888 = vand.u32 %v163, 4294901760
    %1889 = vmatpush1.msra.mxu0 %v1888
    %1890 = vmatprep.subr.mxu0 0.0
    %v1891 = vand.u32 %v164, 4294901760
    %1892 = vmatpush1.msra.mxu0 %v1891
    %1893 = vmatprep.subr.mxu0 0.0
    %v1894 = vand.u32 %v165, 4294901760
    %1895 = vmatpush1.msra.mxu0 %v1894
    %1896 = vmatprep.subr.mxu0 0.0
    %v1897 = vand.u32 %v166, 4294901760
    %1898 = vmatpush1.msra.mxu0 %v1897
    %1899 = vmatprep.subr.mxu0 0.0
    %v1900 = vand.u32 %v167, 4294901760
    %1901 = vmatpush1.msra.mxu0 %v1900
    %1902 = vmatprep.subr.mxu0 0.0
    %v1903 = vand.u32 %v168, 4294901760
    %1904 = vmatpush1.msra.mxu0 %v1903
    %1905 = vmatprep.subr.mxu0 0.0
    %v1906 = vand.u32 %v169, 4294901760
    %1907 = vmatpush1.msra.mxu0 %v1906
    %1908 = vmatprep.subr.mxu0 0.0
    %v1909 = vand.u32 %v170, 4294901760
    %1910 = vmatpush1.msra.mxu0 %v1909
    %1911 = vmatprep.subr.mxu0 0.0
    %v1912 = vand.u32 %v171, 4294901760
    %1913 = vmatpush1.msra.mxu0 %v1912
    %1914 = vmatprep.subr.mxu0 0.0
    %v1915 = vand.u32 %v172, 4294901760
    %1916 = vmatpush1.msra.mxu0 %v1915
    %1917 = vmatprep.subr.mxu0 0.0
    %v1918 = vand.u32 %v173, 4294901760
    %1919 = vmatpush1.msra.mxu0 %v1918
    %1920 = vmatprep.subr.mxu0 0.0
    %v1921 = vand.u32 %v174, 4294901760
    %1922 = vmatpush1.msra.mxu0 %v1921
    %1923 = vmatprep.subr.mxu0 0.0
    %v1924 = vand.u32 %v175, 4294901760
    %1925 = vmatpush1.msra.mxu0 %v1924
    %1926 = vmatprep.subr.mxu0 0.0
    %v1927 = vand.u32 %v176, 4294901760
    %1928 = vmatpush1.msra.mxu0 %v1927
    %1929 = vmatprep.subr.mxu0 0.0
    %v1930 = vand.u32 %v177, 4294901760
    %1931 = vmatpush1.msra.mxu0 %v1930
    %1932 = vmatprep.subr.mxu0 0.0
    %v1933 = vand.u32 %v178, 4294901760
    %1934 = vmatpush1.msra.mxu0 %v1933
    %1935 = vmatprep.subr.mxu0 0.0
    %v1936 = vand.u32 %v179, 4294901760
    %1937 = vmatpush1.msra.mxu0 %v1936
    %1938 = vmatprep.subr.mxu0 0.0
    %v1939 = vand.u32 %v180, 4294901760
    %1940 = vmatpush1.msra.mxu0 %v1939
    %1941 = vmatprep.subr.mxu0 0.0
    %v1942 = vand.u32 %v181, 4294901760
    %1943 = vmatpush1.msra.mxu0 %v1942
    %1944 = vmatprep.subr.mxu0 0.0
    %v1945 = vand.u32 %v182, 4294901760
    %1946 = vmatpush1.msra.mxu0 %v1945
    %1947 = vmatprep.subr.mxu0 0.0
    %v1948 = vand.u32 %v183, 4294901760
    %1949 = vmatpush1.msra.mxu0 %v1948
    %1950 = vmatprep.subr.mxu0 0.0
    %v1951 = vand.u32 %v184, 4294901760
    %1952 = vmatpush1.msra.mxu0 %v1951
    %1953 = vmatprep.subr.mxu0 0.0
    %v1954 = vand.u32 %v185, 4294901760
    %1955 = vmatpush1.msra.mxu0 %v1954
    %1956 = vmatprep.subr.mxu0 0.0
    %v1957 = vand.u32 %v186, 4294901760
    %1958 = vmatpush1.msra.mxu0 %v1957
    %1959 = vmatprep.subr.mxu0 0.0
    %v1960 = vand.u32 %v187, 4294901760
    %1961 = vmatpush1.msra.mxu0 %v1960
    %1962 = vmatprep.subr.mxu0 0.0
    %v1963 = vand.u32 %v188, 4294901760
    %1964 = vmatpush1.msra.mxu0 %v1963
    %1965 = vmatprep.subr.mxu0 0.0
    %v1966 = vand.u32 %v189, 4294901760
    %1967 = vmatpush1.msra.mxu0 %v1966
    %1968 = vmatprep.subr.mxu0 0.0
    %v1969 = vand.u32 %v190, 4294901760
    %1970 = vmatpush1.msra.mxu0 %v1969
    %v1971 = vand.u32 %v122, 4294901760
    %1972 = vmatprep.mubr.f32.mxu0 %v1971
    %v1973 = vand.u32 %v121, 4294901760
    %1974 = vmatmul.mubr.f32.gmra.mrb[0].mxu0 %v1973
    %v1975 = vpop.f32.mrb[0].mxu0
    %v1976 = vadd.f32 %v1872, %v1975
    %v1977 = vpop.f32.mrb[0].mxu0
    %1978 = vdwg.mxu0
    %1979 = vmatprep.subr.mxu0 0.0
    %v1980 = vand.u32 %v191, 4294901760
    %1981 = vmatpush1.msra.mxu0 %v1980
    %1982 = vmatprep.subr.mxu0 0.0
    %v1983 = vand.u32 %v192, 4294901760
    %1984 = vmatpush1.msra.mxu0 %v1983
    %1985 = vmatprep.subr.mxu0 0.0
    %v1986 = vand.u32 %v193, 4294901760
    %1987 = vmatpush1.msra.mxu0 %v1986
    %1988 = vmatprep.subr.mxu0 0.0
    %v1989 = vand.u32 %v194, 4294901760
    %1990 = vmatpush1.msra.mxu0 %v1989
    %1991 = vmatprep.subr.mxu0 0.0
    %v1992 = vand.u32 %v195, 4294901760
    %1993 = vmatpush1.msra.mxu0 %v1992
    %1994 = vmatprep.subr.mxu0 0.0
    %v1995 = vand.u32 %v196, 4294901760
    %1996 = vmatpush1.msra.mxu0 %v1995
    %1997 = vmatprep.subr.mxu0 0.0
    %v1998 = vand.u32 %v197, 4294901760
    %1999 = vmatpush1.msra.mxu0 %v1998
    %2000 = vmatprep.subr.mxu0 0.0
    %v2001 = vand.u32 %v198, 4294901760
    %2002 = vmatpush1.msra.mxu0 %v2001
    %2003 = vmatprep.subr.mxu0 0.0
    %v2004 = vand.u32 %v199, 4294901760
    %2005 = vmatpush1.msra.mxu0 %v2004
    %2006 = vmatprep.subr.mxu0 0.0
    %v2007 = vand.u32 %v200, 4294901760
    %2008 = vmatpush1.msra.mxu0 %v2007
    %2009 = vmatprep.subr.mxu0 0.0
    %v2010 = vand.u32 %v201, 4294901760
    %2011 = vmatpush1.msra.mxu0 %v2010
    %2012 = vmatprep.subr.mxu0 0.0
    %v2013 = vand.u32 %v202, 4294901760
    %2014 = vmatpush1.msra.mxu0 %v2013
    %2015 = vmatprep.subr.mxu0 0.0
    %v2016 = vand.u32 %v203, 4294901760
    %2017 = vmatpush1.msra.mxu0 %v2016
    %2018 = vmatprep.subr.mxu0 0.0
    %v2019 = vand.u32 %v204, 4294901760
    %2020 = vmatpush1.msra.mxu0 %v2019
    %2021 = vmatprep.subr.mxu0 0.0
    %v2022 = vand.u32 %v205, 4294901760
    %2023 = vmatpush1.msra.mxu0 %v2022
    %2024 = vmatprep.subr.mxu0 0.0
    %v2025 = vand.u32 %v206, 4294901760
    %2026 = vmatpush1.msra.mxu0 %v2025
    %2027 = vmatprep.subr.mxu0 0.0
    %v2028 = vand.u32 %v207, 4294901760
    %2029 = vmatpush1.msra.mxu0 %v2028
    %2030 = vmatprep.subr.mxu0 0.0
    %v2031 = vand.u32 %v208, 4294901760
    %2032 = vmatpush1.msra.mxu0 %v2031
    %2033 = vmatprep.subr.mxu0 0.0
    %v2034 = vand.u32 %v209, 4294901760
    %2035 = vmatpush1.msra.mxu0 %v2034
    %2036 = vmatprep.subr.mxu0 0.0
    %v2037 = vand.u32 %v210, 4294901760
    %2038 = vmatpush1.msra.mxu0 %v2037
    %2039 = vmatprep.subr.mxu0 0.0
    %v2040 = vand.u32 %v211, 4294901760
    %2041 = vmatpush1.msra.mxu0 %v2040
    %2042 = vmatprep.subr.mxu0 0.0
    %v2043 = vand.u32 %v212, 4294901760
    %2044 = vmatpush1.msra.mxu0 %v2043
    %2045 = vmatprep.subr.mxu0 0.0
    %v2046 = vand.u32 %v213, 4294901760
    %2047 = vmatpush1.msra.mxu0 %v2046
    %2048 = vmatprep.subr.mxu0 0.0
    %v2049 = vand.u32 %v214, 4294901760
    %2050 = vmatpush1.msra.mxu0 %v2049
    %2051 = vmatprep.subr.mxu0 0.0
    %v2052 = vand.u32 %v215, 4294901760
    %2053 = vmatpush1.msra.mxu0 %v2052
    %2054 = vmatprep.subr.mxu0 0.0
    %v2055 = vand.u32 %v216, 4294901760
    %2056 = vmatpush1.msra.mxu0 %v2055
    %2057 = vmatprep.subr.mxu0 0.0
    %v2058 = vand.u32 %v217, 4294901760
    %2059 = vmatpush1.msra.mxu0 %v2058
    %2060 = vmatprep.subr.mxu0 0.0
    %v2061 = vand.u32 %v218, 4294901760
    %2062 = vmatpush1.msra.mxu0 %v2061
    %2063 = vmatprep.subr.mxu0 0.0
    %v2064 = vand.u32 %v219, 4294901760
    %2065 = vmatpush1.msra.mxu0 %v2064
    %2066 = vmatprep.subr.mxu0 0.0
    %v2067 = vand.u32 %v220, 4294901760
    %2068 = vmatpush1.msra.mxu0 %v2067
    %2069 = vmatprep.subr.mxu0 0.0
    %v2070 = vand.u32 %v221, 4294901760
    %2071 = vmatpush1.msra.mxu0 %v2070
    %2072 = vmatprep.subr.mxu0 0.0
    %v2073 = vand.u32 %v222, 4294901760
    %2074 = vmatpush1.msra.mxu0 %v2073
    %v2075 = vand.u32 %v124, 4294901760
    %v2076 = vsub.f32 %v124, %v2075
    %v2077 = vand.u32 %v2076, 4294901760
    %v2078 = vsub.f32 %v2076, %v2077
    %v2079 = vand.u32 %v2078, 4294901760
    %2080 = vmatprep.mubr.f32.mxu0 %v2079
    %v2081 = vand.u32 %v123, 4294901760
    %v2082 = vsub.f32 %v123, %v2081
    %v2083 = vand.u32 %v2082, 4294901760
    %v2084 = vsub.f32 %v2082, %v2083
    %v2085 = vand.u32 %v2084, 4294901760
    %2086 = vmatmul.mubr.f32.gmra.mrb[0].mxu0 %v2085
    %v2087 = vpop.f32.mrb[0].mxu0
    %v2088 = vadd.f32 %v1976, %v2087
    %v2089 = vpop.f32.mrb[0].mxu0
    %2090 = vdwg.mxu0
    %2091 = vmatprep.subr.mxu0 0.0
    %v2092 = vand.u32 %v191, 4294901760
    %v2093 = vsub.f32 %v191, %v2092
    %v2094 = vand.u32 %v2093, 4294901760
    %v2095 = vsub.f32 %v2093, %v2094
    %v2096 = vand.u32 %v2095, 4294901760
    %2097 = vmatpush1.msra.mxu0 %v2096
    %2098 = vmatprep.subr.mxu0 0.0
    %v2099 = vand.u32 %v192, 4294901760
    %v2100 = vsub.f32 %v192, %v2099
    %v2101 = vand.u32 %v2100, 4294901760
    %v2102 = vsub.f32 %v2100, %v2101
    %v2103 = vand.u32 %v2102, 4294901760
    %2104 = vmatpush1.msra.mxu0 %v2103
    %2105 = vmatprep.subr.mxu0 0.0
    %v2106 = vand.u32 %v193, 4294901760
    %v2107 = vsub.f32 %v193, %v2106
    %v2108 = vand.u32 %v2107, 4294901760
    %v2109 = vsub.f32 %v2107, %v2108
    %v2110 = vand.u32 %v2109, 4294901760
    %2111 = vmatpush1.msra.mxu0 %v2110
    %2112 = vmatprep.subr.mxu0 0.0
    %v2113 = vand.u32 %v194, 4294901760
    %v2114 = vsub.f32 %v194, %v2113
    %v2115 = vand.u32 %v2114, 4294901760
    %v2116 = vsub.f32 %v2114, %v2115
    %v2117 = vand.u32 %v2116, 4294901760
    %2118 = vmatpush1.msra.mxu0 %v2117
    %2119 = vmatprep.subr.mxu0 0.0
    %v2120 = vand.u32 %v195, 4294901760
    %v2121 = vsub.f32 %v195, %v2120
    %v2122 = vand.u32 %v2121, 4294901760
    %v2123 = vsub.f32 %v2121, %v2122
    %v2124 = vand.u32 %v2123, 4294901760
    %2125 = vmatpush1.msra.mxu0 %v2124
    %2126 = vmatprep.subr.mxu0 0.0
    %v2127 = vand.u32 %v196, 4294901760
    %v2128 = vsub.f32 %v196, %v2127
    %v2129 = vand.u32 %v2128, 4294901760
    %v2130 = vsub.f32 %v2128, %v2129
    %v2131 = vand.u32 %v2130, 4294901760
    %2132 = vmatpush1.msra.mxu0 %v2131
    %2133 = vmatprep.subr.mxu0 0.0
    %v2134 = vand.u32 %v197, 4294901760
    %v2135 = vsub.f32 %v197, %v2134
    %v2136 = vand.u32 %v2135, 4294901760
    %v2137 = vsub.f32 %v2135, %v2136
    %v2138 = vand.u32 %v2137, 4294901760
    %2139 = vmatpush1.msra.mxu0 %v2138
    %2140 = vmatprep.subr.mxu0 0.0
    %v2141 = vand.u32 %v198, 4294901760
    %v2142 = vsub.f32 %v198, %v2141
    %v2143 = vand.u32 %v2142, 4294901760
    %v2144 = vsub.f32 %v2142, %v2143
    %v2145 = vand.u32 %v2144, 4294901760
    %2146 = vmatpush1.msra.mxu0 %v2145
    %2147 = vmatprep.subr.mxu0 0.0
    %v2148 = vand.u32 %v199, 4294901760
    %v2149 = vsub.f32 %v199, %v2148
    %v2150 = vand.u32 %v2149, 4294901760
    %v2151 = vsub.f32 %v2149, %v2150
    %v2152 = vand.u32 %v2151, 4294901760
    %2153 = vmatpush1.msra.mxu0 %v2152
    %2154 = vmatprep.subr.mxu0 0.0
    %v2155 = vand.u32 %v200, 4294901760
    %v2156 = vsub.f32 %v200, %v2155
    %v2157 = vand.u32 %v2156, 4294901760
    %v2158 = vsub.f32 %v2156, %v2157
    %v2159 = vand.u32 %v2158, 4294901760
    %2160 = vmatpush1.msra.mxu0 %v2159
    %2161 = vmatprep.subr.mxu0 0.0
    %v2162 = vand.u32 %v201, 4294901760
    %v2163 = vsub.f32 %v201, %v2162
    %v2164 = vand.u32 %v2163, 4294901760
    %v2165 = vsub.f32 %v2163, %v2164
    %v2166 = vand.u32 %v2165, 4294901760
    %2167 = vmatpush1.msra.mxu0 %v2166
    %2168 = vmatprep.subr.mxu0 0.0
    %v2169 = vand.u32 %v202, 4294901760
    %v2170 = vsub.f32 %v202, %v2169
    %v2171 = vand.u32 %v2170, 4294901760
    %v2172 = vsub.f32 %v2170, %v2171
    %v2173 = vand.u32 %v2172, 4294901760
    %2174 = vmatpush1.msra.mxu0 %v2173
    %2175 = vmatprep.subr.mxu0 0.0
    %v2176 = vand.u32 %v203, 4294901760
    %v2177 = vsub.f32 %v203, %v2176
    %v2178 = vand.u32 %v2177, 4294901760
    %v2179 = vsub.f32 %v2177, %v2178
    %v2180 = vand.u32 %v2179, 4294901760
    %2181 = vmatpush1.msra.mxu0 %v2180
    %2182 = vmatprep.subr.mxu0 0.0
    %v2183 = vand.u32 %v204, 4294901760
    %v2184 = vsub.f32 %v204, %v2183
    %v2185 = vand.u32 %v2184, 4294901760
    %v2186 = vsub.f32 %v2184, %v2185
    %v2187 = vand.u32 %v2186, 4294901760
    %2188 = vmatpush1.msra.mxu0 %v2187
    %2189 = vmatprep.subr.mxu0 0.0
    %v2190 = vand.u32 %v205, 4294901760
    %v2191 = vsub.f32 %v205, %v2190
    %v2192 = vand.u32 %v2191, 4294901760
    %v2193 = vsub.f32 %v2191, %v2192
    %v2194 = vand.u32 %v2193, 4294901760
    %2195 = vmatpush1.msra.mxu0 %v2194
    %2196 = vmatprep.subr.mxu0 0.0
    %v2197 = vand.u32 %v206, 4294901760
    %v2198 = vsub.f32 %v206, %v2197
    %v2199 = vand.u32 %v2198, 4294901760
    %v2200 = vsub.f32 %v2198, %v2199
    %v2201 = vand.u32 %v2200, 4294901760
    %2202 = vmatpush1.msra.mxu0 %v2201
    %2203 = vmatprep.subr.mxu0 0.0
    %v2204 = vand.u32 %v207, 4294901760
    %v2205 = vsub.f32 %v207, %v2204
    %v2206 = vand.u32 %v2205, 4294901760
    %v2207 = vsub.f32 %v2205, %v2206
    %v2208 = vand.u32 %v2207, 4294901760
    %2209 = vmatpush1.msra.mxu0 %v2208
    %2210 = vmatprep.subr.mxu0 0.0
    %v2211 = vand.u32 %v208, 4294901760
    %v2212 = vsub.f32 %v208, %v2211
    %v2213 = vand.u32 %v2212, 4294901760
    %v2214 = vsub.f32 %v2212, %v2213
    %v2215 = vand.u32 %v2214, 4294901760
    %2216 = vmatpush1.msra.mxu0 %v2215
    %2217 = vmatprep.subr.mxu0 0.0
    %v2218 = vand.u32 %v209, 4294901760
    %v2219 = vsub.f32 %v209, %v2218
    %v2220 = vand.u32 %v2219, 4294901760
    %v2221 = vsub.f32 %v2219, %v2220
    %v2222 = vand.u32 %v2221, 4294901760
    %2223 = vmatpush1.msra.mxu0 %v2222
    %2224 = vmatprep.subr.mxu0 0.0
    %v2225 = vand.u32 %v210, 4294901760
    %v2226 = vsub.f32 %v210, %v2225
    %v2227 = vand.u32 %v2226, 4294901760
    %v2228 = vsub.f32 %v2226, %v2227
    %v2229 = vand.u32 %v2228, 4294901760
    %2230 = vmatpush1.msra.mxu0 %v2229
    %2231 = vmatprep.subr.mxu0 0.0
    %v2232 = vand.u32 %v211, 4294901760
    %v2233 = vsub.f32 %v211, %v2232
    %v2234 = vand.u32 %v2233, 4294901760
    %v2235 = vsub.f32 %v2233, %v2234
    %v2236 = vand.u32 %v2235, 4294901760
    %2237 = vmatpush1.msra.mxu0 %v2236
    %2238 = vmatprep.subr.mxu0 0.0
    %v2239 = vand.u32 %v212, 4294901760
    %v2240 = vsub.f32 %v212, %v2239
    %v2241 = vand.u32 %v2240, 4294901760
    %v2242 = vsub.f32 %v2240, %v2241
    %v2243 = vand.u32 %v2242, 4294901760
    %2244 = vmatpush1.msra.mxu0 %v2243
    %2245 = vmatprep.subr.mxu0 0.0
    %v2246 = vand.u32 %v213, 4294901760
    %v2247 = vsub.f32 %v213, %v2246
    %v2248 = vand.u32 %v2247, 4294901760
    %v2249 = vsub.f32 %v2247, %v2248
    %v2250 = vand.u32 %v2249, 4294901760
    %2251 = vmatpush1.msra.mxu0 %v2250
    %2252 = vmatprep.subr.mxu0 0.0
    %v2253 = vand.u32 %v214, 4294901760
    %v2254 = vsub.f32 %v214, %v2253
    %v2255 = vand.u32 %v2254, 4294901760
    %v2256 = vsub.f32 %v2254, %v2255
    %v2257 = vand.u32 %v2256, 4294901760
    %2258 = vmatpush1.msra.mxu0 %v2257
    %2259 = vmatprep.subr.mxu0 0.0
    %v2260 = vand.u32 %v215, 4294901760
    %v2261 = vsub.f32 %v215, %v2260
    %v2262 = vand.u32 %v2261, 4294901760
    %v2263 = vsub.f32 %v2261, %v2262
    %v2264 = vand.u32 %v2263, 4294901760
    %2265 = vmatpush1.msra.mxu0 %v2264
    %2266 = vmatprep.subr.mxu0 0.0
    %v2267 = vand.u32 %v216, 4294901760
    %v2268 = vsub.f32 %v216, %v2267
    %v2269 = vand.u32 %v2268, 4294901760
    %v2270 = vsub.f32 %v2268, %v2269
    %v2271 = vand.u32 %v2270, 4294901760
    %2272 = vmatpush1.msra.mxu0 %v2271
    %2273 = vmatprep.subr.mxu0 0.0
    %v2274 = vand.u32 %v217, 4294901760
    %v2275 = vsub.f32 %v217, %v2274
    %v2276 = vand.u32 %v2275, 4294901760
    %v2277 = vsub.f32 %v2275, %v2276
    %v2278 = vand.u32 %v2277, 4294901760
    %2279 = vmatpush1.msra.mxu0 %v2278
    %2280 = vmatprep.subr.mxu0 0.0
    %v2281 = vand.u32 %v218, 4294901760
    %v2282 = vsub.f32 %v218, %v2281
    %v2283 = vand.u32 %v2282, 4294901760
    %v2284 = vsub.f32 %v2282, %v2283
    %v2285 = vand.u32 %v2284, 4294901760
    %2286 = vmatpush1.msra.mxu0 %v2285
    %2287 = vmatprep.subr.mxu0 0.0
    %v2288 = vand.u32 %v219, 4294901760
    %v2289 = vsub.f32 %v219, %v2288
    %v2290 = vand.u32 %v2289, 4294901760
    %v2291 = vsub.f32 %v2289, %v2290
    %v2292 = vand.u32 %v2291, 4294901760
    %2293 = vmatpush1.msra.mxu0 %v2292
    %2294 = vmatprep.subr.mxu0 0.0
    %v2295 = vand.u32 %v220, 4294901760
    %v2296 = vsub.f32 %v220, %v2295
    %v2297 = vand.u32 %v2296, 4294901760
    %v2298 = vsub.f32 %v2296, %v2297
    %v2299 = vand.u32 %v2298, 4294901760
    %2300 = vmatpush1.msra.mxu0 %v2299
    %2301 = vmatprep.subr.mxu0 0.0
    %v2302 = vand.u32 %v221, 4294901760
    %v2303 = vsub.f32 %v221, %v2302
    %v2304 = vand.u32 %v2303, 4294901760
    %v2305 = vsub.f32 %v2303, %v2304
    %v2306 = vand.u32 %v2305, 4294901760
    %2307 = vmatpush1.msra.mxu0 %v2306
    %2308 = vmatprep.subr.mxu0 0.0
    %v2309 = vand.u32 %v222, 4294901760
    %v2310 = vsub.f32 %v222, %v2309
    %v2311 = vand.u32 %v2310, 4294901760
    %v2312 = vsub.f32 %v2310, %v2311
    %v2313 = vand.u32 %v2312, 4294901760
    %2314 = vmatpush1.msra.mxu0 %v2313
    %v2315 = vand.u32 %v124, 4294901760
    %2316 = vmatprep.mubr.f32.mxu0 %v2315
    %v2317 = vand.u32 %v123, 4294901760
    %2318 = vmatmul.mubr.f32.gmra.mrb[0].mxu0 %v2317
    %v2319 = vpop.f32.mrb[0].mxu0
    %v2320 = vadd.f32 %v2088, %v2319
    %v2321 = vpop.f32.mrb[0].mxu0
    %2322 = vdwg.mxu0
    %2323 = vmatprep.subr.mxu0 0.0
    %v2324 = vand.u32 %v191, 4294901760
    %v2325 = vsub.f32 %v191, %v2324
    %2326 = vmatpush1.msra.mxu0 %v2325
    %2327 = vmatprep.subr.mxu0 0.0
    %v2328 = vand.u32 %v192, 4294901760
    %v2329 = vsub.f32 %v192, %v2328
    %2330 = vmatpush1.msra.mxu0 %v2329
    %2331 = vmatprep.subr.mxu0 0.0
    %v2332 = vand.u32 %v193, 4294901760
    %v2333 = vsub.f32 %v193, %v2332
    %2334 = vmatpush1.msra.mxu0 %v2333
    %2335 = vmatprep.subr.mxu0 0.0
    %v2336 = vand.u32 %v194, 4294901760
    %v2337 = vsub.f32 %v194, %v2336
    %2338 = vmatpush1.msra.mxu0 %v2337
    %2339 = vmatprep.subr.mxu0 0.0
    %v2340 = vand.u32 %v195, 4294901760
    %v2341 = vsub.f32 %v195, %v2340
    %2342 = vmatpush1.msra.mxu0 %v2341
    %2343 = vmatprep.subr.mxu0 0.0
    %v2344 = vand.u32 %v196, 4294901760
    %v2345 = vsub.f32 %v196, %v2344
    %2346 = vmatpush1.msra.mxu0 %v2345
    %2347 = vmatprep.subr.mxu0 0.0
    %v2348 = vand.u32 %v197, 4294901760
    %v2349 = vsub.f32 %v197, %v2348
    %2350 = vmatpush1.msra.mxu0 %v2349
    %2351 = vmatprep.subr.mxu0 0.0
    %v2352 = vand.u32 %v198, 4294901760
    %v2353 = vsub.f32 %v198, %v2352
    %2354 = vmatpush1.msra.mxu0 %v2353
    %2355 = vmatprep.subr.mxu0 0.0
    %v2356 = vand.u32 %v199, 4294901760
    %v2357 = vsub.f32 %v199, %v2356
    %2358 = vmatpush1.msra.mxu0 %v2357
    %2359 = vmatprep.subr.mxu0 0.0
    %v2360 = vand.u32 %v200, 4294901760
    %v2361 = vsub.f32 %v200, %v2360
    %2362 = vmatpush1.msra.mxu0 %v2361
    %2363 = vmatprep.subr.mxu0 0.0
    %v2364 = vand.u32 %v201, 4294901760
    %v2365 = vsub.f32 %v201, %v2364
    %2366 = vmatpush1.msra.mxu0 %v2365
    %2367 = vmatprep.subr.mxu0 0.0
    %v2368 = vand.u32 %v202, 4294901760
    %v2369 = vsub.f32 %v202, %v2368
    %2370 = vmatpush1.msra.mxu0 %v2369
    %2371 = vmatprep.subr.mxu0 0.0
    %v2372 = vand.u32 %v203, 4294901760
    %v2373 = vsub.f32 %v203, %v2372
    %2374 = vmatpush1.msra.mxu0 %v2373
    %2375 = vmatprep.subr.mxu0 0.0
    %v2376 = vand.u32 %v204, 4294901760
    %v2377 = vsub.f32 %v204, %v2376
    %2378 = vmatpush1.msra.mxu0 %v2377
    %2379 = vmatprep.subr.mxu0 0.0
    %v2380 = vand.u32 %v205, 4294901760
    %v2381 = vsub.f32 %v205, %v2380
    %2382 = vmatpush1.msra.mxu0 %v2381
    %2383 = vmatprep.subr.mxu0 0.0
    %v2384 = vand.u32 %v206, 4294901760
    %v2385 = vsub.f32 %v206, %v2384
    %2386 = vmatpush1.msra.mxu0 %v2385
    %2387 = vmatprep.subr.mxu0 0.0
    %v2388 = vand.u32 %v207, 4294901760
    %v2389 = vsub.f32 %v207, %v2388
    %2390 = vmatpush1.msra.mxu0 %v2389
    %2391 = vmatprep.subr.mxu0 0.0
    %v2392 = vand.u32 %v208, 4294901760
    %v2393 = vsub.f32 %v208, %v2392
    %2394 = vmatpush1.msra.mxu0 %v2393
    %2395 = vmatprep.subr.mxu0 0.0
    %v2396 = vand.u32 %v209, 4294901760
    %v2397 = vsub.f32 %v209, %v2396
    %2398 = vmatpush1.msra.mxu0 %v2397
    %2399 = vmatprep.subr.mxu0 0.0
    %v2400 = vand.u32 %v210, 4294901760
    %v2401 = vsub.f32 %v210, %v2400
    %2402 = vmatpush1.msra.mxu0 %v2401
    %2403 = vmatprep.subr.mxu0 0.0
    %v2404 = vand.u32 %v211, 4294901760
    %v2405 = vsub.f32 %v211, %v2404
    %2406 = vmatpush1.msra.mxu0 %v2405
    %2407 = vmatprep.subr.mxu0 0.0
    %v2408 = vand.u32 %v212, 4294901760
    %v2409 = vsub.f32 %v212, %v2408
    %2410 = vmatpush1.msra.mxu0 %v2409
    %2411 = vmatprep.subr.mxu0 0.0
    %v2412 = vand.u32 %v213, 4294901760
    %v2413 = vsub.f32 %v213, %v2412
    %2414 = vmatpush1.msra.mxu0 %v2413
    %2415 = vmatprep.subr.mxu0 0.0
    %v2416 = vand.u32 %v214, 4294901760
    %v2417 = vsub.f32 %v214, %v2416
    %2418 = vmatpush1.msra.mxu0 %v2417
    %2419 = vmatprep.subr.mxu0 0.0
    %v2420 = vand.u32 %v215, 4294901760
    %v2421 = vsub.f32 %v215, %v2420
    %2422 = vmatpush1.msra.mxu0 %v2421
    %2423 = vmatprep.subr.mxu0 0.0
    %v2424 = vand.u32 %v216, 4294901760
    %v2425 = vsub.f32 %v216, %v2424
    %2426 = vmatpush1.msra.mxu0 %v2425
    %2427 = vmatprep.subr.mxu0 0.0
    %v2428 = vand.u32 %v217, 4294901760
    %v2429 = vsub.f32 %v217, %v2428
    %2430 = vmatpush1.msra.mxu0 %v2429
    %2431 = vmatprep.subr.mxu0 0.0
    %v2432 = vand.u32 %v218, 4294901760
    %v2433 = vsub.f32 %v218, %v2432
    %2434 = vmatpush1.msra.mxu0 %v2433
    %2435 = vmatprep.subr.mxu0 0.0
    %v2436 = vand.u32 %v219, 4294901760
    %v2437 = vsub.f32 %v219, %v2436
    %2438 = vmatpush1.msra.mxu0 %v2437
    %2439 = vmatprep.subr.mxu0 0.0
    %v2440 = vand.u32 %v220, 4294901760
    %v2441 = vsub.f32 %v220, %v2440
    %2442 = vmatpush1.msra.mxu0 %v2441
    %2443 = vmatprep.subr.mxu0 0.0
    %v2444 = vand.u32 %v221, 4294901760
    %v2445 = vsub.f32 %v221, %v2444
    %2446 = vmatpush1.msra.mxu0 %v2445
    %2447 = vmatprep.subr.mxu0 0.0
    %v2448 = vand.u32 %v222, 4294901760
    %v2449 = vsub.f32 %v222, %v2448
    %2450 = vmatpush1.msra.mxu0 %v2449
    %v2451 = vand.u32 %v124, 4294901760
    %v2452 = vsub.f32 %v124, %v2451
    %2453 = vmatprep.mubr.f32.mxu0 %v2452
    %v2454 = vand.u32 %v123, 4294901760
    %v2455 = vsub.f32 %v123, %v2454
    %2456 = vmatmul.mubr.f32.gmra.mrb[0].mxu0 %v2455
    %v2457 = vpop.f32.mrb[0].mxu0
    %v2458 = vadd.f32 %v2320, %v2457
    %v2459 = vpop.f32.mrb[0].mxu0
    %2460 = vdwg.mxu0
    %2461 = vmatprep.subr.mxu0 0.0
    %v2462 = vand.u32 %v191, 4294901760
    %2463 = vmatpush1.msra.mxu0 %v2462
    %2464 = vmatprep.subr.mxu0 0.0
    %v2465 = vand.u32 %v192, 4294901760
    %2466 = vmatpush1.msra.mxu0 %v2465
    %2467 = vmatprep.subr.mxu0 0.0
    %v2468 = vand.u32 %v193, 4294901760
    %2469 = vmatpush1.msra.mxu0 %v2468
    %2470 = vmatprep.subr.mxu0 0.0
    %v2471 = vand.u32 %v194, 4294901760
    %2472 = vmatpush1.msra.mxu0 %v2471
    %2473 = vmatprep.subr.mxu0 0.0
    %v2474 = vand.u32 %v195, 4294901760
    %2475 = vmatpush1.msra.mxu0 %v2474
    %2476 = vmatprep.subr.mxu0 0.0
    %v2477 = vand.u32 %v196, 4294901760
    %2478 = vmatpush1.msra.mxu0 %v2477
    %2479 = vmatprep.subr.mxu0 0.0
    %v2480 = vand.u32 %v197, 4294901760
    %2481 = vmatpush1.msra.mxu0 %v2480
    %2482 = vmatprep.subr.mxu0 0.0
    %v2483 = vand.u32 %v198, 4294901760
    %2484 = vmatpush1.msra.mxu0 %v2483
    %2485 = vmatprep.subr.mxu0 0.0
    %v2486 = vand.u32 %v199, 4294901760
    %2487 = vmatpush1.msra.mxu0 %v2486
    %2488 = vmatprep.subr.mxu0 0.0
    %v2489 = vand.u32 %v200, 4294901760
    %2490 = vmatpush1.msra.mxu0 %v2489
    %2491 = vmatprep.subr.mxu0 0.0
    %v2492 = vand.u32 %v201, 4294901760
    %2493 = vmatpush1.msra.mxu0 %v2492
    %2494 = vmatprep.subr.mxu0 0.0
    %v2495 = vand.u32 %v202, 4294901760
    %2496 = vmatpush1.msra.mxu0 %v2495
    %2497 = vmatprep.subr.mxu0 0.0
    %v2498 = vand.u32 %v203, 4294901760
    %2499 = vmatpush1.msra.mxu0 %v2498
    %2500 = vmatprep.subr.mxu0 0.0
    %v2501 = vand.u32 %v204, 4294901760
    %2502 = vmatpush1.msra.mxu0 %v2501
    %2503 = vmatprep.subr.mxu0 0.0
    %v2504 = vand.u32 %v205, 4294901760
    %2505 = vmatpush1.msra.mxu0 %v2504
    %2506 = vmatprep.subr.mxu0 0.0
    %v2507 = vand.u32 %v206, 4294901760
    %2508 = vmatpush1.msra.mxu0 %v2507
    %2509 = vmatprep.subr.mxu0 0.0
    %v2510 = vand.u32 %v207, 4294901760
    %2511 = vmatpush1.msra.mxu0 %v2510
    %2512 = vmatprep.subr.mxu0 0.0
    %v2513 = vand.u32 %v208, 4294901760
    %2514 = vmatpush1.msra.mxu0 %v2513
    %2515 = vmatprep.subr.mxu0 0.0
    %v2516 = vand.u32 %v209, 4294901760
    %2517 = vmatpush1.msra.mxu0 %v2516
    %2518 = vmatprep.subr.mxu0 0.0
    %v2519 = vand.u32 %v210, 4294901760
    %2520 = vmatpush1.msra.mxu0 %v2519
    %2521 = vmatprep.subr.mxu0 0.0
    %v2522 = vand.u32 %v211, 4294901760
    %2523 = vmatpush1.msra.mxu0 %v2522
    %2524 = vmatprep.subr.mxu0 0.0
    %v2525 = vand.u32 %v212, 4294901760
    %2526 = vmatpush1.msra.mxu0 %v2525
    %2527 = vmatprep.subr.mxu0 0.0
    %v2528 = vand.u32 %v213, 4294901760
    %2529 = vmatpush1.msra.mxu0 %v2528
    %2530 = vmatprep.subr.mxu0 0.0
    %v2531 = vand.u32 %v214, 4294901760
    %2532 = vmatpush1.msra.mxu0 %v2531
    %2533 = vmatprep.subr.mxu0 0.0
    %v2534 = vand.u32 %v215, 4294901760
    %2535 = vmatpush1.msra.mxu0 %v2534
    %2536 = vmatprep.subr.mxu0 0.0
    %v2537 = vand.u32 %v216, 4294901760
    %2538 = vmatpush1.msra.mxu0 %v2537
    %2539 = vmatprep.subr.mxu0 0.0
    %v2540 = vand.u32 %v217, 4294901760
    %2541 = vmatpush1.msra.mxu0 %v2540
    %2542 = vmatprep.subr.mxu0 0.0
    %v2543 = vand.u32 %v218, 4294901760
    %2544 = vmatpush1.msra.mxu0 %v2543
    %2545 = vmatprep.subr.mxu0 0.0
    %v2546 = vand.u32 %v219, 4294901760
    %2547 = vmatpush1.msra.mxu0 %v2546
    %2548 = vmatprep.subr.mxu0 0.0
    %v2549 = vand.u32 %v220, 4294901760
    %2550 = vmatpush1.msra.mxu0 %v2549
    %2551 = vmatprep.subr.mxu0 0.0
    %v2552 = vand.u32 %v221, 4294901760
    %2553 = vmatpush1.msra.mxu0 %v2552
    %2554 = vmatprep.subr.mxu0 0.0
    %v2555 = vand.u32 %v222, 4294901760
    %2556 = vmatpush1.msra.mxu0 %v2555
    %v2557 = vand.u32 %v124, 4294901760
    %v2558 = vsub.f32 %v124, %v2557
    %v2559 = vand.u32 %v2558, 4294901760
    %2560 = vmatprep.mubr.f32.mxu0 %v2559
    %v2561 = vand.u32 %v123, 4294901760
    %v2562 = vsub.f32 %v123, %v2561
    %v2563 = vand.u32 %v2562, 4294901760
    %2564 = vmatmul.mubr.f32.gmra.mrb[0].mxu0 %v2563
    %v2565 = vpop.f32.mrb[0].mxu0
    %v2566 = vadd.f32 %v2458, %v2565
    %v2567 = vpop.f32.mrb[0].mxu0
    %2568 = vdwg.mxu0
    %2569 = vmatprep.subr.mxu0 0.0
    %v2570 = vand.u32 %v191, 4294901760
    %v2571 = vsub.f32 %v191, %v2570
    %v2572 = vand.u32 %v2571, 4294901760
    %2573 = vmatpush1.msra.mxu0 %v2572
    %2574 = vmatprep.subr.mxu0 0.0
    %v2575 = vand.u32 %v192, 4294901760
    %v2576 = vsub.f32 %v192, %v2575
    %v2577 = vand.u32 %v2576, 4294901760
    %2578 = vmatpush1.msra.mxu0 %v2577
    %2579 = vmatprep.subr.mxu0 0.0
    %v2580 = vand.u32 %v193, 4294901760
    %v2581 = vsub.f32 %v193, %v2580
    %v2582 = vand.u32 %v2581, 4294901760
    %2583 = vmatpush1.msra.mxu0 %v2582
    %2584 = vmatprep.subr.mxu0 0.0
    %v2585 = vand.u32 %v194, 4294901760
    %v2586 = vsub.f32 %v194, %v2585
    %v2587 = vand.u32 %v2586, 4294901760
    %2588 = vmatpush1.msra.mxu0 %v2587
    %2589 = vmatprep.subr.mxu0 0.0
    %v2590 = vand.u32 %v195, 4294901760
    %v2591 = vsub.f32 %v195, %v2590
    %v2592 = vand.u32 %v2591, 4294901760
    %2593 = vmatpush1.msra.mxu0 %v2592
    %2594 = vmatprep.subr.mxu0 0.0
    %v2595 = vand.u32 %v196, 4294901760
    %v2596 = vsub.f32 %v196, %v2595
    %v2597 = vand.u32 %v2596, 4294901760
    %2598 = vmatpush1.msra.mxu0 %v2597
    %2599 = vmatprep.subr.mxu0 0.0
    %v2600 = vand.u32 %v197, 4294901760
    %v2601 = vsub.f32 %v197, %v2600
    %v2602 = vand.u32 %v2601, 4294901760
    %2603 = vmatpush1.msra.mxu0 %v2602
    %2604 = vmatprep.subr.mxu0 0.0
    %v2605 = vand.u32 %v198, 4294901760
    %v2606 = vsub.f32 %v198, %v2605
    %v2607 = vand.u32 %v2606, 4294901760
    %2608 = vmatpush1.msra.mxu0 %v2607
    %2609 = vmatprep.subr.mxu0 0.0
    %v2610 = vand.u32 %v199, 4294901760
    %v2611 = vsub.f32 %v199, %v2610
    %v2612 = vand.u32 %v2611, 4294901760
    %2613 = vmatpush1.msra.mxu0 %v2612
    %2614 = vmatprep.subr.mxu0 0.0
    %v2615 = vand.u32 %v200, 4294901760
    %v2616 = vsub.f32 %v200, %v2615
    %v2617 = vand.u32 %v2616, 4294901760
    %2618 = vmatpush1.msra.mxu0 %v2617
    %2619 = vmatprep.subr.mxu0 0.0
    %v2620 = vand.u32 %v201, 4294901760
    %v2621 = vsub.f32 %v201, %v2620
    %v2622 = vand.u32 %v2621, 4294901760
    %2623 = vmatpush1.msra.mxu0 %v2622
    %2624 = vmatprep.subr.mxu0 0.0
    %v2625 = vand.u32 %v202, 4294901760
    %v2626 = vsub.f32 %v202, %v2625
    %v2627 = vand.u32 %v2626, 4294901760
    %2628 = vmatpush1.msra.mxu0 %v2627
    %2629 = vmatprep.subr.mxu0 0.0
    %v2630 = vand.u32 %v203, 4294901760
    %v2631 = vsub.f32 %v203, %v2630
    %v2632 = vand.u32 %v2631, 4294901760
    %2633 = vmatpush1.msra.mxu0 %v2632
    %2634 = vmatprep.subr.mxu0 0.0
    %v2635 = vand.u32 %v204, 4294901760
    %v2636 = vsub.f32 %v204, %v2635
    %v2637 = vand.u32 %v2636, 4294901760
    %2638 = vmatpush1.msra.mxu0 %v2637
    %2639 = vmatprep.subr.mxu0 0.0
    %v2640 = vand.u32 %v205, 4294901760
    %v2641 = vsub.f32 %v205, %v2640
    %v2642 = vand.u32 %v2641, 4294901760
    %2643 = vmatpush1.msra.mxu0 %v2642
    %2644 = vmatprep.subr.mxu0 0.0
    %v2645 = vand.u32 %v206, 4294901760
    %v2646 = vsub.f32 %v206, %v2645
    %v2647 = vand.u32 %v2646, 4294901760
    %2648 = vmatpush1.msra.mxu0 %v2647
    %2649 = vmatprep.subr.mxu0 0.0
    %v2650 = vand.u32 %v207, 4294901760
    %v2651 = vsub.f32 %v207, %v2650
    %v2652 = vand.u32 %v2651, 4294901760
    %2653 = vmatpush1.msra.mxu0 %v2652
    %2654 = vmatprep.subr.mxu0 0.0
    %v2655 = vand.u32 %v208, 4294901760
    %v2656 = vsub.f32 %v208, %v2655
    %v2657 = vand.u32 %v2656, 4294901760
    %2658 = vmatpush1.msra.mxu0 %v2657
    %2659 = vmatprep.subr.mxu0 0.0
    %v2660 = vand.u32 %v209, 4294901760
    %v2661 = vsub.f32 %v209, %v2660
    %v2662 = vand.u32 %v2661, 4294901760
    %2663 = vmatpush1.msra.mxu0 %v2662
    %2664 = vmatprep.subr.mxu0 0.0
    %v2665 = vand.u32 %v210, 4294901760
    %v2666 = vsub.f32 %v210, %v2665
    %v2667 = vand.u32 %v2666, 4294901760
    %2668 = vmatpush1.msra.mxu0 %v2667
    %2669 = vmatprep.subr.mxu0 0.0
    %v2670 = vand.u32 %v211, 4294901760
    %v2671 = vsub.f32 %v211, %v2670
    %v2672 = vand.u32 %v2671, 4294901760
    %2673 = vmatpush1.msra.mxu0 %v2672
    %2674 = vmatprep.subr.mxu0 0.0
    %v2675 = vand.u32 %v212, 4294901760
    %v2676 = vsub.f32 %v212, %v2675
    %v2677 = vand.u32 %v2676, 4294901760
    %2678 = vmatpush1.msra.mxu0 %v2677
    %2679 = vmatprep.subr.mxu0 0.0
    %v2680 = vand.u32 %v213, 4294901760
    %v2681 = vsub.f32 %v213, %v2680
    %v2682 = vand.u32 %v2681, 4294901760
    %2683 = vmatpush1.msra.mxu0 %v2682
    %2684 = vmatprep.subr.mxu0 0.0
    %v2685 = vand.u32 %v214, 4294901760
    %v2686 = vsub.f32 %v214, %v2685
    %v2687 = vand.u32 %v2686, 4294901760
    %2688 = vmatpush1.msra.mxu0 %v2687
    %2689 = vmatprep.subr.mxu0 0.0
    %v2690 = vand.u32 %v215, 4294901760
    %v2691 = vsub.f32 %v215, %v2690
    %v2692 = vand.u32 %v2691, 4294901760
    %2693 = vmatpush1.msra.mxu0 %v2692
    %2694 = vmatprep.subr.mxu0 0.0
    %v2695 = vand.u32 %v216, 4294901760
    %v2696 = vsub.f32 %v216, %v2695
    %v2697 = vand.u32 %v2696, 4294901760
    %2698 = vmatpush1.msra.mxu0 %v2697
    %2699 = vmatprep.subr.mxu0 0.0
    %v2700 = vand.u32 %v217, 4294901760
    %v2701 = vsub.f32 %v217, %v2700
    %v2702 = vand.u32 %v2701, 4294901760
    %2703 = vmatpush1.msra.mxu0 %v2702
    %2704 = vmatprep.subr.mxu0 0.0
    %v2705 = vand.u32 %v218, 4294901760
    %v2706 = vsub.f32 %v218, %v2705
    %v2707 = vand.u32 %v2706, 4294901760
    %2708 = vmatpush1.msra.mxu0 %v2707
    %2709 = vmatprep.subr.mxu0 0.0
    %v2710 = vand.u32 %v219, 4294901760
    %v2711 = vsub.f32 %v219, %v2710
    %v2712 = vand.u32 %v2711, 4294901760
    %2713 = vmatpush1.msra.mxu0 %v2712
    %2714 = vmatprep.subr.mxu0 0.0
    %v2715 = vand.u32 %v220, 4294901760
    %v2716 = vsub.f32 %v220, %v2715
    %v2717 = vand.u32 %v2716, 4294901760
    %2718 = vmatpush1.msra.mxu0 %v2717
    %2719 = vmatprep.subr.mxu0 0.0
    %v2720 = vand.u32 %v221, 4294901760
    %v2721 = vsub.f32 %v221, %v2720
    %v2722 = vand.u32 %v2721, 4294901760
    %2723 = vmatpush1.msra.mxu0 %v2722
    %2724 = vmatprep.subr.mxu0 0.0
    %v2725 = vand.u32 %v222, 4294901760
    %v2726 = vsub.f32 %v222, %v2725
    %v2727 = vand.u32 %v2726, 4294901760
    %2728 = vmatpush1.msra.mxu0 %v2727
    %v2729 = vand.u32 %v124, 4294901760
    %2730 = vmatprep.mubr.f32.mxu0 %v2729
    %v2731 = vand.u32 %v123, 4294901760
    %2732 = vmatmul.mubr.f32.gmra.mrb[0].mxu0 %v2731
    %v2733 = vpop.f32.mrb[0].mxu0
    %v2734 = vadd.f32 %v2566, %v2733
    %v2735 = vpop.f32.mrb[0].mxu0
    %2736 = vdwg.mxu0
    %2737 = vmatprep.subr.mxu0 0.0
    %v2738 = vand.u32 %v191, 4294901760
    %2739 = vmatpush1.msra.mxu0 %v2738
    %2740 = vmatprep.subr.mxu0 0.0
    %v2741 = vand.u32 %v192, 4294901760
    %2742 = vmatpush1.msra.mxu0 %v2741
    %2743 = vmatprep.subr.mxu0 0.0
    %v2744 = vand.u32 %v193, 4294901760
    %2745 = vmatpush1.msra.mxu0 %v2744
    %2746 = vmatprep.subr.mxu0 0.0
    %v2747 = vand.u32 %v194, 4294901760
    %2748 = vmatpush1.msra.mxu0 %v2747
    %2749 = vmatprep.subr.mxu0 0.0
    %v2750 = vand.u32 %v195, 4294901760
    %2751 = vmatpush1.msra.mxu0 %v2750
    %2752 = vmatprep.subr.mxu0 0.0
    %v2753 = vand.u32 %v196, 4294901760
    %2754 = vmatpush1.msra.mxu0 %v2753
    %2755 = vmatprep.subr.mxu0 0.0
    %v2756 = vand.u32 %v197, 4294901760
    %2757 = vmatpush1.msra.mxu0 %v2756
    %2758 = vmatprep.subr.mxu0 0.0
    %v2759 = vand.u32 %v198, 4294901760
    %2760 = vmatpush1.msra.mxu0 %v2759
    %2761 = vmatprep.subr.mxu0 0.0
    %v2762 = vand.u32 %v199, 4294901760
    %2763 = vmatpush1.msra.mxu0 %v2762
    %2764 = vmatprep.subr.mxu0 0.0
    %v2765 = vand.u32 %v200, 4294901760
    %2766 = vmatpush1.msra.mxu0 %v2765
    %2767 = vmatprep.subr.mxu0 0.0
    %v2768 = vand.u32 %v201, 4294901760
    %2769 = vmatpush1.msra.mxu0 %v2768
    %2770 = vmatprep.subr.mxu0 0.0
    %v2771 = vand.u32 %v202, 4294901760
    %2772 = vmatpush1.msra.mxu0 %v2771
    %2773 = vmatprep.subr.mxu0 0.0
    %v2774 = vand.u32 %v203, 4294901760
    %2775 = vmatpush1.msra.mxu0 %v2774
    %2776 = vmatprep.subr.mxu0 0.0
    %v2777 = vand.u32 %v204, 4294901760
    %2778 = vmatpush1.msra.mxu0 %v2777
    %2779 = vmatprep.subr.mxu0 0.0
    %v2780 = vand.u32 %v205, 4294901760
    %2781 = vmatpush1.msra.mxu0 %v2780
    %2782 = vmatprep.subr.mxu0 0.0
    %v2783 = vand.u32 %v206, 4294901760
    %2784 = vmatpush1.msra.mxu0 %v2783
    %2785 = vmatprep.subr.mxu0 0.0
    %v2786 = vand.u32 %v207, 4294901760
    %2787 = vmatpush1.msra.mxu0 %v2786
    %2788 = vmatprep.subr.mxu0 0.0
    %v2789 = vand.u32 %v208, 4294901760
    %2790 = vmatpush1.msra.mxu0 %v2789
    %2791 = vmatprep.subr.mxu0 0.0
    %v2792 = vand.u32 %v209, 4294901760
    %2793 = vmatpush1.msra.mxu0 %v2792
    %2794 = vmatprep.subr.mxu0 0.0
    %v2795 = vand.u32 %v210, 4294901760
    %2796 = vmatpush1.msra.mxu0 %v2795
    %2797 = vmatprep.subr.mxu0 0.0
    %v2798 = vand.u32 %v211, 4294901760
    %2799 = vmatpush1.msra.mxu0 %v2798
    %2800 = vmatprep.subr.mxu0 0.0
    %v2801 = vand.u32 %v212, 4294901760
    %2802 = vmatpush1.msra.mxu0 %v2801
    %2803 = vmatprep.subr.mxu0 0.0
    %v2804 = vand.u32 %v213, 4294901760
    %2805 = vmatpush1.msra.mxu0 %v2804
    %2806 = vmatprep.subr.mxu0 0.0
    %v2807 = vand.u32 %v214, 4294901760
    %2808 = vmatpush1.msra.mxu0 %v2807
    %2809 = vmatprep.subr.mxu0 0.0
    %v2810 = vand.u32 %v215, 4294901760
    %2811 = vmatpush1.msra.mxu0 %v2810
    %2812 = vmatprep.subr.mxu0 0.0
    %v2813 = vand.u32 %v216, 4294901760
    %2814 = vmatpush1.msra.mxu0 %v2813
    %2815 = vmatprep.subr.mxu0 0.0
    %v2816 = vand.u32 %v217, 4294901760
    %2817 = vmatpush1.msra.mxu0 %v2816
    %2818 = vmatprep.subr.mxu0 0.0
    %v2819 = vand.u32 %v218, 4294901760
    %2820 = vmatpush1.msra.mxu0 %v2819
    %2821 = vmatprep.subr.mxu0 0.0
    %v2822 = vand.u32 %v219, 4294901760
    %2823 = vmatpush1.msra.mxu0 %v2822
    %2824 = vmatprep.subr.mxu0 0.0
    %v2825 = vand.u32 %v220, 4294901760
    %2826 = vmatpush1.msra.mxu0 %v2825
    %2827 = vmatprep.subr.mxu0 0.0
    %v2828 = vand.u32 %v221, 4294901760
    %2829 = vmatpush1.msra.mxu0 %v2828
    %2830 = vmatprep.subr.mxu0 0.0
    %v2831 = vand.u32 %v222, 4294901760
    %2832 = vmatpush1.msra.mxu0 %v2831
    %v2833 = vand.u32 %v124, 4294901760
    %2834 = vmatprep.mubr.f32.mxu0 %v2833
    %v2835 = vand.u32 %v123, 4294901760
    %2836 = vmatmul.mubr.f32.gmra.mrb[0].mxu0 %v2835
    %v2837 = vpop.f32.mrb[0].mxu0
    %v2838 = vadd.f32 %v2734, %v2837
    %v2839 = vpop.f32.mrb[0].mxu0
    %2840 = vdwg.mxu0
    %2841 = vmatprep.subr.mxu0 0.0
    %v2842 = vand.u32 %v223, 4294901760
    %2843 = vmatpush1.msra.mxu0 %v2842
    %2844 = vmatprep.subr.mxu0 0.0
    %v2845 = vand.u32 %v224, 4294901760
    %2846 = vmatpush1.msra.mxu0 %v2845
    %2847 = vmatprep.subr.mxu0 0.0
    %v2848 = vand.u32 %v225, 4294901760
    %2849 = vmatpush1.msra.mxu0 %v2848
    %2850 = vmatprep.subr.mxu0 0.0
    %v2851 = vand.u32 %v226, 4294901760
    %2852 = vmatpush1.msra.mxu0 %v2851
    %2853 = vmatprep.subr.mxu0 0.0
    %v2854 = vand.u32 %v227, 4294901760
    %2855 = vmatpush1.msra.mxu0 %v2854
    %2856 = vmatprep.subr.mxu0 0.0
    %v2857 = vand.u32 %v228, 4294901760
    %2858 = vmatpush1.msra.mxu0 %v2857
    %2859 = vmatprep.subr.mxu0 0.0
    %v2860 = vand.u32 %v229, 4294901760
    %2861 = vmatpush1.msra.mxu0 %v2860
    %2862 = vmatprep.subr.mxu0 0.0
    %v2863 = vand.u32 %v230, 4294901760
    %2864 = vmatpush1.msra.mxu0 %v2863
    %2865 = vmatprep.subr.mxu0 0.0
    %v2866 = vand.u32 %v231, 4294901760
    %2867 = vmatpush1.msra.mxu0 %v2866
    %2868 = vmatprep.subr.mxu0 0.0
    %v2869 = vand.u32 %v232, 4294901760
    %2870 = vmatpush1.msra.mxu0 %v2869
    %2871 = vmatprep.subr.mxu0 0.0
    %v2872 = vand.u32 %v233, 4294901760
    %2873 = vmatpush1.msra.mxu0 %v2872
    %2874 = vmatprep.subr.mxu0 0.0
    %v2875 = vand.u32 %v234, 4294901760
    %2876 = vmatpush1.msra.mxu0 %v2875
    %2877 = vmatprep.subr.mxu0 0.0
    %v2878 = vand.u32 %v235, 4294901760
    %2879 = vmatpush1.msra.mxu0 %v2878
    %2880 = vmatprep.subr.mxu0 0.0
    %v2881 = vand.u32 %v236, 4294901760
    %2882 = vmatpush1.msra.mxu0 %v2881
    %2883 = vmatprep.subr.mxu0 0.0
    %v2884 = vand.u32 %v237, 4294901760
    %2885 = vmatpush1.msra.mxu0 %v2884
    %2886 = vmatprep.subr.mxu0 0.0
    %v2887 = vand.u32 %v238, 4294901760
    %2888 = vmatpush1.msra.mxu0 %v2887
    %2889 = vmatprep.subr.mxu0 0.0
    %v2890 = vand.u32 %v239, 4294901760
    %2891 = vmatpush1.msra.mxu0 %v2890
    %2892 = vmatprep.subr.mxu0 0.0
    %v2893 = vand.u32 %v240, 4294901760
    %2894 = vmatpush1.msra.mxu0 %v2893
    %2895 = vmatprep.subr.mxu0 0.0
    %v2896 = vand.u32 %v241, 4294901760
    %2897 = vmatpush1.msra.mxu0 %v2896
    %2898 = vmatprep.subr.mxu0 0.0
    %v2899 = vand.u32 %v242, 4294901760
    %2900 = vmatpush1.msra.mxu0 %v2899
    %2901 = vmatprep.subr.mxu0 0.0
    %v2902 = vand.u32 %v243, 4294901760
    %2903 = vmatpush1.msra.mxu0 %v2902
    %2904 = vmatprep.subr.mxu0 0.0
    %v2905 = vand.u32 %v244, 4294901760
    %2906 = vmatpush1.msra.mxu0 %v2905
    %2907 = vmatprep.subr.mxu0 0.0
    %v2908 = vand.u32 %v245, 4294901760
    %2909 = vmatpush1.msra.mxu0 %v2908
    %2910 = vmatprep.subr.mxu0 0.0
    %v2911 = vand.u32 %v246, 4294901760
    %2912 = vmatpush1.msra.mxu0 %v2911
    %2913 = vmatprep.subr.mxu0 0.0
    %v2914 = vand.u32 %v247, 4294901760
    %2915 = vmatpush1.msra.mxu0 %v2914
    %2916 = vmatprep.subr.mxu0 0.0
    %v2917 = vand.u32 %v248, 4294901760
    %2918 = vmatpush1.msra.mxu0 %v2917
    %2919 = vmatprep.subr.mxu0 0.0
    %v2920 = vand.u32 %v249, 4294901760
    %2921 = vmatpush1.msra.mxu0 %v2920
    %2922 = vmatprep.subr.mxu0 0.0
    %v2923 = vand.u32 %v250, 4294901760
    %2924 = vmatpush1.msra.mxu0 %v2923
    %2925 = vmatprep.subr.mxu0 0.0
    %v2926 = vand.u32 %v251, 4294901760
    %2927 = vmatpush1.msra.mxu0 %v2926
    %2928 = vmatprep.subr.mxu0 0.0
    %v2929 = vand.u32 %v252, 4294901760
    %2930 = vmatpush1.msra.mxu0 %v2929
    %2931 = vmatprep.subr.mxu0 0.0
    %v2932 = vand.u32 %v253, 4294901760
    %2933 = vmatpush1.msra.mxu0 %v2932
    %2934 = vmatprep.subr.mxu0 0.0
    %v2935 = vand.u32 %v254, 4294901760
    %2936 = vmatpush1.msra.mxu0 %v2935
    %v2937 = vand.u32 %v126, 4294901760
    %v2938 = vsub.f32 %v126, %v2937
    %v2939 = vand.u32 %v2938, 4294901760
    %v2940 = vsub.f32 %v2938, %v2939
    %v2941 = vand.u32 %v2940, 4294901760
    %2942 = vmatprep.mubr.f32.mxu0 %v2941
    %v2943 = vand.u32 %v125, 4294901760
    %v2944 = vsub.f32 %v125, %v2943
    %v2945 = vand.u32 %v2944, 4294901760
    %v2946 = vsub.f32 %v2944, %v2945
    %v2947 = vand.u32 %v2946, 4294901760
    %2948 = vmatmul.mubr.f32.gmra.mrb[0].mxu0 %v2947
    %v2949 = vpop.f32.mrb[0].mxu0
    %v2950 = vadd.f32 %v2838, %v2949
    %v2951 = vpop.f32.mrb[0].mxu0
    %2952 = vdwg.mxu0
    %2953 = vmatprep.subr.mxu0 0.0
    %v2954 = vand.u32 %v223, 4294901760
    %v2955 = vsub.f32 %v223, %v2954
    %v2956 = vand.u32 %v2955, 4294901760
    %v2957 = vsub.f32 %v2955, %v2956
    %v2958 = vand.u32 %v2957, 4294901760
    %2959 = vmatpush1.msra.mxu0 %v2958
    %2960 = vmatprep.subr.mxu0 0.0
    %v2961 = vand.u32 %v224, 4294901760
    %v2962 = vsub.f32 %v224, %v2961
    %v2963 = vand.u32 %v2962, 4294901760
    %v2964 = vsub.f32 %v2962, %v2963
    %v2965 = vand.u32 %v2964, 4294901760
    %2966 = vmatpush1.msra.mxu0 %v2965
    %2967 = vmatprep.subr.mxu0 0.0
    %v2968 = vand.u32 %v225, 4294901760
    %v2969 = vsub.f32 %v225, %v2968
    %v2970 = vand.u32 %v2969, 4294901760
    %v2971 = vsub.f32 %v2969, %v2970
    %v2972 = vand.u32 %v2971, 4294901760
    %2973 = vmatpush1.msra.mxu0 %v2972
    %2974 = vmatprep.subr.mxu0 0.0
    %v2975 = vand.u32 %v226, 4294901760
    %v2976 = vsub.f32 %v226, %v2975
    %v2977 = vand.u32 %v2976, 4294901760
    %v2978 = vsub.f32 %v2976, %v2977
    %v2979 = vand.u32 %v2978, 4294901760
    %2980 = vmatpush1.msra.mxu0 %v2979
    %2981 = vmatprep.subr.mxu0 0.0
    %v2982 = vand.u32 %v227, 4294901760
    %v2983 = vsub.f32 %v227, %v2982
    %v2984 = vand.u32 %v2983, 4294901760
    %v2985 = vsub.f32 %v2983, %v2984
    %v2986 = vand.u32 %v2985, 4294901760
    %2987 = vmatpush1.msra.mxu0 %v2986
    %2988 = vmatprep.subr.mxu0 0.0
    %v2989 = vand.u32 %v228, 4294901760
    %v2990 = vsub.f32 %v228, %v2989
    %v2991 = vand.u32 %v2990, 4294901760
    %v2992 = vsub.f32 %v2990, %v2991
    %v2993 = vand.u32 %v2992, 4294901760
    %2994 = vmatpush1.msra.mxu0 %v2993
    %2995 = vmatprep.subr.mxu0 0.0
    %v2996 = vand.u32 %v229, 4294901760
    %v2997 = vsub.f32 %v229, %v2996
    %v2998 = vand.u32 %v2997, 4294901760
    %v2999 = vsub.f32 %v2997, %v2998
    %v3000 = vand.u32 %v2999, 4294901760
    %3001 = vmatpush1.msra.mxu0 %v3000
    %3002 = vmatprep.subr.mxu0 0.0
    %v3003 = vand.u32 %v230, 4294901760
    %v3004 = vsub.f32 %v230, %v3003
    %v3005 = vand.u32 %v3004, 4294901760
    %v3006 = vsub.f32 %v3004, %v3005
    %v3007 = vand.u32 %v3006, 4294901760
    %3008 = vmatpush1.msra.mxu0 %v3007
    %3009 = vmatprep.subr.mxu0 0.0
    %v3010 = vand.u32 %v231, 4294901760
    %v3011 = vsub.f32 %v231, %v3010
    %v3012 = vand.u32 %v3011, 4294901760
    %v3013 = vsub.f32 %v3011, %v3012
    %v3014 = vand.u32 %v3013, 4294901760
    %3015 = vmatpush1.msra.mxu0 %v3014
    %3016 = vmatprep.subr.mxu0 0.0
    %v3017 = vand.u32 %v232, 4294901760
    %v3018 = vsub.f32 %v232, %v3017
    %v3019 = vand.u32 %v3018, 4294901760
    %v3020 = vsub.f32 %v3018, %v3019
    %v3021 = vand.u32 %v3020, 4294901760
    %3022 = vmatpush1.msra.mxu0 %v3021
    %3023 = vmatprep.subr.mxu0 0.0
    %v3024 = vand.u32 %v233, 4294901760
    %v3025 = vsub.f32 %v233, %v3024
    %v3026 = vand.u32 %v3025, 4294901760
    %v3027 = vsub.f32 %v3025, %v3026
    %v3028 = vand.u32 %v3027, 4294901760
    %3029 = vmatpush1.msra.mxu0 %v3028
    %3030 = vmatprep.subr.mxu0 0.0
    %v3031 = vand.u32 %v234, 4294901760
    %v3032 = vsub.f32 %v234, %v3031
    %v3033 = vand.u32 %v3032, 4294901760
    %v3034 = vsub.f32 %v3032, %v3033
    %v3035 = vand.u32 %v3034, 4294901760
    %3036 = vmatpush1.msra.mxu0 %v3035
    %3037 = vmatprep.subr.mxu0 0.0
    %v3038 = vand.u32 %v235, 4294901760
    %v3039 = vsub.f32 %v235, %v3038
    %v3040 = vand.u32 %v3039, 4294901760
    %v3041 = vsub.f32 %v3039, %v3040
    %v3042 = vand.u32 %v3041, 4294901760
    %3043 = vmatpush1.msra.mxu0 %v3042
    %3044 = vmatprep.subr.mxu0 0.0
    %v3045 = vand.u32 %v236, 4294901760
    %v3046 = vsub.f32 %v236, %v3045
    %v3047 = vand.u32 %v3046, 4294901760
    %v3048 = vsub.f32 %v3046, %v3047
    %v3049 = vand.u32 %v3048, 4294901760
    %3050 = vmatpush1.msra.mxu0 %v3049
    %3051 = vmatprep.subr.mxu0 0.0
    %v3052 = vand.u32 %v237, 4294901760
    %v3053 = vsub.f32 %v237, %v3052
    %v3054 = vand.u32 %v3053, 4294901760
    %v3055 = vsub.f32 %v3053, %v3054
    %v3056 = vand.u32 %v3055, 4294901760
    %3057 = vmatpush1.msra.mxu0 %v3056
    %3058 = vmatprep.subr.mxu0 0.0
    %v3059 = vand.u32 %v238, 4294901760
    %v3060 = vsub.f32 %v238, %v3059
    %v3061 = vand.u32 %v3060, 4294901760
    %v3062 = vsub.f32 %v3060, %v3061
    %v3063 = vand.u32 %v3062, 4294901760
    %3064 = vmatpush1.msra.mxu0 %v3063
    %3065 = vmatprep.subr.mxu0 0.0
    %v3066 = vand.u32 %v239, 4294901760
    %v3067 = vsub.f32 %v239, %v3066
    %v3068 = vand.u32 %v3067, 4294901760
    %v3069 = vsub.f32 %v3067, %v3068
    %v3070 = vand.u32 %v3069, 4294901760
    %3071 = vmatpush1.msra.mxu0 %v3070
    %3072 = vmatprep.subr.mxu0 0.0
    %v3073 = vand.u32 %v240, 4294901760
    %v3074 = vsub.f32 %v240, %v3073
    %v3075 = vand.u32 %v3074, 4294901760
    %v3076 = vsub.f32 %v3074, %v3075
    %v3077 = vand.u32 %v3076, 4294901760
    %3078 = vmatpush1.msra.mxu0 %v3077
    %3079 = vmatprep.subr.mxu0 0.0
    %v3080 = vand.u32 %v241, 4294901760
    %v3081 = vsub.f32 %v241, %v3080
    %v3082 = vand.u32 %v3081, 4294901760
    %v3083 = vsub.f32 %v3081, %v3082
    %v3084 = vand.u32 %v3083, 4294901760
    %3085 = vmatpush1.msra.mxu0 %v3084
    %3086 = vmatprep.subr.mxu0 0.0
    %v3087 = vand.u32 %v242, 4294901760
    %v3088 = vsub.f32 %v242, %v3087
    %v3089 = vand.u32 %v3088, 4294901760
    %v3090 = vsub.f32 %v3088, %v3089
    %v3091 = vand.u32 %v3090, 4294901760
    %3092 = vmatpush1.msra.mxu0 %v3091
    %3093 = vmatprep.subr.mxu0 0.0
    %v3094 = vand.u32 %v243, 4294901760
    %v3095 = vsub.f32 %v243, %v3094
    %v3096 = vand.u32 %v3095, 4294901760
    %v3097 = vsub.f32 %v3095, %v3096
    %v3098 = vand.u32 %v3097, 4294901760
    %3099 = vmatpush1.msra.mxu0 %v3098
    %3100 = vmatprep.subr.mxu0 0.0
    %v3101 = vand.u32 %v244, 4294901760
    %v3102 = vsub.f32 %v244, %v3101
    %v3103 = vand.u32 %v3102, 4294901760
    %v3104 = vsub.f32 %v3102, %v3103
    %v3105 = vand.u32 %v3104, 4294901760
    %3106 = vmatpush1.msra.mxu0 %v3105
    %3107 = vmatprep.subr.mxu0 0.0
    %v3108 = vand.u32 %v245, 4294901760
    %v3109 = vsub.f32 %v245, %v3108
    %v3110 = vand.u32 %v3109, 4294901760
    %v3111 = vsub.f32 %v3109, %v3110
    %v3112 = vand.u32 %v3111, 4294901760
    %3113 = vmatpush1.msra.mxu0 %v3112
    %3114 = vmatprep.subr.mxu0 0.0
    %v3115 = vand.u32 %v246, 4294901760
    %v3116 = vsub.f32 %v246, %v3115
    %v3117 = vand.u32 %v3116, 4294901760
    %v3118 = vsub.f32 %v3116, %v3117
    %v3119 = vand.u32 %v3118, 4294901760
    %3120 = vmatpush1.msra.mxu0 %v3119
    %3121 = vmatprep.subr.mxu0 0.0
    %v3122 = vand.u32 %v247, 4294901760
    %v3123 = vsub.f32 %v247, %v3122
    %v3124 = vand.u32 %v3123, 4294901760
    %v3125 = vsub.f32 %v3123, %v3124
    %v3126 = vand.u32 %v3125, 4294901760
    %3127 = vmatpush1.msra.mxu0 %v3126
    %3128 = vmatprep.subr.mxu0 0.0
    %v3129 = vand.u32 %v248, 4294901760
    %v3130 = vsub.f32 %v248, %v3129
    %v3131 = vand.u32 %v3130, 4294901760
    %v3132 = vsub.f32 %v3130, %v3131
    %v3133 = vand.u32 %v3132, 4294901760
    %3134 = vmatpush1.msra.mxu0 %v3133
    %3135 = vmatprep.subr.mxu0 0.0
    %v3136 = vand.u32 %v249, 4294901760
    %v3137 = vsub.f32 %v249, %v3136
    %v3138 = vand.u32 %v3137, 4294901760
    %v3139 = vsub.f32 %v3137, %v3138
    %v3140 = vand.u32 %v3139, 4294901760
    %3141 = vmatpush1.msra.mxu0 %v3140
    %3142 = vmatprep.subr.mxu0 0.0
    %v3143 = vand.u32 %v250, 4294901760
    %v3144 = vsub.f32 %v250, %v3143
    %v3145 = vand.u32 %v3144, 4294901760
    %v3146 = vsub.f32 %v3144, %v3145
    %v3147 = vand.u32 %v3146, 4294901760
    %3148 = vmatpush1.msra.mxu0 %v3147
    %3149 = vmatprep.subr.mxu0 0.0
    %v3150 = vand.u32 %v251, 4294901760
    %v3151 = vsub.f32 %v251, %v3150
    %v3152 = vand.u32 %v3151, 4294901760
    %v3153 = vsub.f32 %v3151, %v3152
    %v3154 = vand.u32 %v3153, 4294901760
    %3155 = vmatpush1.msra.mxu0 %v3154
    %3156 = vmatprep.subr.mxu0 0.0
    %v3157 = vand.u32 %v252, 4294901760
    %v3158 = vsub.f32 %v252, %v3157
    %v3159 = vand.u32 %v3158, 4294901760
    %v3160 = vsub.f32 %v3158, %v3159
    %v3161 = vand.u32 %v3160, 4294901760
    %3162 = vmatpush1.msra.mxu0 %v3161
    %3163 = vmatprep.subr.mxu0 0.0
    %v3164 = vand.u32 %v253, 4294901760
    %v3165 = vsub.f32 %v253, %v3164
    %v3166 = vand.u32 %v3165, 4294901760
    %v3167 = vsub.f32 %v3165, %v3166
    %v3168 = vand.u32 %v3167, 4294901760
    %3169 = vmatpush1.msra.mxu0 %v3168
    %3170 = vmatprep.subr.mxu0 0.0
    %v3171 = vand.u32 %v254, 4294901760
    %v3172 = vsub.f32 %v254, %v3171
    %v3173 = vand.u32 %v3172, 4294901760
    %v3174 = vsub.f32 %v3172, %v3173
    %v3175 = vand.u32 %v3174, 4294901760
    %3176 = vmatpush1.msra.mxu0 %v3175
    %v3177 = vand.u32 %v126, 4294901760
    %3178 = vmatprep.mubr.f32.mxu0 %v3177
    %v3179 = vand.u32 %v125, 4294901760
    %3180 = vmatmul.mubr.f32.gmra.mrb[0].mxu0 %v3179
    %v3181 = vpop.f32.mrb[0].mxu0
    %v3182 = vadd.f32 %v2950, %v3181
    %v3183 = vpop.f32.mrb[0].mxu0
    %3184 = vdwg.mxu0
    %3185 = vmatprep.subr.mxu0 0.0
    %v3186 = vand.u32 %v223, 4294901760
    %v3187 = vsub.f32 %v223, %v3186
    %3188 = vmatpush1.msra.mxu0 %v3187
    %3189 = vmatprep.subr.mxu0 0.0
    %v3190 = vand.u32 %v224, 4294901760
    %v3191 = vsub.f32 %v224, %v3190
    %3192 = vmatpush1.msra.mxu0 %v3191
    %3193 = vmatprep.subr.mxu0 0.0
    %v3194 = vand.u32 %v225, 4294901760
    %v3195 = vsub.f32 %v225, %v3194
    %3196 = vmatpush1.msra.mxu0 %v3195
    %3197 = vmatprep.subr.mxu0 0.0
    %v3198 = vand.u32 %v226, 4294901760
    %v3199 = vsub.f32 %v226, %v3198
    %3200 = vmatpush1.msra.mxu0 %v3199
    %3201 = vmatprep.subr.mxu0 0.0
    %v3202 = vand.u32 %v227, 4294901760
    %v3203 = vsub.f32 %v227, %v3202
    %3204 = vmatpush1.msra.mxu0 %v3203
    %3205 = vmatprep.subr.mxu0 0.0
    %v3206 = vand.u32 %v228, 4294901760
    %v3207 = vsub.f32 %v228, %v3206
    %3208 = vmatpush1.msra.mxu0 %v3207
    %3209 = vmatprep.subr.mxu0 0.0
    %v3210 = vand.u32 %v229, 4294901760
    %v3211 = vsub.f32 %v229, %v3210
    %3212 = vmatpush1.msra.mxu0 %v3211
    %3213 = vmatprep.subr.mxu0 0.0
    %v3214 = vand.u32 %v230, 4294901760
    %v3215 = vsub.f32 %v230, %v3214
    %3216 = vmatpush1.msra.mxu0 %v3215
    %3217 = vmatprep.subr.mxu0 0.0
    %v3218 = vand.u32 %v231, 4294901760
    %v3219 = vsub.f32 %v231, %v3218
    %3220 = vmatpush1.msra.mxu0 %v3219
    %3221 = vmatprep.subr.mxu0 0.0
    %v3222 = vand.u32 %v232, 4294901760
    %v3223 = vsub.f32 %v232, %v3222
    %3224 = vmatpush1.msra.mxu0 %v3223
    %3225 = vmatprep.subr.mxu0 0.0
    %v3226 = vand.u32 %v233, 4294901760
    %v3227 = vsub.f32 %v233, %v3226
    %3228 = vmatpush1.msra.mxu0 %v3227
    %3229 = vmatprep.subr.mxu0 0.0
    %v3230 = vand.u32 %v234, 4294901760
    %v3231 = vsub.f32 %v234, %v3230
    %3232 = vmatpush1.msra.mxu0 %v3231
    %3233 = vmatprep.subr.mxu0 0.0
    %v3234 = vand.u32 %v235, 4294901760
    %v3235 = vsub.f32 %v235, %v3234
    %3236 = vmatpush1.msra.mxu0 %v3235
    %3237 = vmatprep.subr.mxu0 0.0
    %v3238 = vand.u32 %v236, 4294901760
    %v3239 = vsub.f32 %v236, %v3238
    %3240 = vmatpush1.msra.mxu0 %v3239
    %3241 = vmatprep.subr.mxu0 0.0
    %v3242 = vand.u32 %v237, 4294901760
    %v3243 = vsub.f32 %v237, %v3242
    %3244 = vmatpush1.msra.mxu0 %v3243
    %3245 = vmatprep.subr.mxu0 0.0
    %v3246 = vand.u32 %v238, 4294901760
    %v3247 = vsub.f32 %v238, %v3246
    %3248 = vmatpush1.msra.mxu0 %v3247
    %3249 = vmatprep.subr.mxu0 0.0
    %v3250 = vand.u32 %v239, 4294901760
    %v3251 = vsub.f32 %v239, %v3250
    %3252 = vmatpush1.msra.mxu0 %v3251
    %3253 = vmatprep.subr.mxu0 0.0
    %v3254 = vand.u32 %v240, 4294901760
    %v3255 = vsub.f32 %v240, %v3254
    %3256 = vmatpush1.msra.mxu0 %v3255
    %3257 = vmatprep.subr.mxu0 0.0
    %v3258 = vand.u32 %v241, 4294901760
    %v3259 = vsub.f32 %v241, %v3258
    %3260 = vmatpush1.msra.mxu0 %v3259
    %3261 = vmatprep.subr.mxu0 0.0
    %v3262 = vand.u32 %v242, 4294901760
    %v3263 = vsub.f32 %v242, %v3262
    %3264 = vmatpush1.msra.mxu0 %v3263
    %3265 = vmatprep.subr.mxu0 0.0
    %v3266 = vand.u32 %v243, 4294901760
    %v3267 = vsub.f32 %v243, %v3266
    %3268 = vmatpush1.msra.mxu0 %v3267
    %3269 = vmatprep.subr.mxu0 0.0
    %v3270 = vand.u32 %v244, 4294901760
    %v3271 = vsub.f32 %v244, %v3270
    %3272 = vmatpush1.msra.mxu0 %v3271
    %3273 = vmatprep.subr.mxu0 0.0
    %v3274 = vand.u32 %v245, 4294901760
    %v3275 = vsub.f32 %v245, %v3274
    %3276 = vmatpush1.msra.mxu0 %v3275
    %3277 = vmatprep.subr.mxu0 0.0
    %v3278 = vand.u32 %v246, 4294901760
    %v3279 = vsub.f32 %v246, %v3278
    %3280 = vmatpush1.msra.mxu0 %v3279
    %3281 = vmatprep.subr.mxu0 0.0
    %v3282 = vand.u32 %v247, 4294901760
    %v3283 = vsub.f32 %v247, %v3282
    %3284 = vmatpush1.msra.mxu0 %v3283
    %3285 = vmatprep.subr.mxu0 0.0
    %v3286 = vand.u32 %v248, 4294901760
    %v3287 = vsub.f32 %v248, %v3286
    %3288 = vmatpush1.msra.mxu0 %v3287
    %3289 = vmatprep.subr.mxu0 0.0
    %v3290 = vand.u32 %v249, 4294901760
    %v3291 = vsub.f32 %v249, %v3290
    %3292 = vmatpush1.msra.mxu0 %v3291
    %3293 = vmatprep.subr.mxu0 0.0
    %v3294 = vand.u32 %v250, 4294901760
    %v3295 = vsub.f32 %v250, %v3294
    %3296 = vmatpush1.msra.mxu0 %v3295
    %3297 = vmatprep.subr.mxu0 0.0
    %v3298 = vand.u32 %v251, 4294901760
    %v3299 = vsub.f32 %v251, %v3298
    %3300 = vmatpush1.msra.mxu0 %v3299
    %3301 = vmatprep.subr.mxu0 0.0
    %v3302 = vand.u32 %v252, 4294901760
    %v3303 = vsub.f32 %v252, %v3302
    %3304 = vmatpush1.msra.mxu0 %v3303
    %3305 = vmatprep.subr.mxu0 0.0
    %v3306 = vand.u32 %v253, 4294901760
    %v3307 = vsub.f32 %v253, %v3306
    %3308 = vmatpush1.msra.mxu0 %v3307
    %3309 = vmatprep.subr.mxu0 0.0
    %v3310 = vand.u32 %v254, 4294901760
    %v3311 = vsub.f32 %v254, %v3310
    %3312 = vmatpush1.msra.mxu0 %v3311
    %v3313 = vand.u32 %v126, 4294901760
    %v3314 = vsub.f32 %v126, %v3313
    %3315 = vmatprep.mubr.f32.mxu0 %v3314
    %v3316 = vand.u32 %v125, 4294901760
    %v3317 = vsub.f32 %v125, %v3316
    %3318 = vmatmul.mubr.f32.gmra.mrb[0].mxu0 %v3317
    %v3319 = vpop.f32.mrb[0].mxu0
    %v3320 = vadd.f32 %v3182, %v3319
    %v3321 = vpop.f32.mrb[0].mxu0
    %3322 = vdwg.mxu0
    %3323 = vmatprep.subr.mxu0 0.0
    %v3324 = vand.u32 %v223, 4294901760
    %3325 = vmatpush1.msra.mxu0 %v3324
    %3326 = vmatprep.subr.mxu0 0.0
    %v3327 = vand.u32 %v224, 4294901760
    %3328 = vmatpush1.msra.mxu0 %v3327
    %3329 = vmatprep.subr.mxu0 0.0
    %v3330 = vand.u32 %v225, 4294901760
    %3331 = vmatpush1.msra.mxu0 %v3330
    %3332 = vmatprep.subr.mxu0 0.0
    %v3333 = vand.u32 %v226, 4294901760
    %3334 = vmatpush1.msra.mxu0 %v3333
    %3335 = vmatprep.subr.mxu0 0.0
    %v3336 = vand.u32 %v227, 4294901760
    %3337 = vmatpush1.msra.mxu0 %v3336
    %3338 = vmatprep.subr.mxu0 0.0
    %v3339 = vand.u32 %v228, 4294901760
    %3340 = vmatpush1.msra.mxu0 %v3339
    %3341 = vmatprep.subr.mxu0 0.0
    %v3342 = vand.u32 %v229, 4294901760
    %3343 = vmatpush1.msra.mxu0 %v3342
    %3344 = vmatprep.subr.mxu0 0.0
    %v3345 = vand.u32 %v230, 4294901760
    %3346 = vmatpush1.msra.mxu0 %v3345
    %3347 = vmatprep.subr.mxu0 0.0
    %v3348 = vand.u32 %v231, 4294901760
    %3349 = vmatpush1.msra.mxu0 %v3348
    %3350 = vmatprep.subr.mxu0 0.0
    %v3351 = vand.u32 %v232, 4294901760
    %3352 = vmatpush1.msra.mxu0 %v3351
    %3353 = vmatprep.subr.mxu0 0.0
    %v3354 = vand.u32 %v233, 4294901760
    %3355 = vmatpush1.msra.mxu0 %v3354
    %3356 = vmatprep.subr.mxu0 0.0
    %v3357 = vand.u32 %v234, 4294901760
    %3358 = vmatpush1.msra.mxu0 %v3357
    %3359 = vmatprep.subr.mxu0 0.0
    %v3360 = vand.u32 %v235, 4294901760
    %3361 = vmatpush1.msra.mxu0 %v3360
    %3362 = vmatprep.subr.mxu0 0.0
    %v3363 = vand.u32 %v236, 4294901760
    %3364 = vmatpush1.msra.mxu0 %v3363
    %3365 = vmatprep.subr.mxu0 0.0
    %v3366 = vand.u32 %v237, 4294901760
    %3367 = vmatpush1.msra.mxu0 %v3366
    %3368 = vmatprep.subr.mxu0 0.0
    %v3369 = vand.u32 %v238, 4294901760
    %3370 = vmatpush1.msra.mxu0 %v3369
    %3371 = vmatprep.subr.mxu0 0.0
    %v3372 = vand.u32 %v239, 4294901760
    %3373 = vmatpush1.msra.mxu0 %v3372
    %3374 = vmatprep.subr.mxu0 0.0
    %v3375 = vand.u32 %v240, 4294901760
    %3376 = vmatpush1.msra.mxu0 %v3375
    %3377 = vmatprep.subr.mxu0 0.0
    %v3378 = vand.u32 %v241, 4294901760
    %3379 = vmatpush1.msra.mxu0 %v3378
    %3380 = vmatprep.subr.mxu0 0.0
    %v3381 = vand.u32 %v242, 4294901760
    %3382 = vmatpush1.msra.mxu0 %v3381
    %3383 = vmatprep.subr.mxu0 0.0
    %v3384 = vand.u32 %v243, 4294901760
    %3385 = vmatpush1.msra.mxu0 %v3384
    %3386 = vmatprep.subr.mxu0 0.0
    %v3387 = vand.u32 %v244, 4294901760
    %3388 = vmatpush1.msra.mxu0 %v3387
    %3389 = vmatprep.subr.mxu0 0.0
    %v3390 = vand.u32 %v245, 4294901760
    %3391 = vmatpush1.msra.mxu0 %v3390
    %3392 = vmatprep.subr.mxu0 0.0
    %v3393 = vand.u32 %v246, 4294901760
    %3394 = vmatpush1.msra.mxu0 %v3393
    %3395 = vmatprep.subr.mxu0 0.0
    %v3396 = vand.u32 %v247, 4294901760
    %3397 = vmatpush1.msra.mxu0 %v3396
    %3398 = vmatprep.subr.mxu0 0.0
    %v3399 = vand.u32 %v248, 4294901760
    %3400 = vmatpush1.msra.mxu0 %v3399
    %3401 = vmatprep.subr.mxu0 0.0
    %v3402 = vand.u32 %v249, 4294901760
    %3403 = vmatpush1.msra.mxu0 %v3402
    %3404 = vmatprep.subr.mxu0 0.0
    %v3405 = vand.u32 %v250, 4294901760
    %3406 = vmatpush1.msra.mxu0 %v3405
    %3407 = vmatprep.subr.mxu0 0.0
    %v3408 = vand.u32 %v251, 4294901760
    %3409 = vmatpush1.msra.mxu0 %v3408
    %3410 = vmatprep.subr.mxu0 0.0
    %v3411 = vand.u32 %v252, 4294901760
    %3412 = vmatpush1.msra.mxu0 %v3411
    %3413 = vmatprep.subr.mxu0 0.0
    %v3414 = vand.u32 %v253, 4294901760
    %3415 = vmatpush1.msra.mxu0 %v3414
    %3416 = vmatprep.subr.mxu0 0.0
    %v3417 = vand.u32 %v254, 4294901760
    %3418 = vmatpush1.msra.mxu0 %v3417
    %v3419 = vand.u32 %v126, 4294901760
    %v3420 = vsub.f32 %v126, %v3419
    %v3421 = vand.u32 %v3420, 4294901760
    %3422 = vmatprep.mubr.f32.mxu0 %v3421
    %v3423 = vand.u32 %v125, 4294901760
    %v3424 = vsub.f32 %v125, %v3423
    %v3425 = vand.u32 %v3424, 4294901760
    %3426 = vmatmul.mubr.f32.gmra.mrb[0].mxu0 %v3425
    %v3427 = vpop.f32.mrb[0].mxu0
    %v3428 = vadd.f32 %v3320, %v3427
    %v3429 = vpop.f32.mrb[0].mxu0
    %3430 = vdwg.mxu0
    %3431 = vmatprep.subr.mxu0 0.0
    %v3432 = vand.u32 %v223, 4294901760
    %v3433 = vsub.f32 %v223, %v3432
    %v3434 = vand.u32 %v3433, 4294901760
    %3435 = vmatpush1.msra.mxu0 %v3434
    %3436 = vmatprep.subr.mxu0 0.0
    %v3437 = vand.u32 %v224, 4294901760
    %v3438 = vsub.f32 %v224, %v3437
    %v3439 = vand.u32 %v3438, 4294901760
    %3440 = vmatpush1.msra.mxu0 %v3439
    %3441 = vmatprep.subr.mxu0 0.0
    %v3442 = vand.u32 %v225, 4294901760
    %v3443 = vsub.f32 %v225, %v3442
    %v3444 = vand.u32 %v3443, 4294901760
    %3445 = vmatpush1.msra.mxu0 %v3444
    %3446 = vmatprep.subr.mxu0 0.0
    %v3447 = vand.u32 %v226, 4294901760
    %v3448 = vsub.f32 %v226, %v3447
    %v3449 = vand.u32 %v3448, 4294901760
    %3450 = vmatpush1.msra.mxu0 %v3449
    %3451 = vmatprep.subr.mxu0 0.0
    %v3452 = vand.u32 %v227, 4294901760
    %v3453 = vsub.f32 %v227, %v3452
    %v3454 = vand.u32 %v3453, 4294901760
    %3455 = vmatpush1.msra.mxu0 %v3454
    %3456 = vmatprep.subr.mxu0 0.0
    %v3457 = vand.u32 %v228, 4294901760
    %v3458 = vsub.f32 %v228, %v3457
    %v3459 = vand.u32 %v3458, 4294901760
    %3460 = vmatpush1.msra.mxu0 %v3459
    %3461 = vmatprep.subr.mxu0 0.0
    %v3462 = vand.u32 %v229, 4294901760
    %v3463 = vsub.f32 %v229, %v3462
    %v3464 = vand.u32 %v3463, 4294901760
    %3465 = vmatpush1.msra.mxu0 %v3464
    %3466 = vmatprep.subr.mxu0 0.0
    %v3467 = vand.u32 %v230, 4294901760
    %v3468 = vsub.f32 %v230, %v3467
    %v3469 = vand.u32 %v3468, 4294901760
    %3470 = vmatpush1.msra.mxu0 %v3469
    %3471 = vmatprep.subr.mxu0 0.0
    %v3472 = vand.u32 %v231, 4294901760
    %v3473 = vsub.f32 %v231, %v3472
    %v3474 = vand.u32 %v3473, 4294901760
    %3475 = vmatpush1.msra.mxu0 %v3474
    %3476 = vmatprep.subr.mxu0 0.0
    %v3477 = vand.u32 %v232, 4294901760
    %v3478 = vsub.f32 %v232, %v3477
    %v3479 = vand.u32 %v3478, 4294901760
    %3480 = vmatpush1.msra.mxu0 %v3479
    %3481 = vmatprep.subr.mxu0 0.0
    %v3482 = vand.u32 %v233, 4294901760
    %v3483 = vsub.f32 %v233, %v3482
    %v3484 = vand.u32 %v3483, 4294901760
    %3485 = vmatpush1.msra.mxu0 %v3484
    %3486 = vmatprep.subr.mxu0 0.0
    %v3487 = vand.u32 %v234, 4294901760
    %v3488 = vsub.f32 %v234, %v3487
    %v3489 = vand.u32 %v3488, 4294901760
    %3490 = vmatpush1.msra.mxu0 %v3489
    %3491 = vmatprep.subr.mxu0 0.0
    %v3492 = vand.u32 %v235, 4294901760
    %v3493 = vsub.f32 %v235, %v3492
    %v3494 = vand.u32 %v3493, 4294901760
    %3495 = vmatpush1.msra.mxu0 %v3494
    %3496 = vmatprep.subr.mxu0 0.0
    %v3497 = vand.u32 %v236, 4294901760
    %v3498 = vsub.f32 %v236, %v3497
    %v3499 = vand.u32 %v3498, 4294901760
    %3500 = vmatpush1.msra.mxu0 %v3499
    %3501 = vmatprep.subr.mxu0 0.0
    %v3502 = vand.u32 %v237, 4294901760
    %v3503 = vsub.f32 %v237, %v3502
    %v3504 = vand.u32 %v3503, 4294901760
    %3505 = vmatpush1.msra.mxu0 %v3504
    %3506 = vmatprep.subr.mxu0 0.0
    %v3507 = vand.u32 %v238, 4294901760
    %v3508 = vsub.f32 %v238, %v3507
    %v3509 = vand.u32 %v3508, 4294901760
    %3510 = vmatpush1.msra.mxu0 %v3509
    %3511 = vmatprep.subr.mxu0 0.0
    %v3512 = vand.u32 %v239, 4294901760
    %v3513 = vsub.f32 %v239, %v3512
    %v3514 = vand.u32 %v3513, 4294901760
    %3515 = vmatpush1.msra.mxu0 %v3514
    %3516 = vmatprep.subr.mxu0 0.0
    %v3517 = vand.u32 %v240, 4294901760
    %v3518 = vsub.f32 %v240, %v3517
    %v3519 = vand.u32 %v3518, 4294901760
    %3520 = vmatpush1.msra.mxu0 %v3519
    %3521 = vmatprep.subr.mxu0 0.0
    %v3522 = vand.u32 %v241, 4294901760
    %v3523 = vsub.f32 %v241, %v3522
    %v3524 = vand.u32 %v3523, 4294901760
    %3525 = vmatpush1.msra.mxu0 %v3524
    %3526 = vmatprep.subr.mxu0 0.0
    %v3527 = vand.u32 %v242, 4294901760
    %v3528 = vsub.f32 %v242, %v3527
    %v3529 = vand.u32 %v3528, 4294901760
    %3530 = vmatpush1.msra.mxu0 %v3529
    %3531 = vmatprep.subr.mxu0 0.0
    %v3532 = vand.u32 %v243, 4294901760
    %v3533 = vsub.f32 %v243, %v3532
    %v3534 = vand.u32 %v3533, 4294901760
    %3535 = vmatpush1.msra.mxu0 %v3534
    %3536 = vmatprep.subr.mxu0 0.0
    %v3537 = vand.u32 %v244, 4294901760
    %v3538 = vsub.f32 %v244, %v3537
    %v3539 = vand.u32 %v3538, 4294901760
    %3540 = vmatpush1.msra.mxu0 %v3539
    %3541 = vmatprep.subr.mxu0 0.0
    %v3542 = vand.u32 %v245, 4294901760
    %v3543 = vsub.f32 %v245, %v3542
    %v3544 = vand.u32 %v3543, 4294901760
    %3545 = vmatpush1.msra.mxu0 %v3544
    %3546 = vmatprep.subr.mxu0 0.0
    %v3547 = vand.u32 %v246, 4294901760
    %v3548 = vsub.f32 %v246, %v3547
    %v3549 = vand.u32 %v3548, 4294901760
    %3550 = vmatpush1.msra.mxu0 %v3549
    %3551 = vmatprep.subr.mxu0 0.0
    %v3552 = vand.u32 %v247, 4294901760
    %v3553 = vsub.f32 %v247, %v3552
    %v3554 = vand.u32 %v3553, 4294901760
    %3555 = vmatpush1.msra.mxu0 %v3554
    %3556 = vmatprep.subr.mxu0 0.0
    %v3557 = vand.u32 %v248, 4294901760
    %v3558 = vsub.f32 %v248, %v3557
    %v3559 = vand.u32 %v3558, 4294901760
    %3560 = vmatpush1.msra.mxu0 %v3559
    %3561 = vmatprep.subr.mxu0 0.0
    %v3562 = vand.u32 %v249, 4294901760
    %v3563 = vsub.f32 %v249, %v3562
    %v3564 = vand.u32 %v3563, 4294901760
    %3565 = vmatpush1.msra.mxu0 %v3564
    %3566 = vmatprep.subr.mxu0 0.0
    %v3567 = vand.u32 %v250, 4294901760
    %v3568 = vsub.f32 %v250, %v3567
    %v3569 = vand.u32 %v3568, 4294901760
    %3570 = vmatpush1.msra.mxu0 %v3569
    %3571 = vmatprep.subr.mxu0 0.0
    %v3572 = vand.u32 %v251, 4294901760
    %v3573 = vsub.f32 %v251, %v3572
    %v3574 = vand.u32 %v3573, 4294901760
    %3575 = vmatpush1.msra.mxu0 %v3574
    %3576 = vmatprep.subr.mxu0 0.0
    %v3577 = vand.u32 %v252, 4294901760
    %v3578 = vsub.f32 %v252, %v3577
    %v3579 = vand.u32 %v3578, 4294901760
    %3580 = vmatpush1.msra.mxu0 %v3579
    %3581 = vmatprep.subr.mxu0 0.0
    %v3582 = vand.u32 %v253, 4294901760
    %v3583 = vsub.f32 %v253, %v3582
    %v3584 = vand.u32 %v3583, 4294901760
    %3585 = vmatpush1.msra.mxu0 %v3584
    %3586 = vmatprep.subr.mxu0 0.0
    %v3587 = vand.u32 %v254, 4294901760
    %v3588 = vsub.f32 %v254, %v3587
    %v3589 = vand.u32 %v3588, 4294901760
    %3590 = vmatpush1.msra.mxu0 %v3589
    %v3591 = vand.u32 %v126, 4294901760
    %3592 = vmatprep.mubr.f32.mxu0 %v3591
    %v3593 = vand.u32 %v125, 4294901760
    %3594 = vmatmul.mubr.f32.gmra.mrb[0].mxu0 %v3593
    %v3595 = vpop.f32.mrb[0].mxu0
    %v3596 = vadd.f32 %v3428, %v3595
    %v3597 = vpop.f32.mrb[0].mxu0
    %3598 = vdwg.mxu0
    %3599 = vmatprep.subr.mxu0 0.0
    %v3600 = vand.u32 %v223, 4294901760
    %3601 = vmatpush1.msra.mxu0 %v3600
    %3602 = vmatprep.subr.mxu0 0.0
    %v3603 = vand.u32 %v224, 4294901760
    %3604 = vmatpush1.msra.mxu0 %v3603
    %3605 = vmatprep.subr.mxu0 0.0
    %v3606 = vand.u32 %v225, 4294901760
    %3607 = vmatpush1.msra.mxu0 %v3606
    %3608 = vmatprep.subr.mxu0 0.0
    %v3609 = vand.u32 %v226, 4294901760
    %3610 = vmatpush1.msra.mxu0 %v3609
    %3611 = vmatprep.subr.mxu0 0.0
    %v3612 = vand.u32 %v227, 4294901760
    %3613 = vmatpush1.msra.mxu0 %v3612
    %3614 = vmatprep.subr.mxu0 0.0
    %v3615 = vand.u32 %v228, 4294901760
    %3616 = vmatpush1.msra.mxu0 %v3615
    %3617 = vmatprep.subr.mxu0 0.0
    %v3618 = vand.u32 %v229, 4294901760
    %3619 = vmatpush1.msra.mxu0 %v3618
    %3620 = vmatprep.subr.mxu0 0.0
    %v3621 = vand.u32 %v230, 4294901760
    %3622 = vmatpush1.msra.mxu0 %v3621
    %3623 = vmatprep.subr.mxu0 0.0
    %v3624 = vand.u32 %v231, 4294901760
    %3625 = vmatpush1.msra.mxu0 %v3624
    %3626 = vmatprep.subr.mxu0 0.0
    %v3627 = vand.u32 %v232, 4294901760
    %3628 = vmatpush1.msra.mxu0 %v3627
    %3629 = vmatprep.subr.mxu0 0.0
    %v3630 = vand.u32 %v233, 4294901760
    %3631 = vmatpush1.msra.mxu0 %v3630
    %3632 = vmatprep.subr.mxu0 0.0
    %v3633 = vand.u32 %v234, 4294901760
    %3634 = vmatpush1.msra.mxu0 %v3633
    %3635 = vmatprep.subr.mxu0 0.0
    %v3636 = vand.u32 %v235, 4294901760
    %3637 = vmatpush1.msra.mxu0 %v3636
    %3638 = vmatprep.subr.mxu0 0.0
    %v3639 = vand.u32 %v236, 4294901760
    %3640 = vmatpush1.msra.mxu0 %v3639
    %3641 = vmatprep.subr.mxu0 0.0
    %v3642 = vand.u32 %v237, 4294901760
    %3643 = vmatpush1.msra.mxu0 %v3642
    %3644 = vmatprep.subr.mxu0 0.0
    %v3645 = vand.u32 %v238, 4294901760
    %3646 = vmatpush1.msra.mxu0 %v3645
    %3647 = vmatprep.subr.mxu0 0.0
    %v3648 = vand.u32 %v239, 4294901760
    %3649 = vmatpush1.msra.mxu0 %v3648
    %3650 = vmatprep.subr.mxu0 0.0
    %v3651 = vand.u32 %v240, 4294901760
    %3652 = vmatpush1.msra.mxu0 %v3651
    %3653 = vmatprep.subr.mxu0 0.0
    %v3654 = vand.u32 %v241, 4294901760
    %3655 = vmatpush1.msra.mxu0 %v3654
    %3656 = vmatprep.subr.mxu0 0.0
    %v3657 = vand.u32 %v242, 4294901760
    %3658 = vmatpush1.msra.mxu0 %v3657
    %3659 = vmatprep.subr.mxu0 0.0
    %v3660 = vand.u32 %v243, 4294901760
    %3661 = vmatpush1.msra.mxu0 %v3660
    %3662 = vmatprep.subr.mxu0 0.0
    %v3663 = vand.u32 %v244, 4294901760
    %3664 = vmatpush1.msra.mxu0 %v3663
    %3665 = vmatprep.subr.mxu0 0.0
    %v3666 = vand.u32 %v245, 4294901760
    %3667 = vmatpush1.msra.mxu0 %v3666
    %3668 = vmatprep.subr.mxu0 0.0
    %v3669 = vand.u32 %v246, 4294901760
    %3670 = vmatpush1.msra.mxu0 %v3669
    %3671 = vmatprep.subr.mxu0 0.0
    %v3672 = vand.u32 %v247, 4294901760
    %3673 = vmatpush1.msra.mxu0 %v3672
    %3674 = vmatprep.subr.mxu0 0.0
    %v3675 = vand.u32 %v248, 4294901760
    %3676 = vmatpush1.msra.mxu0 %v3675
    %3677 = vmatprep.subr.mxu0 0.0
    %v3678 = vand.u32 %v249, 4294901760
    %3679 = vmatpush1.msra.mxu0 %v3678
    %3680 = vmatprep.subr.mxu0 0.0
    %v3681 = vand.u32 %v250, 4294901760
    %3682 = vmatpush1.msra.mxu0 %v3681
    %3683 = vmatprep.subr.mxu0 0.0
    %v3684 = vand.u32 %v251, 4294901760
    %3685 = vmatpush1.msra.mxu0 %v3684
    %3686 = vmatprep.subr.mxu0 0.0
    %v3687 = vand.u32 %v252, 4294901760
    %3688 = vmatpush1.msra.mxu0 %v3687
    %3689 = vmatprep.subr.mxu0 0.0
    %v3690 = vand.u32 %v253, 4294901760
    %3691 = vmatpush1.msra.mxu0 %v3690
    %3692 = vmatprep.subr.mxu0 0.0
    %v3693 = vand.u32 %v254, 4294901760
    %3694 = vmatpush1.msra.mxu0 %v3693
    %v3695 = vand.u32 %v126, 4294901760
    %3696 = vmatprep.mubr.f32.mxu0 %v3695
    %v3697 = vand.u32 %v125, 4294901760
    %3698 = vmatmul.mubr.f32.gmra.mrb[0].mxu0 %v3697
    %v3699 = vpop.f32.mrb[0].mxu0
    %v3700 = vadd.f32 %v3596, %v3699
    %v3701 = vpop.f32.mrb[0].mxu0
    %3702 = vdwg.mxu0
    %3703 = vst [vmem:[#allocation5] sm:$0xff] %v3700
    // Predicated region
    $region14: #{tpu_custom_call.1} parent=1 // pred_check
      _
    $region15: #{tpu_custom_call.1} parent=1 // pred_check_branch
      %3705 = sbr.rel (0) target = $region17
    $region16: #{tpu_custom_call.1} parent=1 // pred_region
      %s3707 = ssub.s32 128, 128
      %3708 = vsyncadd [#allocation4], %s3707
      %s3710 = sshll.u32 [#allocation5], 4
      %s3711 = int_to_ptr.vmem [resolvable:$true] %s3710
      %3713 = dma.vmem_to_hbm [thread:$0]  %s3711, 128, %s2, [#allocation4]
    $region17: #{tpu_custom_call.1} parent=1 // pred_fallthru
      _
    // Predicated region
    $region18: #{tpu_custom_call.1} parent=1 // pred_check
      _
    $region19: #{tpu_custom_call.1} parent=1 // pred_check_branch
      %3715 = sbr.rel (0) target = $region21
    $region20: #{tpu_custom_call.1} parent=1 // pred_region
      %3716 = dma.done [#allocation4], 128
    $region21: #{tpu_custom_call.1} parent=1 // pred_fallthru
      _
    %3717 = vsyncpa [#allocation3], 1
    %3718 = vsyncpa [#allocation4], 1

</llo_original>
